<compile_context>
chip_gen: v7x
topology: tpu7x:2x2x1
jax: 0.10.0
libtpu: 0.0.40
codegen_flags: <defaults>
</compile_context>

<pallas_src>
import functools

import jax
import jax.numpy as jnp
from jax.experimental import pallas as pl
from jax.experimental.pallas import tpu as pltpu


# ----------------------------------------------------------------------------
# Fused forward kernel: one grid step = `batch_block` sequences, end to end.
# ----------------------------------------------------------------------------
def fused_transformer_kernel(
        x_ref, pos_ref, conv_w_ref, conv_b_ref,
        ln1g_ref, ln1b_ref, wqkv_ref, bqkv_ref, wo_ref, bo_ref,
        ln2g_ref, ln2b_ref, w1_ref, b1_ref, w2_ref, b2_ref,
        dense_w_ref, dense_b_ref, cls_w_ref, cls_b_ref,
        o_ref, *, batch_block, seq_len, num_heads, head_dim, num_blocks,
        kernel_size, eps=1e-5):
    f32, bf16 = jnp.float32, jnp.bfloat16
    Bblk, T, H, hd, K = batch_block, seq_len, num_heads, head_dim, kernel_size
    E = H * hd
    R = Bblk * T                      # flattened rows handled by this grid step
    pad_l = (K - 1) // 2

    def mm(a, b):                     # MXU matmul: bf16 operands, f32 accumulation
        return jnp.dot(a.astype(bf16), b.astype(bf16), preferred_element_type=f32)

    def layernorm(v, g, b):
        mu = jnp.mean(v, axis=-1, keepdims=True)
        var = jnp.mean((v - mu) ** 2, axis=-1, keepdims=True)
        return (v - mu) * jax.lax.rsqrt(var + eps) * g + b

    x = x_ref[...]                                        # (R, F) f32

    # ---- Conv1d('same') via im2col: one (R, K*F) @ (K*F, E) matmul -------------------
    r_ids = jax.lax.broadcasted_iota(jnp.int32, (R, 1), 0)     # flattened row index
    cols = []
    for k in range(K):                                    # static tap unroll
        d = k - pad_l
        if d == 0:
            cols.append(x)
            continue
        xs = pltpu.roll(x, shift=(-d) % R, axis=0)        # XLU sublane rotate: xs[r]=x[r+d]
        # zero rows whose shifted position falls outside their own sequence ('same' pad,
        # also kills cross-sequence wrap-around of the flattened roll)
        valid = jnp.ones((R, 1), dtype=jnp.bool_)
        for b in range(Bblk):
            if d > 0:
                lo, hi = b * T + T - d, b * T + T
            else:
                lo, hi = b * T, b * T - d
            valid = jnp.logical_and(valid, jnp.logical_or(r_ids < lo, r_ids >= hi))
        cols.append(jnp.where(valid, xs, 0.0))
    im2col = jnp.concatenate(cols, axis=-1)               # (R, K*F)
    h = jnp.maximum(mm(im2col, conv_w_ref[...]) + conv_b_ref[...], 0.0) + pos_ref[...]

    # ---- Transformer blocks (pre-LN MHA + residual, pre-LN FFN + residual) -----------
    for blk in range(num_blocks):                         # static unroll over layers
        nx = layernorm(h, ln1g_ref[blk], ln1b_ref[blk])
        qkv = mm(nx, wqkv_ref[blk]) + bqkv_ref[blk]       # (R, 3E); Q pre-scaled by 1/sqrt(hd)
        attn_rows = []
        for b in range(Bblk):                             # scores / PV are per sequence
            r0 = b * T
            head_outs = []
            for hh in range(H):                           # static unroll over heads
                c = hh * hd
                q = qkv[r0:r0 + T, c:c + hd]
                kk = qkv[r0:r0 + T, E + c:E + c + hd]
                v = qkv[r0:r0 + T, 2 * E + c:2 * E + c + hd]
                s = jax.lax.dot_general(                  # q @ k^T without explicit .T
                    q.astype(bf16), kk.astype(bf16),
                    (((1,), (1,)), ((), ())), preferred_element_type=f32)
                s = s - jnp.max(s, axis=-1, keepdims=True)
                p = jnp.exp(s)
                p = p * pl.reciprocal(jnp.sum(p, axis=-1, keepdims=True), approx=True)
                head_outs.append(mm(p, v))                # (T, hd)
            attn_rows.append(jnp.concatenate(head_outs, axis=-1))      # (T, E)
        attn = attn_rows[0] if Bblk == 1 else jnp.concatenate(attn_rows, axis=0)
        h = h + mm(attn, wo_ref[blk]) + bo_ref[blk]       # single (E,E) out-projection
        # attention dropout = identity (eval)

        nx = layernorm(h, ln2g_ref[blk], ln2b_ref[blk])
        hid = jnp.maximum(mm(nx, w1_ref[blk]) + b1_ref[blk], 0.0)
        h = h + mm(hid, w2_ref[blk]) + b2_ref[blk]        # ffn dropout = identity (eval)

    # ---- mean pool over seq + dense + ReLU + classifier ------------------------------
    rows_out = o_ref.shape[0]                             # sublane-aligned (>= Bblk)
    pooled_rows = [jnp.mean(h[b * T:(b + 1) * T, :], axis=0, keepdims=True)
                   for b in range(Bblk)]
    if rows_out > Bblk:                                   # pad to aligned output block
        pooled_rows.append(jnp.zeros((rows_out - Bblk, E), f32))
    pooled = jnp.concatenate(pooled_rows, axis=0)         # (rows_out, E)
    dense = jnp.maximum(mm(pooled, dense_w_ref[...]) + dense_b_ref[...], 0.0)
    # head dropout = identity (eval); lane-dense (rows_out, 128) store
    o_ref[...] = mm(dense, cls_w_ref[...]) + cls_b_ref[...]


# ----------------------------------------------------------------------------
# Wrapper: one pallas_call for the whole model.
# ----------------------------------------------------------------------------
def transformer_model_forward(x, params, *, num_heads, batch_block=None):
    B, T, F = x.shape
    E = params["dense_w"].shape[0]
    num_blocks = params["ln1g"].shape[0]
    C = params["cls_w"].shape[1]
    K = params["conv_w"].shape[0]
    head_dim = E // num_heads

    if batch_block is None:
        # Default: 2-long "parallel" grid keeps both v7x TensorCores busy while still
        # folding batch into the matmul M dim.  Use batch_block=B on v5e/v6e for one step.
        batch_block = B if B < 2 else (B // 2 if B % 2 == 0 else 1)
    assert B % batch_block == 0, (B, batch_block)
    grid_len = B // batch_block
    R = batch_block * T
    assert R % 8 == 0, "batch_block * time_steps must be sublane (8) aligned"
    rows_out = ((batch_block + 7) // 8) * 8               # aligned output rows per step
    c_pad = ((C + 127) // 128) * 128                      # lane-dense classifier width

    # --- one-time wrapper-side weight transforms (scale fold, QKV fuse, im2col W, pad) ---
    scale = 1.0 / (head_dim ** 0.5)
    wqkv = jnp.concatenate([params["wq"] * scale, params["wk"], params["wv"]], axis=-1)
    bqkv = jnp.concatenate([params["bq"] * scale, params["bk"], params["bv"]], axis=-1)
    conv_w = params["conv_w"].reshape(K * F, E)           # (K,F,E) -> (K*F, E) im2col form
    pos = jnp.tile(params["pos"], (batch_block, 1))       # (R, E)
    cls_w = jnp.pad(params["cls_w"], ((0, 0), (0, c_pad - C)))
    cls_b = jnp.pad(params["cls_b"], ((0, 0), (0, c_pad - C)))

    weights = (pos, conv_w, params["conv_b"],
               params["ln1g"], params["ln1b"], wqkv, bqkv, params["wo"], params["bo"],
               params["ln2g"], params["ln2b"], params["w1"], params["b1"],
               params["w2"], params["b2"],
               params["dense_w"], params["dense_b"], cls_w, cls_b)

    def full_spec(shape):
        n = len(shape)
        return pl.BlockSpec(shape, lambda i, n=n: (0,) * n)

    kernel = functools.partial(
        fused_transformer_kernel, batch_block=batch_block, seq_len=T,
        num_heads=num_heads, head_dim=head_dim, num_blocks=num_blocks, kernel_size=K)

    out = pl.pallas_call(
        kernel,
        out_shape=jax.ShapeDtypeStruct((grid_len * rows_out, c_pad), jnp.float32),
        grid=(grid_len,),
        in_specs=[pl.BlockSpec((R, F), lambda i: (i, 0))]
                 + [full_spec(w.shape) for w in weights],
        out_specs=pl.BlockSpec((rows_out, c_pad), lambda i: (i, 0)),
        compiler_params=pltpu.CompilerParams(dimension_semantics=("parallel",)),
    )(x.reshape(B * T, F), *weights)

    return out.reshape(grid_len, rows_out, c_pad)[:, :batch_block, :C].reshape(B, C)


# ----------------------------------------------------------------------------
# Deterministic synthetic parameters (shapes from the PyTorch __init__)
# ----------------------------------------------------------------------------
def init_params(key, *, T, F, E, H, FF, C, K, num_blocks):
    keys = iter(jax.random.split(key, 24))

    def nrm(shape, std=0.1):
        return (std * jax.random.normal(next(keys), shape)).astype(jnp.float32)

    zeros = lambda s: jnp.zeros(s, jnp.float32)
    ones = lambda s: jnp.ones(s, jnp.float32)
    return {
        # conv weight stored as (K, F, E)  (torch Conv1d weight is (E, F, K))
        "conv_w": nrm((K, F, E)),
        "conv_b": zeros((1, E)),
        "pos": nrm((T, E), 0.02),                         # trunc_normal(std=0.02) analogue
        "ln1g": ones((num_blocks, 1, E)), "ln1b": zeros((num_blocks, 1, E)),
        # MHA in_proj stored as (num_blocks, E, E) per Q/K/V (head h = columns h*hd:(h+1)*hd)
        "wq": nrm((num_blocks, E, E)), "bq": zeros((num_blocks, 1, E)),
        "wk": nrm((num_blocks, E, E)), "bk": zeros((num_blocks, 1, E)),
        "wv": nrm((num_blocks, E, E)), "bv": zeros((num_blocks, 1, E)),
        # MHA out_proj stored as (num_blocks, E, E) = out_proj.weight.T
        "wo": nrm((num_blocks, E, E)), "bo": zeros((num_blocks, 1, E)),
        "ln2g": ones((num_blocks, 1, E)), "ln2b": zeros((num_blocks, 1, E)),
        "w1": nrm((num_blocks, E, FF)), "b1": zeros((num_blocks, 1, FF)),
        "w2": nrm((num_blocks, FF, E)), "b2": zeros((num_blocks, 1, E)),
        "dense_w": nrm((E, E)), "dense_b": zeros((1, E)),
        "cls_w": nrm((E, C)), "cls_b": zeros((1, C)),
        # NOTE: the reference module also defines q_proj/k_proj/v_proj Linears that are
        # never used in forward(), so they are intentionally omitted here.
    }


if __name__ == "__main__":
    # hp_dict analogue: embed_dim=32, kernel_size=3, num_heads=4, ff_dim=64,
    # num_blocks=2, pool_type='mean'; input_shape=(16, 8); num_classes=5
    B, T, F = 4, 16, 8
    E, H, FF, C, K = 32, 4, 64, 5, 3
    NUM_BLOCKS = 2

    key = jax.random.PRNGKey(0)
    pkey, xkey = jax.random.split(key)
    params = init_params(pkey, T=T, F=F, E=E, H=H, FF=FF, C=C, K=K,
                         num_blocks=NUM_BLOCKS)
    x = jax.random.normal(xkey, (B, T, F), jnp.float32)   # (batch, time_steps, features)

    fwd = jax.jit(functools.partial(transformer_model_forward, num_heads=H))
    logits = jax.block_until_ready(fwd(x, params))
    assert logits.shape == (B, C), logits.shape
    assert bool(jnp.all(jnp.isfinite(logits)))
    print("KERNEL_OK")
</pallas_src>

<mosaic_0001>
module attributes {stable_mosaic.version = 11 : i64} {
  func.func @fused_transformer_kernel(%arg0: i32, %arg1: memref<32x8xf32, #tpu.memory_space<vmem>>, %arg2: memref<32x32xf32, #tpu.memory_space<vmem>>, %arg3: memref<24x32xf32, #tpu.memory_space<vmem>>, %arg4: memref<1x32xf32, #tpu.memory_space<vmem>>, %arg5: memref<2x1x32xf32, #tpu.memory_space<vmem>>, %arg6: memref<2x1x32xf32, #tpu.memory_space<vmem>>, %arg7: memref<2x32x96xf32, #tpu.memory_space<vmem>>, %arg8: memref<2x1x96xf32, #tpu.memory_space<vmem>>, %arg9: memref<2x32x32xf32, #tpu.memory_space<vmem>>, %arg10: memref<2x1x32xf32, #tpu.memory_space<vmem>>, %arg11: memref<2x1x32xf32, #tpu.memory_space<vmem>>, %arg12: memref<2x1x32xf32, #tpu.memory_space<vmem>>, %arg13: memref<2x32x64xf32, #tpu.memory_space<vmem>>, %arg14: memref<2x1x64xf32, #tpu.memory_space<vmem>>, %arg15: memref<2x64x32xf32, #tpu.memory_space<vmem>>, %arg16: memref<2x1x32xf32, #tpu.memory_space<vmem>>, %arg17: memref<32x32xf32, #tpu.memory_space<vmem>>, %arg18: memref<1x32xf32, #tpu.memory_space<vmem>>, %arg19: memref<32x128xf32, #tpu.memory_space<vmem>>, %arg20: memref<1x128xf32, #tpu.memory_space<vmem>>, %arg21: memref<8x128xf32, #tpu.memory_space<vmem>>) attributes {dimension_semantics = [#tpu.dimension_semantics<parallel>], iteration_bounds = array<i64: 2>, scalar_prefetch = 0 : i64, scratch_operands = 0 : i64, tpu.core_type = #tpu.core_type<tc>, window_params = [{transform_indices = @transform_0, window_bounds = array<i64: 32, 8>}, {pipeline_mode = #tpu.pipeline_mode<synchronous>, transform_indices = @transform_1, window_bounds = array<i64: 32, 32>}, {pipeline_mode = #tpu.pipeline_mode<synchronous>, transform_indices = @transform_2, window_bounds = array<i64: 24, 32>}, {pipeline_mode = #tpu.pipeline_mode<synchronous>, transform_indices = @transform_3, window_bounds = array<i64: 1, 32>}, {pipeline_mode = #tpu.pipeline_mode<synchronous>, transform_indices = @transform_4, window_bounds = array<i64: 2, 1, 32>}, {pipeline_mode = #tpu.pipeline_mode<synchronous>, transform_indices = @transform_5, window_bounds = array<i64: 2, 1, 32>}, {pipeline_mode = #tpu.pipeline_mode<synchronous>, transform_indices = @transform_6, window_bounds = array<i64: 2, 32, 96>}, {pipeline_mode = #tpu.pipeline_mode<synchronous>, transform_indices = @transform_7, window_bounds = array<i64: 2, 1, 96>}, {pipeline_mode = #tpu.pipeline_mode<synchronous>, transform_indices = @transform_8, window_bounds = array<i64: 2, 32, 32>}, {pipeline_mode = #tpu.pipeline_mode<synchronous>, transform_indices = @transform_9, window_bounds = array<i64: 2, 1, 32>}, {pipeline_mode = #tpu.pipeline_mode<synchronous>, transform_indices = @transform_10, window_bounds = array<i64: 2, 1, 32>}, {pipeline_mode = #tpu.pipeline_mode<synchronous>, transform_indices = @transform_11, window_bounds = array<i64: 2, 1, 32>}, {pipeline_mode = #tpu.pipeline_mode<synchronous>, transform_indices = @transform_12, window_bounds = array<i64: 2, 32, 64>}, {pipeline_mode = #tpu.pipeline_mode<synchronous>, transform_indices = @transform_13, window_bounds = array<i64: 2, 1, 64>}, {pipeline_mode = #tpu.pipeline_mode<synchronous>, transform_indices = @transform_14, window_bounds = array<i64: 2, 64, 32>}, {pipeline_mode = #tpu.pipeline_mode<synchronous>, transform_indices = @transform_15, window_bounds = array<i64: 2, 1, 32>}, {pipeline_mode = #tpu.pipeline_mode<synchronous>, transform_indices = @transform_16, window_bounds = array<i64: 32, 32>}, {pipeline_mode = #tpu.pipeline_mode<synchronous>, transform_indices = @transform_17, window_bounds = array<i64: 1, 32>}, {pipeline_mode = #tpu.pipeline_mode<synchronous>, transform_indices = @transform_18, window_bounds = array<i64: 32, 128>}, {pipeline_mode = #tpu.pipeline_mode<synchronous>, transform_indices = @transform_19, window_bounds = array<i64: 1, 128>}, {transform_indices = @transform_20, window_bounds = array<i64: 8, 128>}]} {
    %c0 = arith.constant 0 : index
    %c0_0 = arith.constant 0 : index
    %0 = vector.load %arg1[%c0, %c0_0] : memref<32x8xf32, #tpu.memory_space<vmem>>, vector<32x8xf32>
    %1 = tpu.iota {dimensions = array<i32: 0>} : vector<32x1xi32>
    %c1_i32 = arith.constant 1 : i32
    %2 = tpu.dynamic_rotate %0 by %c1_i32 dim 0 : vector<32x8xf32>, i32 -> vector<32x8xf32>
    %true = arith.constant true
    %3 = vector.broadcast %true : i1 to vector<32x1xi1>
    %c0_i32 = arith.constant 0 : i32
    %4 = vector.broadcast %c0_i32 : i32 to vector<32x1xi32>
    %5 = arith.cmpi slt, %1, %4 : vector<32x1xi32>
    %c1_i32_1 = arith.constant 1 : i32
    %6 = vector.broadcast %c1_i32_1 : i32 to vector<32x1xi32>
    %7 = arith.cmpi sge, %1, %6 : vector<32x1xi32>
    %8 = arith.ori %5, %7 : vector<32x1xi1>
    %9 = arith.andi %3, %8 : vector<32x1xi1>
    %c16_i32 = arith.constant 16 : i32
    %10 = vector.broadcast %c16_i32 : i32 to vector<32x1xi32>
    %11 = arith.cmpi slt, %1, %10 : vector<32x1xi32>
    %c17_i32 = arith.constant 17 : i32
    %12 = vector.broadcast %c17_i32 : i32 to vector<32x1xi32>
    %13 = arith.cmpi sge, %1, %12 : vector<32x1xi32>
    %14 = arith.ori %11, %13 : vector<32x1xi1>
    %15 = arith.andi %9, %14 : vector<32x1xi1>
    %cst = arith.constant 0.000000e+00 : f32
    %16 = vector.shape_cast %15 : vector<32x1xi1> to vector<32x1xi1>
    %17 = vector.broadcast %16 : vector<32x1xi1> to vector<32x8xi1>
    %18 = vector.broadcast %cst : f32 to vector<32x8xf32>
    %19 = arith.select %17, %2, %18 : vector<32x8xi1>, vector<32x8xf32>
    %c31_i32 = arith.constant 31 : i32
    %20 = tpu.dynamic_rotate %0 by %c31_i32 dim 0 : vector<32x8xf32>, i32 -> vector<32x8xf32>
    %true_2 = arith.constant true
    %21 = vector.broadcast %true_2 : i1 to vector<32x1xi1>
    %c15_i32 = arith.constant 15 : i32
    %22 = vector.broadcast %c15_i32 : i32 to vector<32x1xi32>
    %23 = arith.cmpi slt, %1, %22 : vector<32x1xi32>
    %c16_i32_3 = arith.constant 16 : i32
    %24 = vector.broadcast %c16_i32_3 : i32 to vector<32x1xi32>
    %25 = arith.cmpi sge, %1, %24 : vector<32x1xi32>
    %26 = arith.ori %23, %25 : vector<32x1xi1>
    %27 = arith.andi %21, %26 : vector<32x1xi1>
    %c31_i32_4 = arith.constant 31 : i32
    %28 = vector.broadcast %c31_i32_4 : i32 to vector<32x1xi32>
    %29 = arith.cmpi slt, %1, %28 : vector<32x1xi32>
    %c32_i32 = arith.constant 32 : i32
    %30 = vector.broadcast %c32_i32 : i32 to vector<32x1xi32>
    %31 = arith.cmpi sge, %1, %30 : vector<32x1xi32>
    %32 = arith.ori %29, %31 : vector<32x1xi1>
    %33 = arith.andi %27, %32 : vector<32x1xi1>
    %cst_5 = arith.constant 0.000000e+00 : f32
    %34 = vector.shape_cast %33 : vector<32x1xi1> to vector<32x1xi1>
    %35 = vector.broadcast %34 : vector<32x1xi1> to vector<32x8xi1>
    %36 = vector.broadcast %cst_5 : f32 to vector<32x8xf32>
    %37 = arith.select %35, %20, %36 : vector<32x8xi1>, vector<32x8xf32>
    %38 = tpu.concatenate %19, %0, %37 in 1 : vector<32x8xf32>, vector<32x8xf32>, vector<32x8xf32> -> vector<32x24xf32>
    %c0_6 = arith.constant 0 : index
    %c0_7 = arith.constant 0 : index
    %39 = vector.load %arg3[%c0_6, %c0_7] : memref<24x32xf32, #tpu.memory_space<vmem>>, vector<24x32xf32>
    %40 = arith.truncf %38 : vector<32x24xf32> to vector<32x24xbf16>
    %41 = arith.truncf %39 : vector<24x32xf32> to vector<24x32xbf16>
    %cst_8 = arith.constant dense<0.000000e+00> : vector<32x32xf32>
    %42 = tpu.matmul %40, %41, %cst_8 {dimension_numbers = #tpu.dot_dimension_numbers<[1], [0], [0], [1], [0, 0, 1, 1], [], []>} : vector<32x24xbf16>, vector<24x32xbf16>, vector<32x32xf32> -> vector<32x32xf32>
    %c0_9 = arith.constant 0 : index
    %c0_10 = arith.constant 0 : index
    %43 = vector.load %arg4[%c0_9, %c0_10] : memref<1x32xf32, #tpu.memory_space<vmem>>, vector<1x32xf32>
    %44 = vector.broadcast %43 : vector<1x32xf32> to vector<32x32xf32>
    %45 = arith.addf %42, %44 : vector<32x32xf32>
    %cst_11 = arith.constant 0.000000e+00 : f32
    %46 = vector.broadcast %cst_11 : f32 to vector<32x32xf32>
    %47 = arith.maximumf %45, %46 : vector<32x32xf32>
    %c0_12 = arith.constant 0 : index
    %c0_13 = arith.constant 0 : index
    %48 = vector.load %arg2[%c0_12, %c0_13] : memref<32x32xf32, #tpu.memory_space<vmem>>, vector<32x32xf32>
    %49 = arith.addf %47, %48 : vector<32x32xf32>
    %c0_14 = arith.constant 0 : index
    %c0_15 = arith.constant 0 : index
    %c0_16 = arith.constant 0 : index
    %50 = vector.load %arg5[%c0_14, %c0_15, %c0_16] : memref<2x1x32xf32, #tpu.memory_space<vmem>>, vector<1x1x32xf32>
    %51 = vector.shape_cast %50 : vector<1x1x32xf32> to vector<1x32xf32>
    %c0_17 = arith.constant 0 : index
    %c0_18 = arith.constant 0 : index
    %c0_19 = arith.constant 0 : index
    %52 = vector.load %arg6[%c0_17, %c0_18, %c0_19] : memref<2x1x32xf32, #tpu.memory_space<vmem>>, vector<1x1x32xf32>
    %53 = vector.shape_cast %52 : vector<1x1x32xf32> to vector<1x32xf32>
    %cst_20 = arith.constant dense<0.000000e+00> : vector<32xf32>
    %54 = vector.multi_reduction <add>, %49, %cst_20 [1] : vector<32x32xf32> to vector<32xf32>
    %55 = vector.shape_cast %54 : vector<32xf32> to vector<32x1xf32>
    %cst_21 = arith.constant 3.200000e+01 : f32
    %56 = vector.broadcast %cst_21 : f32 to vector<32x1xf32>
    %57 = arith.divf %55, %56 : vector<32x1xf32>
    %58 = vector.broadcast %57 : vector<32x1xf32> to vector<32x32xf32>
    %59 = arith.subf %49, %58 : vector<32x32xf32>
    %60 = arith.mulf %59, %59 : vector<32x32xf32>
    %cst_22 = arith.constant dense<0.000000e+00> : vector<32xf32>
    %61 = vector.multi_reduction <add>, %60, %cst_22 [1] : vector<32x32xf32> to vector<32xf32>
    %62 = vector.shape_cast %61 : vector<32xf32> to vector<32x1xf32>
    %cst_23 = arith.constant 3.200000e+01 : f32
    %63 = vector.broadcast %cst_23 : f32 to vector<32x1xf32>
    %64 = arith.divf %62, %63 : vector<32x1xf32>
    %65 = vector.broadcast %57 : vector<32x1xf32> to vector<32x32xf32>
    %66 = arith.subf %49, %65 : vector<32x32xf32>
    %cst_24 = arith.constant 9.99999974E-6 : f32
    %67 = vector.broadcast %cst_24 : f32 to vector<32x1xf32>
    %68 = arith.addf %64, %67 : vector<32x1xf32>
    %69 = math.rsqrt %68 : vector<32x1xf32>
    %70 = vector.broadcast %69 : vector<32x1xf32> to vector<32x32xf32>
    %71 = arith.mulf %66, %70 : vector<32x32xf32>
    %72 = vector.broadcast %51 : vector<1x32xf32> to vector<32x32xf32>
    %73 = arith.mulf %71, %72 : vector<32x32xf32>
    %74 = vector.broadcast %53 : vector<1x32xf32> to vector<32x32xf32>
    %75 = arith.addf %73, %74 : vector<32x32xf32>
    %c0_25 = arith.constant 0 : index
    %c0_26 = arith.constant 0 : index
    %c0_27 = arith.constant 0 : index
    %76 = vector.load %arg7[%c0_25, %c0_26, %c0_27] : memref<2x32x96xf32, #tpu.memory_space<vmem>>, vector<1x32x96xf32>
    %77 = vector.shape_cast %76 : vector<1x32x96xf32> to vector<32x96xf32>
    %78 = arith.truncf %75 : vector<32x32xf32> to vector<32x32xbf16>
    %79 = arith.truncf %77 : vector<32x96xf32> to vector<32x96xbf16>
    %cst_28 = arith.constant dense<0.000000e+00> : vector<32x96xf32>
    %80 = tpu.matmul %78, %79, %cst_28 {dimension_numbers = #tpu.dot_dimension_numbers<[1], [0], [0], [1], [0, 0, 1, 1], [], []>} : vector<32x32xbf16>, vector<32x96xbf16>, vector<32x96xf32> -> vector<32x96xf32>
    %c0_29 = arith.constant 0 : index
    %c0_30 = arith.constant 0 : index
    %c0_31 = arith.constant 0 : index
    %81 = vector.load %arg8[%c0_29, %c0_30, %c0_31] : memref<2x1x96xf32, #tpu.memory_space<vmem>>, vector<1x1x96xf32>
    %82 = vector.shape_cast %81 : vector<1x1x96xf32> to vector<1x96xf32>
    %83 = vector.broadcast %82 : vector<1x96xf32> to vector<32x96xf32>
    %84 = arith.addf %80, %83 : vector<32x96xf32>
    %85 = vector.extract_strided_slice %84 {offsets = [0, 0], sizes = [16, 8], strides = [1, 1]} : vector<32x96xf32> to vector<16x8xf32>
    %86 = vector.extract_strided_slice %84 {offsets = [0, 32], sizes = [16, 8], strides = [1, 1]} : vector<32x96xf32> to vector<16x8xf32>
    %87 = vector.extract_strided_slice %84 {offsets = [0, 64], sizes = [16, 8], strides = [1, 1]} : vector<32x96xf32> to vector<16x8xf32>
    %88 = arith.truncf %85 : vector<16x8xf32> to vector<16x8xbf16>
    %89 = arith.truncf %86 : vector<16x8xf32> to vector<16x8xbf16>
    %cst_32 = arith.constant dense<0.000000e+00> : vector<16x16xf32>
    %90 = tpu.matmul %88, %89, %cst_32 {dimension_numbers = #tpu.dot_dimension_numbers<[1], [1], [0], [0], [0, 0, 1, 0], [], []>} : vector<16x8xbf16>, vector<16x8xbf16>, vector<16x16xf32> -> vector<16x16xf32>
    %cst_33 = arith.constant dense<0xFF800000> : vector<16xf32>
    %91 = vector.multi_reduction <maximumf>, %90, %cst_33 [1] : vector<16x16xf32> to vector<16xf32>
    %92 = vector.shape_cast %91 : vector<16xf32> to vector<16x1xf32>
    %93 = vector.broadcast %92 : vector<16x1xf32> to vector<16x16xf32>
    %94 = arith.subf %90, %93 : vector<16x16xf32>
    %95 = math.exp %94 : vector<16x16xf32>
    %cst_34 = arith.constant dense<0.000000e+00> : vector<16xf32>
    %96 = vector.multi_reduction <add>, %95, %cst_34 [1] : vector<16x16xf32> to vector<16xf32>
    %97 = vector.shape_cast %96 : vector<16xf32> to vector<16x1xf32>
    %98 = tpu.reciprocal %97 {approx = true} : vector<16x1xf32> -> vector<16x1xf32>
    %99 = vector.broadcast %98 : vector<16x1xf32> to vector<16x16xf32>
    %100 = arith.mulf %95, %99 : vector<16x16xf32>
    %101 = arith.truncf %100 : vector<16x16xf32> to vector<16x16xbf16>
    %102 = arith.truncf %87 : vector<16x8xf32> to vector<16x8xbf16>
    %cst_35 = arith.constant dense<0.000000e+00> : vector<16x8xf32>
    %103 = tpu.matmul %101, %102, %cst_35 {dimension_numbers = #tpu.dot_dimension_numbers<[1], [0], [0], [1], [0, 0, 1, 1], [], []>} : vector<16x16xbf16>, vector<16x8xbf16>, vector<16x8xf32> -> vector<16x8xf32>
    %104 = vector.extract_strided_slice %84 {offsets = [0, 8], sizes = [16, 8], strides = [1, 1]} : vector<32x96xf32> to vector<16x8xf32>
    %105 = vector.extract_strided_slice %84 {offsets = [0, 40], sizes = [16, 8], strides = [1, 1]} : vector<32x96xf32> to vector<16x8xf32>
    %106 = vector.extract_strided_slice %84 {offsets = [0, 72], sizes = [16, 8], strides = [1, 1]} : vector<32x96xf32> to vector<16x8xf32>
    %107 = arith.truncf %104 : vector<16x8xf32> to vector<16x8xbf16>
    %108 = arith.truncf %105 : vector<16x8xf32> to vector<16x8xbf16>
    %cst_36 = arith.constant dense<0.000000e+00> : vector<16x16xf32>
    %109 = tpu.matmul %107, %108, %cst_36 {dimension_numbers = #tpu.dot_dimension_numbers<[1], [1], [0], [0], [0, 0, 1, 0], [], []>} : vector<16x8xbf16>, vector<16x8xbf16>, vector<16x16xf32> -> vector<16x16xf32>
    %cst_37 = arith.constant dense<0xFF800000> : vector<16xf32>
    %110 = vector.multi_reduction <maximumf>, %109, %cst_37 [1] : vector<16x16xf32> to vector<16xf32>
    %111 = vector.shape_cast %110 : vector<16xf32> to vector<16x1xf32>
    %112 = vector.broadcast %111 : vector<16x1xf32> to vector<16x16xf32>
    %113 = arith.subf %109, %112 : vector<16x16xf32>
    %114 = math.exp %113 : vector<16x16xf32>
    %cst_38 = arith.constant dense<0.000000e+00> : vector<16xf32>
    %115 = vector.multi_reduction <add>, %114, %cst_38 [1] : vector<16x16xf32> to vector<16xf32>
    %116 = vector.shape_cast %115 : vector<16xf32> to vector<16x1xf32>
    %117 = tpu.reciprocal %116 {approx = true} : vector<16x1xf32> -> vector<16x1xf32>
    %118 = vector.broadcast %117 : vector<16x1xf32> to vector<16x16xf32>
    %119 = arith.mulf %114, %118 : vector<16x16xf32>
    %120 = arith.truncf %119 : vector<16x16xf32> to vector<16x16xbf16>
    %121 = arith.truncf %106 : vector<16x8xf32> to vector<16x8xbf16>
    %cst_39 = arith.constant dense<0.000000e+00> : vector<16x8xf32>
    %122 = tpu.matmul %120, %121, %cst_39 {dimension_numbers = #tpu.dot_dimension_numbers<[1], [0], [0], [1], [0, 0, 1, 1], [], []>} : vector<16x16xbf16>, vector<16x8xbf16>, vector<16x8xf32> -> vector<16x8xf32>
    %123 = vector.extract_strided_slice %84 {offsets = [0, 16], sizes = [16, 8], strides = [1, 1]} : vector<32x96xf32> to vector<16x8xf32>
    %124 = vector.extract_strided_slice %84 {offsets = [0, 48], sizes = [16, 8], strides = [1, 1]} : vector<32x96xf32> to vector<16x8xf32>
    %125 = vector.extract_strided_slice %84 {offsets = [0, 80], sizes = [16, 8], strides = [1, 1]} : vector<32x96xf32> to vector<16x8xf32>
    %126 = arith.truncf %123 : vector<16x8xf32> to vector<16x8xbf16>
    %127 = arith.truncf %124 : vector<16x8xf32> to vector<16x8xbf16>
    %cst_40 = arith.constant dense<0.000000e+00> : vector<16x16xf32>
    %128 = tpu.matmul %126, %127, %cst_40 {dimension_numbers = #tpu.dot_dimension_numbers<[1], [1], [0], [0], [0, 0, 1, 0], [], []>} : vector<16x8xbf16>, vector<16x8xbf16>, vector<16x16xf32> -> vector<16x16xf32>
    %cst_41 = arith.constant dense<0xFF800000> : vector<16xf32>
    %129 = vector.multi_reduction <maximumf>, %128, %cst_41 [1] : vector<16x16xf32> to vector<16xf32>
    %130 = vector.shape_cast %129 : vector<16xf32> to vector<16x1xf32>
    %131 = vector.broadcast %130 : vector<16x1xf32> to vector<16x16xf32>
    %132 = arith.subf %128, %131 : vector<16x16xf32>
    %133 = math.exp %132 : vector<16x16xf32>
    %cst_42 = arith.constant dense<0.000000e+00> : vector<16xf32>
    %134 = vector.multi_reduction <add>, %133, %cst_42 [1] : vector<16x16xf32> to vector<16xf32>
    %135 = vector.shape_cast %134 : vector<16xf32> to vector<16x1xf32>
    %136 = tpu.reciprocal %135 {approx = true} : vector<16x1xf32> -> vector<16x1xf32>
    %137 = vector.broadcast %136 : vector<16x1xf32> to vector<16x16xf32>
    %138 = arith.mulf %133, %137 : vector<16x16xf32>
    %139 = arith.truncf %138 : vector<16x16xf32> to vector<16x16xbf16>
    %140 = arith.truncf %125 : vector<16x8xf32> to vector<16x8xbf16>
    %cst_43 = arith.constant dense<0.000000e+00> : vector<16x8xf32>
    %141 = tpu.matmul %139, %140, %cst_43 {dimension_numbers = #tpu.dot_dimension_numbers<[1], [0], [0], [1], [0, 0, 1, 1], [], []>} : vector<16x16xbf16>, vector<16x8xbf16>, vector<16x8xf32> -> vector<16x8xf32>
    %142 = vector.extract_strided_slice %84 {offsets = [0, 24], sizes = [16, 8], strides = [1, 1]} : vector<32x96xf32> to vector<16x8xf32>
    %143 = vector.extract_strided_slice %84 {offsets = [0, 56], sizes = [16, 8], strides = [1, 1]} : vector<32x96xf32> to vector<16x8xf32>
    %144 = vector.extract_strided_slice %84 {offsets = [0, 88], sizes = [16, 8], strides = [1, 1]} : vector<32x96xf32> to vector<16x8xf32>
    %145 = arith.truncf %142 : vector<16x8xf32> to vector<16x8xbf16>
    %146 = arith.truncf %143 : vector<16x8xf32> to vector<16x8xbf16>
    %cst_44 = arith.constant dense<0.000000e+00> : vector<16x16xf32>
    %147 = tpu.matmul %145, %146, %cst_44 {dimension_numbers = #tpu.dot_dimension_numbers<[1], [1], [0], [0], [0, 0, 1, 0], [], []>} : vector<16x8xbf16>, vector<16x8xbf16>, vector<16x16xf32> -> vector<16x16xf32>
    %cst_45 = arith.constant dense<0xFF800000> : vector<16xf32>
    %148 = vector.multi_reduction <maximumf>, %147, %cst_45 [1] : vector<16x16xf32> to vector<16xf32>
    %149 = vector.shape_cast %148 : vector<16xf32> to vector<16x1xf32>
    %150 = vector.broadcast %149 : vector<16x1xf32> to vector<16x16xf32>
    %151 = arith.subf %147, %150 : vector<16x16xf32>
    %152 = math.exp %151 : vector<16x16xf32>
    %cst_46 = arith.constant dense<0.000000e+00> : vector<16xf32>
    %153 = vector.multi_reduction <add>, %152, %cst_46 [1] : vector<16x16xf32> to vector<16xf32>
    %154 = vector.shape_cast %153 : vector<16xf32> to vector<16x1xf32>
    %155 = tpu.reciprocal %154 {approx = true} : vector<16x1xf32> -> vector<16x1xf32>
    %156 = vector.broadcast %155 : vector<16x1xf32> to vector<16x16xf32>
    %157 = arith.mulf %152, %156 : vector<16x16xf32>
    %158 = arith.truncf %157 : vector<16x16xf32> to vector<16x16xbf16>
    %159 = arith.truncf %144 : vector<16x8xf32> to vector<16x8xbf16>
    %cst_47 = arith.constant dense<0.000000e+00> : vector<16x8xf32>
    %160 = tpu.matmul %158, %159, %cst_47 {dimension_numbers = #tpu.dot_dimension_numbers<[1], [0], [0], [1], [0, 0, 1, 1], [], []>} : vector<16x16xbf16>, vector<16x8xbf16>, vector<16x8xf32> -> vector<16x8xf32>
    %161 = tpu.concatenate %103, %122, %141, %160 in 1 : vector<16x8xf32>, vector<16x8xf32>, vector<16x8xf32>, vector<16x8xf32> -> vector<16x32xf32>
    %162 = vector.extract_strided_slice %84 {offsets = [16, 0], sizes = [16, 8], strides = [1, 1]} : vector<32x96xf32> to vector<16x8xf32>
    %163 = vector.extract_strided_slice %84 {offsets = [16, 32], sizes = [16, 8], strides = [1, 1]} : vector<32x96xf32> to vector<16x8xf32>
    %164 = vector.extract_strided_slice %84 {offsets = [16, 64], sizes = [16, 8], strides = [1, 1]} : vector<32x96xf32> to vector<16x8xf32>
    %165 = arith.truncf %162 : vector<16x8xf32> to vector<16x8xbf16>
    %166 = arith.truncf %163 : vector<16x8xf32> to vector<16x8xbf16>
    %cst_48 = arith.constant dense<0.000000e+00> : vector<16x16xf32>
    %167 = tpu.matmul %165, %166, %cst_48 {dimension_numbers = #tpu.dot_dimension_numbers<[1], [1], [0], [0], [0, 0, 1, 0], [], []>} : vector<16x8xbf16>, vector<16x8xbf16>, vector<16x16xf32> -> vector<16x16xf32>
    %cst_49 = arith.constant dense<0xFF800000> : vector<16xf32>
    %168 = vector.multi_reduction <maximumf>, %167, %cst_49 [1] : vector<16x16xf32> to vector<16xf32>
    %169 = vector.shape_cast %168 : vector<16xf32> to vector<16x1xf32>
    %170 = vector.broadcast %169 : vector<16x1xf32> to vector<16x16xf32>
    %171 = arith.subf %167, %170 : vector<16x16xf32>
    %172 = math.exp %171 : vector<16x16xf32>
    %cst_50 = arith.constant dense<0.000000e+00> : vector<16xf32>
    %173 = vector.multi_reduction <add>, %172, %cst_50 [1] : vector<16x16xf32> to vector<16xf32>
    %174 = vector.shape_cast %173 : vector<16xf32> to vector<16x1xf32>
    %175 = tpu.reciprocal %174 {approx = true} : vector<16x1xf32> -> vector<16x1xf32>
    %176 = vector.broadcast %175 : vector<16x1xf32> to vector<16x16xf32>
    %177 = arith.mulf %172, %176 : vector<16x16xf32>
    %178 = arith.truncf %177 : vector<16x16xf32> to vector<16x16xbf16>
    %179 = arith.truncf %164 : vector<16x8xf32> to vector<16x8xbf16>
    %cst_51 = arith.constant dense<0.000000e+00> : vector<16x8xf32>
    %180 = tpu.matmul %178, %179, %cst_51 {dimension_numbers = #tpu.dot_dimension_numbers<[1], [0], [0], [1], [0, 0, 1, 1], [], []>} : vector<16x16xbf16>, vector<16x8xbf16>, vector<16x8xf32> -> vector<16x8xf32>
    %181 = vector.extract_strided_slice %84 {offsets = [16, 8], sizes = [16, 8], strides = [1, 1]} : vector<32x96xf32> to vector<16x8xf32>
    %182 = vector.extract_strided_slice %84 {offsets = [16, 40], sizes = [16, 8], strides = [1, 1]} : vector<32x96xf32> to vector<16x8xf32>
    %183 = vector.extract_strided_slice %84 {offsets = [16, 72], sizes = [16, 8], strides = [1, 1]} : vector<32x96xf32> to vector<16x8xf32>
    %184 = arith.truncf %181 : vector<16x8xf32> to vector<16x8xbf16>
    %185 = arith.truncf %182 : vector<16x8xf32> to vector<16x8xbf16>
    %cst_52 = arith.constant dense<0.000000e+00> : vector<16x16xf32>
    %186 = tpu.matmul %184, %185, %cst_52 {dimension_numbers = #tpu.dot_dimension_numbers<[1], [1], [0], [0], [0, 0, 1, 0], [], []>} : vector<16x8xbf16>, vector<16x8xbf16>, vector<16x16xf32> -> vector<16x16xf32>
    %cst_53 = arith.constant dense<0xFF800000> : vector<16xf32>
    %187 = vector.multi_reduction <maximumf>, %186, %cst_53 [1] : vector<16x16xf32> to vector<16xf32>
    %188 = vector.shape_cast %187 : vector<16xf32> to vector<16x1xf32>
    %189 = vector.broadcast %188 : vector<16x1xf32> to vector<16x16xf32>
    %190 = arith.subf %186, %189 : vector<16x16xf32>
    %191 = math.exp %190 : vector<16x16xf32>
    %cst_54 = arith.constant dense<0.000000e+00> : vector<16xf32>
    %192 = vector.multi_reduction <add>, %191, %cst_54 [1] : vector<16x16xf32> to vector<16xf32>
    %193 = vector.shape_cast %192 : vector<16xf32> to vector<16x1xf32>
    %194 = tpu.reciprocal %193 {approx = true} : vector<16x1xf32> -> vector<16x1xf32>
    %195 = vector.broadcast %194 : vector<16x1xf32> to vector<16x16xf32>
    %196 = arith.mulf %191, %195 : vector<16x16xf32>
    %197 = arith.truncf %196 : vector<16x16xf32> to vector<16x16xbf16>
    %198 = arith.truncf %183 : vector<16x8xf32> to vector<16x8xbf16>
    %cst_55 = arith.constant dense<0.000000e+00> : vector<16x8xf32>
    %199 = tpu.matmul %197, %198, %cst_55 {dimension_numbers = #tpu.dot_dimension_numbers<[1], [0], [0], [1], [0, 0, 1, 1], [], []>} : vector<16x16xbf16>, vector<16x8xbf16>, vector<16x8xf32> -> vector<16x8xf32>
    %200 = vector.extract_strided_slice %84 {offsets = [16, 16], sizes = [16, 8], strides = [1, 1]} : vector<32x96xf32> to vector<16x8xf32>
    %201 = vector.extract_strided_slice %84 {offsets = [16, 48], sizes = [16, 8], strides = [1, 1]} : vector<32x96xf32> to vector<16x8xf32>
    %202 = vector.extract_strided_slice %84 {offsets = [16, 80], sizes = [16, 8], strides = [1, 1]} : vector<32x96xf32> to vector<16x8xf32>
    %203 = arith.truncf %200 : vector<16x8xf32> to vector<16x8xbf16>
    %204 = arith.truncf %201 : vector<16x8xf32> to vector<16x8xbf16>
    %cst_56 = arith.constant dense<0.000000e+00> : vector<16x16xf32>
    %205 = tpu.matmul %203, %204, %cst_56 {dimension_numbers = #tpu.dot_dimension_numbers<[1], [1], [0], [0], [0, 0, 1, 0], [], []>} : vector<16x8xbf16>, vector<16x8xbf16>, vector<16x16xf32> -> vector<16x16xf32>
    %cst_57 = arith.constant dense<0xFF800000> : vector<16xf32>
    %206 = vector.multi_reduction <maximumf>, %205, %cst_57 [1] : vector<16x16xf32> to vector<16xf32>
    %207 = vector.shape_cast %206 : vector<16xf32> to vector<16x1xf32>
    %208 = vector.broadcast %207 : vector<16x1xf32> to vector<16x16xf32>
    %209 = arith.subf %205, %208 : vector<16x16xf32>
    %210 = math.exp %209 : vector<16x16xf32>
    %cst_58 = arith.constant dense<0.000000e+00> : vector<16xf32>
    %211 = vector.multi_reduction <add>, %210, %cst_58 [1] : vector<16x16xf32> to vector<16xf32>
    %212 = vector.shape_cast %211 : vector<16xf32> to vector<16x1xf32>
    %213 = tpu.reciprocal %212 {approx = true} : vector<16x1xf32> -> vector<16x1xf32>
    %214 = vector.broadcast %213 : vector<16x1xf32> to vector<16x16xf32>
    %215 = arith.mulf %210, %214 : vector<16x16xf32>
    %216 = arith.truncf %215 : vector<16x16xf32> to vector<16x16xbf16>
    %217 = arith.truncf %202 : vector<16x8xf32> to vector<16x8xbf16>
    %cst_59 = arith.constant dense<0.000000e+00> : vector<16x8xf32>
    %218 = tpu.matmul %216, %217, %cst_59 {dimension_numbers = #tpu.dot_dimension_numbers<[1], [0], [0], [1], [0, 0, 1, 1], [], []>} : vector<16x16xbf16>, vector<16x8xbf16>, vector<16x8xf32> -> vector<16x8xf32>
    %219 = vector.extract_strided_slice %84 {offsets = [16, 24], sizes = [16, 8], strides = [1, 1]} : vector<32x96xf32> to vector<16x8xf32>
    %220 = vector.extract_strided_slice %84 {offsets = [16, 56], sizes = [16, 8], strides = [1, 1]} : vector<32x96xf32> to vector<16x8xf32>
    %221 = vector.extract_strided_slice %84 {offsets = [16, 88], sizes = [16, 8], strides = [1, 1]} : vector<32x96xf32> to vector<16x8xf32>
    %222 = arith.truncf %219 : vector<16x8xf32> to vector<16x8xbf16>
    %223 = arith.truncf %220 : vector<16x8xf32> to vector<16x8xbf16>
    %cst_60 = arith.constant dense<0.000000e+00> : vector<16x16xf32>
    %224 = tpu.matmul %222, %223, %cst_60 {dimension_numbers = #tpu.dot_dimension_numbers<[1], [1], [0], [0], [0, 0, 1, 0], [], []>} : vector<16x8xbf16>, vector<16x8xbf16>, vector<16x16xf32> -> vector<16x16xf32>
    %cst_61 = arith.constant dense<0xFF800000> : vector<16xf32>
    %225 = vector.multi_reduction <maximumf>, %224, %cst_61 [1] : vector<16x16xf32> to vector<16xf32>
    %226 = vector.shape_cast %225 : vector<16xf32> to vector<16x1xf32>
    %227 = vector.broadcast %226 : vector<16x1xf32> to vector<16x16xf32>
    %228 = arith.subf %224, %227 : vector<16x16xf32>
    %229 = math.exp %228 : vector<16x16xf32>
    %cst_62 = arith.constant dense<0.000000e+00> : vector<16xf32>
    %230 = vector.multi_reduction <add>, %229, %cst_62 [1] : vector<16x16xf32> to vector<16xf32>
    %231 = vector.shape_cast %230 : vector<16xf32> to vector<16x1xf32>
    %232 = tpu.reciprocal %231 {approx = true} : vector<16x1xf32> -> vector<16x1xf32>
    %233 = vector.broadcast %232 : vector<16x1xf32> to vector<16x16xf32>
    %234 = arith.mulf %229, %233 : vector<16x16xf32>
    %235 = arith.truncf %234 : vector<16x16xf32> to vector<16x16xbf16>
    %236 = arith.truncf %221 : vector<16x8xf32> to vector<16x8xbf16>
    %cst_63 = arith.constant dense<0.000000e+00> : vector<16x8xf32>
    %237 = tpu.matmul %235, %236, %cst_63 {dimension_numbers = #tpu.dot_dimension_numbers<[1], [0], [0], [1], [0, 0, 1, 1], [], []>} : vector<16x16xbf16>, vector<16x8xbf16>, vector<16x8xf32> -> vector<16x8xf32>
    %238 = tpu.concatenate %180, %199, %218, %237 in 1 : vector<16x8xf32>, vector<16x8xf32>, vector<16x8xf32>, vector<16x8xf32> -> vector<16x32xf32>
    %239 = tpu.concatenate %161, %238 in 0 : vector<16x32xf32>, vector<16x32xf32> -> vector<32x32xf32>
    %c0_64 = arith.constant 0 : index
    %c0_65 = arith.constant 0 : index
    %c0_66 = arith.constant 0 : index
    %240 = vector.load %arg9[%c0_64, %c0_65, %c0_66] : memref<2x32x32xf32, #tpu.memory_space<vmem>>, vector<1x32x32xf32>
    %241 = vector.shape_cast %240 : vector<1x32x32xf32> to vector<32x32xf32>
    %242 = arith.truncf %239 : vector<32x32xf32> to vector<32x32xbf16>
    %243 = arith.truncf %241 : vector<32x32xf32> to vector<32x32xbf16>
    %cst_67 = arith.constant dense<0.000000e+00> : vector<32x32xf32>
    %244 = tpu.matmul %242, %243, %cst_67 {dimension_numbers = #tpu.dot_dimension_numbers<[1], [0], [0], [1], [0, 0, 1, 1], [], []>} : vector<32x32xbf16>, vector<32x32xbf16>, vector<32x32xf32> -> vector<32x32xf32>
    %245 = arith.addf %49, %244 : vector<32x32xf32>
    %c0_68 = arith.constant 0 : index
    %c0_69 = arith.constant 0 : index
    %c0_70 = arith.constant 0 : index
    %246 = vector.load %arg10[%c0_68, %c0_69, %c0_70] : memref<2x1x32xf32, #tpu.memory_space<vmem>>, vector<1x1x32xf32>
    %247 = vector.shape_cast %246 : vector<1x1x32xf32> to vector<1x32xf32>
    %248 = vector.broadcast %247 : vector<1x32xf32> to vector<32x32xf32>
    %249 = arith.addf %245, %248 : vector<32x32xf32>
    %c0_71 = arith.constant 0 : index
    %c0_72 = arith.constant 0 : index
    %c0_73 = arith.constant 0 : index
    %250 = vector.load %arg11[%c0_71, %c0_72, %c0_73] : memref<2x1x32xf32, #tpu.memory_space<vmem>>, vector<1x1x32xf32>
    %251 = vector.shape_cast %250 : vector<1x1x32xf32> to vector<1x32xf32>
    %c0_74 = arith.constant 0 : index
    %c0_75 = arith.constant 0 : index
    %c0_76 = arith.constant 0 : index
    %252 = vector.load %arg12[%c0_74, %c0_75, %c0_76] : memref<2x1x32xf32, #tpu.memory_space<vmem>>, vector<1x1x32xf32>
    %253 = vector.shape_cast %252 : vector<1x1x32xf32> to vector<1x32xf32>
    %cst_77 = arith.constant dense<0.000000e+00> : vector<32xf32>
    %254 = vector.multi_reduction <add>, %249, %cst_77 [1] : vector<32x32xf32> to vector<32xf32>
    %255 = vector.shape_cast %254 : vector<32xf32> to vector<32x1xf32>
    %cst_78 = arith.constant 3.200000e+01 : f32
    %256 = vector.broadcast %cst_78 : f32 to vector<32x1xf32>
    %257 = arith.divf %255, %256 : vector<32x1xf32>
    %258 = vector.broadcast %257 : vector<32x1xf32> to vector<32x32xf32>
    %259 = arith.subf %249, %258 : vector<32x32xf32>
    %260 = arith.mulf %259, %259 : vector<32x32xf32>
    %cst_79 = arith.constant dense<0.000000e+00> : vector<32xf32>
    %261 = vector.multi_reduction <add>, %260, %cst_79 [1] : vector<32x32xf32> to vector<32xf32>
    %262 = vector.shape_cast %261 : vector<32xf32> to vector<32x1xf32>
    %cst_80 = arith.constant 3.200000e+01 : f32
    %263 = vector.broadcast %cst_80 : f32 to vector<32x1xf32>
    %264 = arith.divf %262, %263 : vector<32x1xf32>
    %265 = vector.broadcast %257 : vector<32x1xf32> to vector<32x32xf32>
    %266 = arith.subf %249, %265 : vector<32x32xf32>
    %cst_81 = arith.constant 9.99999974E-6 : f32
    %267 = vector.broadcast %cst_81 : f32 to vector<32x1xf32>
    %268 = arith.addf %264, %267 : vector<32x1xf32>
    %269 = math.rsqrt %268 : vector<32x1xf32>
    %270 = vector.broadcast %269 : vector<32x1xf32> to vector<32x32xf32>
    %271 = arith.mulf %266, %270 : vector<32x32xf32>
    %272 = vector.broadcast %251 : vector<1x32xf32> to vector<32x32xf32>
    %273 = arith.mulf %271, %272 : vector<32x32xf32>
    %274 = vector.broadcast %253 : vector<1x32xf32> to vector<32x32xf32>
    %275 = arith.addf %273, %274 : vector<32x32xf32>
    %c0_82 = arith.constant 0 : index
    %c0_83 = arith.constant 0 : index
    %c0_84 = arith.constant 0 : index
    %276 = vector.load %arg13[%c0_82, %c0_83, %c0_84] : memref<2x32x64xf32, #tpu.memory_space<vmem>>, vector<1x32x64xf32>
    %277 = vector.shape_cast %276 : vector<1x32x64xf32> to vector<32x64xf32>
    %278 = arith.truncf %275 : vector<32x32xf32> to vector<32x32xbf16>
    %279 = arith.truncf %277 : vector<32x64xf32> to vector<32x64xbf16>
    %cst_85 = arith.constant dense<0.000000e+00> : vector<32x64xf32>
    %280 = tpu.matmul %278, %279, %cst_85 {dimension_numbers = #tpu.dot_dimension_numbers<[1], [0], [0], [1], [0, 0, 1, 1], [], []>} : vector<32x32xbf16>, vector<32x64xbf16>, vector<32x64xf32> -> vector<32x64xf32>
    %c0_86 = arith.constant 0 : index
    %c0_87 = arith.constant 0 : index
    %c0_88 = arith.constant 0 : index
    %281 = vector.load %arg14[%c0_86, %c0_87, %c0_88] : memref<2x1x64xf32, #tpu.memory_space<vmem>>, vector<1x1x64xf32>
    %282 = vector.shape_cast %281 : vector<1x1x64xf32> to vector<1x64xf32>
    %283 = vector.broadcast %282 : vector<1x64xf32> to vector<32x64xf32>
    %284 = arith.addf %280, %283 : vector<32x64xf32>
    %cst_89 = arith.constant 0.000000e+00 : f32
    %285 = vector.broadcast %cst_89 : f32 to vector<32x64xf32>
    %286 = arith.maximumf %284, %285 : vector<32x64xf32>
    %c0_90 = arith.constant 0 : index
    %c0_91 = arith.constant 0 : index
    %c0_92 = arith.constant 0 : index
    %287 = vector.load %arg15[%c0_90, %c0_91, %c0_92] : memref<2x64x32xf32, #tpu.memory_space<vmem>>, vector<1x64x32xf32>
    %288 = vector.shape_cast %287 : vector<1x64x32xf32> to vector<64x32xf32>
    %289 = arith.truncf %286 : vector<32x64xf32> to vector<32x64xbf16>
    %290 = arith.truncf %288 : vector<64x32xf32> to vector<64x32xbf16>
    %cst_93 = arith.constant dense<0.000000e+00> : vector<32x32xf32>
    %291 = tpu.matmul %289, %290, %cst_93 {dimension_numbers = #tpu.dot_dimension_numbers<[1], [0], [0], [1], [0, 0, 1, 1], [], []>} : vector<32x64xbf16>, vector<64x32xbf16>, vector<32x32xf32> -> vector<32x32xf32>
    %292 = arith.addf %249, %291 : vector<32x32xf32>
    %c0_94 = arith.constant 0 : index
    %c0_95 = arith.constant 0 : index
    %c0_96 = arith.constant 0 : index
    %293 = vector.load %arg16[%c0_94, %c0_95, %c0_96] : memref<2x1x32xf32, #tpu.memory_space<vmem>>, vector<1x1x32xf32>
    %294 = vector.shape_cast %293 : vector<1x1x32xf32> to vector<1x32xf32>
    %295 = vector.broadcast %294 : vector<1x32xf32> to vector<32x32xf32>
    %296 = arith.addf %292, %295 : vector<32x32xf32>
    %c1 = arith.constant 1 : index
    %c0_97 = arith.constant 0 : index
    %c0_98 = arith.constant 0 : index
    %297 = vector.load %arg5[%c1, %c0_97, %c0_98] : memref<2x1x32xf32, #tpu.memory_space<vmem>>, vector<1x1x32xf32>
    %298 = vector.shape_cast %297 : vector<1x1x32xf32> to vector<1x32xf32>
    %c1_99 = arith.constant 1 : index
    %c0_100 = arith.constant 0 : index
    %c0_101 = arith.constant 0 : index
    %299 = vector.load %arg6[%c1_99, %c0_100, %c0_101] : memref<2x1x32xf32, #tpu.memory_space<vmem>>, vector<1x1x32xf32>
    %300 = vector.shape_cast %299 : vector<1x1x32xf32> to vector<1x32xf32>
    %cst_102 = arith.constant dense<0.000000e+00> : vector<32xf32>
    %301 = vector.multi_reduction <add>, %296, %cst_102 [1] : vector<32x32xf32> to vector<32xf32>
    %302 = vector.shape_cast %301 : vector<32xf32> to vector<32x1xf32>
    %cst_103 = arith.constant 3.200000e+01 : f32
    %303 = vector.broadcast %cst_103 : f32 to vector<32x1xf32>
    %304 = arith.divf %302, %303 : vector<32x1xf32>
    %305 = vector.broadcast %304 : vector<32x1xf32> to vector<32x32xf32>
    %306 = arith.subf %296, %305 : vector<32x32xf32>
    %307 = arith.mulf %306, %306 : vector<32x32xf32>
    %cst_104 = arith.constant dense<0.000000e+00> : vector<32xf32>
    %308 = vector.multi_reduction <add>, %307, %cst_104 [1] : vector<32x32xf32> to vector<32xf32>
    %309 = vector.shape_cast %308 : vector<32xf32> to vector<32x1xf32>
    %cst_105 = arith.constant 3.200000e+01 : f32
    %310 = vector.broadcast %cst_105 : f32 to vector<32x1xf32>
    %311 = arith.divf %309, %310 : vector<32x1xf32>
    %312 = vector.broadcast %304 : vector<32x1xf32> to vector<32x32xf32>
    %313 = arith.subf %296, %312 : vector<32x32xf32>
    %cst_106 = arith.constant 9.99999974E-6 : f32
    %314 = vector.broadcast %cst_106 : f32 to vector<32x1xf32>
    %315 = arith.addf %311, %314 : vector<32x1xf32>
    %316 = math.rsqrt %315 : vector<32x1xf32>
    %317 = vector.broadcast %316 : vector<32x1xf32> to vector<32x32xf32>
    %318 = arith.mulf %313, %317 : vector<32x32xf32>
    %319 = vector.broadcast %298 : vector<1x32xf32> to vector<32x32xf32>
    %320 = arith.mulf %318, %319 : vector<32x32xf32>
    %321 = vector.broadcast %300 : vector<1x32xf32> to vector<32x32xf32>
    %322 = arith.addf %320, %321 : vector<32x32xf32>
    %c1_107 = arith.constant 1 : index
    %c0_108 = arith.constant 0 : index
    %c0_109 = arith.constant 0 : index
    %323 = vector.load %arg7[%c1_107, %c0_108, %c0_109] : memref<2x32x96xf32, #tpu.memory_space<vmem>>, vector<1x32x96xf32>
    %324 = vector.shape_cast %323 : vector<1x32x96xf32> to vector<32x96xf32>
    %325 = arith.truncf %322 : vector<32x32xf32> to vector<32x32xbf16>
    %326 = arith.truncf %324 : vector<32x96xf32> to vector<32x96xbf16>
    %cst_110 = arith.constant dense<0.000000e+00> : vector<32x96xf32>
    %327 = tpu.matmul %325, %326, %cst_110 {dimension_numbers = #tpu.dot_dimension_numbers<[1], [0], [0], [1], [0, 0, 1, 1], [], []>} : vector<32x32xbf16>, vector<32x96xbf16>, vector<32x96xf32> -> vector<32x96xf32>
    %c1_111 = arith.constant 1 : index
    %c0_112 = arith.constant 0 : index
    %c0_113 = arith.constant 0 : index
    %328 = vector.load %arg8[%c1_111, %c0_112, %c0_113] : memref<2x1x96xf32, #tpu.memory_space<vmem>>, vector<1x1x96xf32>
    %329 = vector.shape_cast %328 : vector<1x1x96xf32> to vector<1x96xf32>
    %330 = vector.broadcast %329 : vector<1x96xf32> to vector<32x96xf32>
    %331 = arith.addf %327, %330 : vector<32x96xf32>
    %332 = vector.extract_strided_slice %331 {offsets = [0, 0], sizes = [16, 8], strides = [1, 1]} : vector<32x96xf32> to vector<16x8xf32>
    %333 = vector.extract_strided_slice %331 {offsets = [0, 32], sizes = [16, 8], strides = [1, 1]} : vector<32x96xf32> to vector<16x8xf32>
    %334 = vector.extract_strided_slice %331 {offsets = [0, 64], sizes = [16, 8], strides = [1, 1]} : vector<32x96xf32> to vector<16x8xf32>
    %335 = arith.truncf %332 : vector<16x8xf32> to vector<16x8xbf16>
    %336 = arith.truncf %333 : vector<16x8xf32> to vector<16x8xbf16>
    %cst_114 = arith.constant dense<0.000000e+00> : vector<16x16xf32>
    %337 = tpu.matmul %335, %336, %cst_114 {dimension_numbers = #tpu.dot_dimension_numbers<[1], [1], [0], [0], [0, 0, 1, 0], [], []>} : vector<16x8xbf16>, vector<16x8xbf16>, vector<16x16xf32> -> vector<16x16xf32>
    %cst_115 = arith.constant dense<0xFF800000> : vector<16xf32>
    %338 = vector.multi_reduction <maximumf>, %337, %cst_115 [1] : vector<16x16xf32> to vector<16xf32>
    %339 = vector.shape_cast %338 : vector<16xf32> to vector<16x1xf32>
    %340 = vector.broadcast %339 : vector<16x1xf32> to vector<16x16xf32>
    %341 = arith.subf %337, %340 : vector<16x16xf32>
    %342 = math.exp %341 : vector<16x16xf32>
    %cst_116 = arith.constant dense<0.000000e+00> : vector<16xf32>
    %343 = vector.multi_reduction <add>, %342, %cst_116 [1] : vector<16x16xf32> to vector<16xf32>
    %344 = vector.shape_cast %343 : vector<16xf32> to vector<16x1xf32>
    %345 = tpu.reciprocal %344 {approx = true} : vector<16x1xf32> -> vector<16x1xf32>
    %346 = vector.broadcast %345 : vector<16x1xf32> to vector<16x16xf32>
    %347 = arith.mulf %342, %346 : vector<16x16xf32>
    %348 = arith.truncf %347 : vector<16x16xf32> to vector<16x16xbf16>
    %349 = arith.truncf %334 : vector<16x8xf32> to vector<16x8xbf16>
    %cst_117 = arith.constant dense<0.000000e+00> : vector<16x8xf32>
    %350 = tpu.matmul %348, %349, %cst_117 {dimension_numbers = #tpu.dot_dimension_numbers<[1], [0], [0], [1], [0, 0, 1, 1], [], []>} : vector<16x16xbf16>, vector<16x8xbf16>, vector<16x8xf32> -> vector<16x8xf32>
    %351 = vector.extract_strided_slice %331 {offsets = [0, 8], sizes = [16, 8], strides = [1, 1]} : vector<32x96xf32> to vector<16x8xf32>
    %352 = vector.extract_strided_slice %331 {offsets = [0, 40], sizes = [16, 8], strides = [1, 1]} : vector<32x96xf32> to vector<16x8xf32>
    %353 = vector.extract_strided_slice %331 {offsets = [0, 72], sizes = [16, 8], strides = [1, 1]} : vector<32x96xf32> to vector<16x8xf32>
    %354 = arith.truncf %351 : vector<16x8xf32> to vector<16x8xbf16>
    %355 = arith.truncf %352 : vector<16x8xf32> to vector<16x8xbf16>
    %cst_118 = arith.constant dense<0.000000e+00> : vector<16x16xf32>
    %356 = tpu.matmul %354, %355, %cst_118 {dimension_numbers = #tpu.dot_dimension_numbers<[1], [1], [0], [0], [0, 0, 1, 0], [], []>} : vector<16x8xbf16>, vector<16x8xbf16>, vector<16x16xf32> -> vector<16x16xf32>
    %cst_119 = arith.constant dense<0xFF800000> : vector<16xf32>
    %357 = vector.multi_reduction <maximumf>, %356, %cst_119 [1] : vector<16x16xf32> to vector<16xf32>
    %358 = vector.shape_cast %357 : vector<16xf32> to vector<16x1xf32>
    %359 = vector.broadcast %358 : vector<16x1xf32> to vector<16x16xf32>
    %360 = arith.subf %356, %359 : vector<16x16xf32>
    %361 = math.exp %360 : vector<16x16xf32>
    %cst_120 = arith.constant dense<0.000000e+00> : vector<16xf32>
    %362 = vector.multi_reduction <add>, %361, %cst_120 [1] : vector<16x16xf32> to vector<16xf32>
    %363 = vector.shape_cast %362 : vector<16xf32> to vector<16x1xf32>
    %364 = tpu.reciprocal %363 {approx = true} : vector<16x1xf32> -> vector<16x1xf32>
    %365 = vector.broadcast %364 : vector<16x1xf32> to vector<16x16xf32>
    %366 = arith.mulf %361, %365 : vector<16x16xf32>
    %367 = arith.truncf %366 : vector<16x16xf32> to vector<16x16xbf16>
    %368 = arith.truncf %353 : vector<16x8xf32> to vector<16x8xbf16>
    %cst_121 = arith.constant dense<0.000000e+00> : vector<16x8xf32>
    %369 = tpu.matmul %367, %368, %cst_121 {dimension_numbers = #tpu.dot_dimension_numbers<[1], [0], [0], [1], [0, 0, 1, 1], [], []>} : vector<16x16xbf16>, vector<16x8xbf16>, vector<16x8xf32> -> vector<16x8xf32>
    %370 = vector.extract_strided_slice %331 {offsets = [0, 16], sizes = [16, 8], strides = [1, 1]} : vector<32x96xf32> to vector<16x8xf32>
    %371 = vector.extract_strided_slice %331 {offsets = [0, 48], sizes = [16, 8], strides = [1, 1]} : vector<32x96xf32> to vector<16x8xf32>
    %372 = vector.extract_strided_slice %331 {offsets = [0, 80], sizes = [16, 8], strides = [1, 1]} : vector<32x96xf32> to vector<16x8xf32>
    %373 = arith.truncf %370 : vector<16x8xf32> to vector<16x8xbf16>
    %374 = arith.truncf %371 : vector<16x8xf32> to vector<16x8xbf16>
    %cst_122 = arith.constant dense<0.000000e+00> : vector<16x16xf32>
    %375 = tpu.matmul %373, %374, %cst_122 {dimension_numbers = #tpu.dot_dimension_numbers<[1], [1], [0], [0], [0, 0, 1, 0], [], []>} : vector<16x8xbf16>, vector<16x8xbf16>, vector<16x16xf32> -> vector<16x16xf32>
    %cst_123 = arith.constant dense<0xFF800000> : vector<16xf32>
    %376 = vector.multi_reduction <maximumf>, %375, %cst_123 [1] : vector<16x16xf32> to vector<16xf32>
    %377 = vector.shape_cast %376 : vector<16xf32> to vector<16x1xf32>
    %378 = vector.broadcast %377 : vector<16x1xf32> to vector<16x16xf32>
    %379 = arith.subf %375, %378 : vector<16x16xf32>
    %380 = math.exp %379 : vector<16x16xf32>
    %cst_124 = arith.constant dense<0.000000e+00> : vector<16xf32>
    %381 = vector.multi_reduction <add>, %380, %cst_124 [1] : vector<16x16xf32> to vector<16xf32>
    %382 = vector.shape_cast %381 : vector<16xf32> to vector<16x1xf32>
    %383 = tpu.reciprocal %382 {approx = true} : vector<16x1xf32> -> vector<16x1xf32>
    %384 = vector.broadcast %383 : vector<16x1xf32> to vector<16x16xf32>
    %385 = arith.mulf %380, %384 : vector<16x16xf32>
    %386 = arith.truncf %385 : vector<16x16xf32> to vector<16x16xbf16>
    %387 = arith.truncf %372 : vector<16x8xf32> to vector<16x8xbf16>
    %cst_125 = arith.constant dense<0.000000e+00> : vector<16x8xf32>
    %388 = tpu.matmul %386, %387, %cst_125 {dimension_numbers = #tpu.dot_dimension_numbers<[1], [0], [0], [1], [0, 0, 1, 1], [], []>} : vector<16x16xbf16>, vector<16x8xbf16>, vector<16x8xf32> -> vector<16x8xf32>
    %389 = vector.extract_strided_slice %331 {offsets = [0, 24], sizes = [16, 8], strides = [1, 1]} : vector<32x96xf32> to vector<16x8xf32>
    %390 = vector.extract_strided_slice %331 {offsets = [0, 56], sizes = [16, 8], strides = [1, 1]} : vector<32x96xf32> to vector<16x8xf32>
    %391 = vector.extract_strided_slice %331 {offsets = [0, 88], sizes = [16, 8], strides = [1, 1]} : vector<32x96xf32> to vector<16x8xf32>
    %392 = arith.truncf %389 : vector<16x8xf32> to vector<16x8xbf16>
    %393 = arith.truncf %390 : vector<16x8xf32> to vector<16x8xbf16>
    %cst_126 = arith.constant dense<0.000000e+00> : vector<16x16xf32>
    %394 = tpu.matmul %392, %393, %cst_126 {dimension_numbers = #tpu.dot_dimension_numbers<[1], [1], [0], [0], [0, 0, 1, 0], [], []>} : vector<16x8xbf16>, vector<16x8xbf16>, vector<16x16xf32> -> vector<16x16xf32>
    %cst_127 = arith.constant dense<0xFF800000> : vector<16xf32>
    %395 = vector.multi_reduction <maximumf>, %394, %cst_127 [1] : vector<16x16xf32> to vector<16xf32>
    %396 = vector.shape_cast %395 : vector<16xf32> to vector<16x1xf32>
    %397 = vector.broadcast %396 : vector<16x1xf32> to vector<16x16xf32>
    %398 = arith.subf %394, %397 : vector<16x16xf32>
    %399 = math.exp %398 : vector<16x16xf32>
    %cst_128 = arith.constant dense<0.000000e+00> : vector<16xf32>
    %400 = vector.multi_reduction <add>, %399, %cst_128 [1] : vector<16x16xf32> to vector<16xf32>
    %401 = vector.shape_cast %400 : vector<16xf32> to vector<16x1xf32>
    %402 = tpu.reciprocal %401 {approx = true} : vector<16x1xf32> -> vector<16x1xf32>
    %403 = vector.broadcast %402 : vector<16x1xf32> to vector<16x16xf32>
    %404 = arith.mulf %399, %403 : vector<16x16xf32>
    %405 = arith.truncf %404 : vector<16x16xf32> to vector<16x16xbf16>
    %406 = arith.truncf %391 : vector<16x8xf32> to vector<16x8xbf16>
    %cst_129 = arith.constant dense<0.000000e+00> : vector<16x8xf32>
    %407 = tpu.matmul %405, %406, %cst_129 {dimension_numbers = #tpu.dot_dimension_numbers<[1], [0], [0], [1], [0, 0, 1, 1], [], []>} : vector<16x16xbf16>, vector<16x8xbf16>, vector<16x8xf32> -> vector<16x8xf32>
    %408 = tpu.concatenate %350, %369, %388, %407 in 1 : vector<16x8xf32>, vector<16x8xf32>, vector<16x8xf32>, vector<16x8xf32> -> vector<16x32xf32>
    %409 = vector.extract_strided_slice %331 {offsets = [16, 0], sizes = [16, 8], strides = [1, 1]} : vector<32x96xf32> to vector<16x8xf32>
    %410 = vector.extract_strided_slice %331 {offsets = [16, 32], sizes = [16, 8], strides = [1, 1]} : vector<32x96xf32> to vector<16x8xf32>
    %411 = vector.extract_strided_slice %331 {offsets = [16, 64], sizes = [16, 8], strides = [1, 1]} : vector<32x96xf32> to vector<16x8xf32>
    %412 = arith.truncf %409 : vector<16x8xf32> to vector<16x8xbf16>
    %413 = arith.truncf %410 : vector<16x8xf32> to vector<16x8xbf16>
    %cst_130 = arith.constant dense<0.000000e+00> : vector<16x16xf32>
    %414 = tpu.matmul %412, %413, %cst_130 {dimension_numbers = #tpu.dot_dimension_numbers<[1], [1], [0], [0], [0, 0, 1, 0], [], []>} : vector<16x8xbf16>, vector<16x8xbf16>, vector<16x16xf32> -> vector<16x16xf32>
    %cst_131 = arith.constant dense<0xFF800000> : vector<16xf32>
    %415 = vector.multi_reduction <maximumf>, %414, %cst_131 [1] : vector<16x16xf32> to vector<16xf32>
    %416 = vector.shape_cast %415 : vector<16xf32> to vector<16x1xf32>
    %417 = vector.broadcast %416 : vector<16x1xf32> to vector<16x16xf32>
    %418 = arith.subf %414, %417 : vector<16x16xf32>
    %419 = math.exp %418 : vector<16x16xf32>
    %cst_132 = arith.constant dense<0.000000e+00> : vector<16xf32>
    %420 = vector.multi_reduction <add>, %419, %cst_132 [1] : vector<16x16xf32> to vector<16xf32>
    %421 = vector.shape_cast %420 : vector<16xf32> to vector<16x1xf32>
    %422 = tpu.reciprocal %421 {approx = true} : vector<16x1xf32> -> vector<16x1xf32>
    %423 = vector.broadcast %422 : vector<16x1xf32> to vector<16x16xf32>
    %424 = arith.mulf %419, %423 : vector<16x16xf32>
    %425 = arith.truncf %424 : vector<16x16xf32> to vector<16x16xbf16>
    %426 = arith.truncf %411 : vector<16x8xf32> to vector<16x8xbf16>
    %cst_133 = arith.constant dense<0.000000e+00> : vector<16x8xf32>
    %427 = tpu.matmul %425, %426, %cst_133 {dimension_numbers = #tpu.dot_dimension_numbers<[1], [0], [0], [1], [0, 0, 1, 1], [], []>} : vector<16x16xbf16>, vector<16x8xbf16>, vector<16x8xf32> -> vector<16x8xf32>
    %428 = vector.extract_strided_slice %331 {offsets = [16, 8], sizes = [16, 8], strides = [1, 1]} : vector<32x96xf32> to vector<16x8xf32>
    %429 = vector.extract_strided_slice %331 {offsets = [16, 40], sizes = [16, 8], strides = [1, 1]} : vector<32x96xf32> to vector<16x8xf32>
    %430 = vector.extract_strided_slice %331 {offsets = [16, 72], sizes = [16, 8], strides = [1, 1]} : vector<32x96xf32> to vector<16x8xf32>
    %431 = arith.truncf %428 : vector<16x8xf32> to vector<16x8xbf16>
    %432 = arith.truncf %429 : vector<16x8xf32> to vector<16x8xbf16>
    %cst_134 = arith.constant dense<0.000000e+00> : vector<16x16xf32>
    %433 = tpu.matmul %431, %432, %cst_134 {dimension_numbers = #tpu.dot_dimension_numbers<[1], [1], [0], [0], [0, 0, 1, 0], [], []>} : vector<16x8xbf16>, vector<16x8xbf16>, vector<16x16xf32> -> vector<16x16xf32>
    %cst_135 = arith.constant dense<0xFF800000> : vector<16xf32>
    %434 = vector.multi_reduction <maximumf>, %433, %cst_135 [1] : vector<16x16xf32> to vector<16xf32>
    %435 = vector.shape_cast %434 : vector<16xf32> to vector<16x1xf32>
    %436 = vector.broadcast %435 : vector<16x1xf32> to vector<16x16xf32>
    %437 = arith.subf %433, %436 : vector<16x16xf32>
    %438 = math.exp %437 : vector<16x16xf32>
    %cst_136 = arith.constant dense<0.000000e+00> : vector<16xf32>
    %439 = vector.multi_reduction <add>, %438, %cst_136 [1] : vector<16x16xf32> to vector<16xf32>
    %440 = vector.shape_cast %439 : vector<16xf32> to vector<16x1xf32>
    %441 = tpu.reciprocal %440 {approx = true} : vector<16x1xf32> -> vector<16x1xf32>
    %442 = vector.broadcast %441 : vector<16x1xf32> to vector<16x16xf32>
    %443 = arith.mulf %438, %442 : vector<16x16xf32>
    %444 = arith.truncf %443 : vector<16x16xf32> to vector<16x16xbf16>
    %445 = arith.truncf %430 : vector<16x8xf32> to vector<16x8xbf16>
    %cst_137 = arith.constant dense<0.000000e+00> : vector<16x8xf32>
    %446 = tpu.matmul %444, %445, %cst_137 {dimension_numbers = #tpu.dot_dimension_numbers<[1], [0], [0], [1], [0, 0, 1, 1], [], []>} : vector<16x16xbf16>, vector<16x8xbf16>, vector<16x8xf32> -> vector<16x8xf32>
    %447 = vector.extract_strided_slice %331 {offsets = [16, 16], sizes = [16, 8], strides = [1, 1]} : vector<32x96xf32> to vector<16x8xf32>
    %448 = vector.extract_strided_slice %331 {offsets = [16, 48], sizes = [16, 8], strides = [1, 1]} : vector<32x96xf32> to vector<16x8xf32>
    %449 = vector.extract_strided_slice %331 {offsets = [16, 80], sizes = [16, 8], strides = [1, 1]} : vector<32x96xf32> to vector<16x8xf32>
    %450 = arith.truncf %447 : vector<16x8xf32> to vector<16x8xbf16>
    %451 = arith.truncf %448 : vector<16x8xf32> to vector<16x8xbf16>
    %cst_138 = arith.constant dense<0.000000e+00> : vector<16x16xf32>
    %452 = tpu.matmul %450, %451, %cst_138 {dimension_numbers = #tpu.dot_dimension_numbers<[1], [1], [0], [0], [0, 0, 1, 0], [], []>} : vector<16x8xbf16>, vector<16x8xbf16>, vector<16x16xf32> -> vector<16x16xf32>
    %cst_139 = arith.constant dense<0xFF800000> : vector<16xf32>
    %453 = vector.multi_reduction <maximumf>, %452, %cst_139 [1] : vector<16x16xf32> to vector<16xf32>
    %454 = vector.shape_cast %453 : vector<16xf32> to vector<16x1xf32>
    %455 = vector.broadcast %454 : vector<16x1xf32> to vector<16x16xf32>
    %456 = arith.subf %452, %455 : vector<16x16xf32>
    %457 = math.exp %456 : vector<16x16xf32>
    %cst_140 = arith.constant dense<0.000000e+00> : vector<16xf32>
    %458 = vector.multi_reduction <add>, %457, %cst_140 [1] : vector<16x16xf32> to vector<16xf32>
    %459 = vector.shape_cast %458 : vector<16xf32> to vector<16x1xf32>
    %460 = tpu.reciprocal %459 {approx = true} : vector<16x1xf32> -> vector<16x1xf32>
    %461 = vector.broadcast %460 : vector<16x1xf32> to vector<16x16xf32>
    %462 = arith.mulf %457, %461 : vector<16x16xf32>
    %463 = arith.truncf %462 : vector<16x16xf32> to vector<16x16xbf16>
    %464 = arith.truncf %449 : vector<16x8xf32> to vector<16x8xbf16>
    %cst_141 = arith.constant dense<0.000000e+00> : vector<16x8xf32>
    %465 = tpu.matmul %463, %464, %cst_141 {dimension_numbers = #tpu.dot_dimension_numbers<[1], [0], [0], [1], [0, 0, 1, 1], [], []>} : vector<16x16xbf16>, vector<16x8xbf16>, vector<16x8xf32> -> vector<16x8xf32>
    %466 = vector.extract_strided_slice %331 {offsets = [16, 24], sizes = [16, 8], strides = [1, 1]} : vector<32x96xf32> to vector<16x8xf32>
    %467 = vector.extract_strided_slice %331 {offsets = [16, 56], sizes = [16, 8], strides = [1, 1]} : vector<32x96xf32> to vector<16x8xf32>
    %468 = vector.extract_strided_slice %331 {offsets = [16, 88], sizes = [16, 8], strides = [1, 1]} : vector<32x96xf32> to vector<16x8xf32>
    %469 = arith.truncf %466 : vector<16x8xf32> to vector<16x8xbf16>
    %470 = arith.truncf %467 : vector<16x8xf32> to vector<16x8xbf16>
    %cst_142 = arith.constant dense<0.000000e+00> : vector<16x16xf32>
    %471 = tpu.matmul %469, %470, %cst_142 {dimension_numbers = #tpu.dot_dimension_numbers<[1], [1], [0], [0], [0, 0, 1, 0], [], []>} : vector<16x8xbf16>, vector<16x8xbf16>, vector<16x16xf32> -> vector<16x16xf32>
    %cst_143 = arith.constant dense<0xFF800000> : vector<16xf32>
    %472 = vector.multi_reduction <maximumf>, %471, %cst_143 [1] : vector<16x16xf32> to vector<16xf32>
    %473 = vector.shape_cast %472 : vector<16xf32> to vector<16x1xf32>
    %474 = vector.broadcast %473 : vector<16x1xf32> to vector<16x16xf32>
    %475 = arith.subf %471, %474 : vector<16x16xf32>
    %476 = math.exp %475 : vector<16x16xf32>
    %cst_144 = arith.constant dense<0.000000e+00> : vector<16xf32>
    %477 = vector.multi_reduction <add>, %476, %cst_144 [1] : vector<16x16xf32> to vector<16xf32>
    %478 = vector.shape_cast %477 : vector<16xf32> to vector<16x1xf32>
    %479 = tpu.reciprocal %478 {approx = true} : vector<16x1xf32> -> vector<16x1xf32>
    %480 = vector.broadcast %479 : vector<16x1xf32> to vector<16x16xf32>
    %481 = arith.mulf %476, %480 : vector<16x16xf32>
    %482 = arith.truncf %481 : vector<16x16xf32> to vector<16x16xbf16>
    %483 = arith.truncf %468 : vector<16x8xf32> to vector<16x8xbf16>
    %cst_145 = arith.constant dense<0.000000e+00> : vector<16x8xf32>
    %484 = tpu.matmul %482, %483, %cst_145 {dimension_numbers = #tpu.dot_dimension_numbers<[1], [0], [0], [1], [0, 0, 1, 1], [], []>} : vector<16x16xbf16>, vector<16x8xbf16>, vector<16x8xf32> -> vector<16x8xf32>
    %485 = tpu.concatenate %427, %446, %465, %484 in 1 : vector<16x8xf32>, vector<16x8xf32>, vector<16x8xf32>, vector<16x8xf32> -> vector<16x32xf32>
    %486 = tpu.concatenate %408, %485 in 0 : vector<16x32xf32>, vector<16x32xf32> -> vector<32x32xf32>
    %c1_146 = arith.constant 1 : index
    %c0_147 = arith.constant 0 : index
    %c0_148 = arith.constant 0 : index
    %487 = vector.load %arg9[%c1_146, %c0_147, %c0_148] : memref<2x32x32xf32, #tpu.memory_space<vmem>>, vector<1x32x32xf32>
    %488 = vector.shape_cast %487 : vector<1x32x32xf32> to vector<32x32xf32>
    %489 = arith.truncf %486 : vector<32x32xf32> to vector<32x32xbf16>
    %490 = arith.truncf %488 : vector<32x32xf32> to vector<32x32xbf16>
    %cst_149 = arith.constant dense<0.000000e+00> : vector<32x32xf32>
    %491 = tpu.matmul %489, %490, %cst_149 {dimension_numbers = #tpu.dot_dimension_numbers<[1], [0], [0], [1], [0, 0, 1, 1], [], []>} : vector<32x32xbf16>, vector<32x32xbf16>, vector<32x32xf32> -> vector<32x32xf32>
    %492 = arith.addf %296, %491 : vector<32x32xf32>
    %c1_150 = arith.constant 1 : index
    %c0_151 = arith.constant 0 : index
    %c0_152 = arith.constant 0 : index
    %493 = vector.load %arg10[%c1_150, %c0_151, %c0_152] : memref<2x1x32xf32, #tpu.memory_space<vmem>>, vector<1x1x32xf32>
    %494 = vector.shape_cast %493 : vector<1x1x32xf32> to vector<1x32xf32>
    %495 = vector.broadcast %494 : vector<1x32xf32> to vector<32x32xf32>
    %496 = arith.addf %492, %495 : vector<32x32xf32>
    %c1_153 = arith.constant 1 : index
    %c0_154 = arith.constant 0 : index
    %c0_155 = arith.constant 0 : index
    %497 = vector.load %arg11[%c1_153, %c0_154, %c0_155] : memref<2x1x32xf32, #tpu.memory_space<vmem>>, vector<1x1x32xf32>
    %498 = vector.shape_cast %497 : vector<1x1x32xf32> to vector<1x32xf32>
    %c1_156 = arith.constant 1 : index
    %c0_157 = arith.constant 0 : index
    %c0_158 = arith.constant 0 : index
    %499 = vector.load %arg12[%c1_156, %c0_157, %c0_158] : memref<2x1x32xf32, #tpu.memory_space<vmem>>, vector<1x1x32xf32>
    %500 = vector.shape_cast %499 : vector<1x1x32xf32> to vector<1x32xf32>
    %cst_159 = arith.constant dense<0.000000e+00> : vector<32xf32>
    %501 = vector.multi_reduction <add>, %496, %cst_159 [1] : vector<32x32xf32> to vector<32xf32>
    %502 = vector.shape_cast %501 : vector<32xf32> to vector<32x1xf32>
    %cst_160 = arith.constant 3.200000e+01 : f32
    %503 = vector.broadcast %cst_160 : f32 to vector<32x1xf32>
    %504 = arith.divf %502, %503 : vector<32x1xf32>
    %505 = vector.broadcast %504 : vector<32x1xf32> to vector<32x32xf32>
    %506 = arith.subf %496, %505 : vector<32x32xf32>
    %507 = arith.mulf %506, %506 : vector<32x32xf32>
    %cst_161 = arith.constant dense<0.000000e+00> : vector<32xf32>
    %508 = vector.multi_reduction <add>, %507, %cst_161 [1] : vector<32x32xf32> to vector<32xf32>
    %509 = vector.shape_cast %508 : vector<32xf32> to vector<32x1xf32>
    %cst_162 = arith.constant 3.200000e+01 : f32
    %510 = vector.broadcast %cst_162 : f32 to vector<32x1xf32>
    %511 = arith.divf %509, %510 : vector<32x1xf32>
    %512 = vector.broadcast %504 : vector<32x1xf32> to vector<32x32xf32>
    %513 = arith.subf %496, %512 : vector<32x32xf32>
    %cst_163 = arith.constant 9.99999974E-6 : f32
    %514 = vector.broadcast %cst_163 : f32 to vector<32x1xf32>
    %515 = arith.addf %511, %514 : vector<32x1xf32>
    %516 = math.rsqrt %515 : vector<32x1xf32>
    %517 = vector.broadcast %516 : vector<32x1xf32> to vector<32x32xf32>
    %518 = arith.mulf %513, %517 : vector<32x32xf32>
    %519 = vector.broadcast %498 : vector<1x32xf32> to vector<32x32xf32>
    %520 = arith.mulf %518, %519 : vector<32x32xf32>
    %521 = vector.broadcast %500 : vector<1x32xf32> to vector<32x32xf32>
    %522 = arith.addf %520, %521 : vector<32x32xf32>
    %c1_164 = arith.constant 1 : index
    %c0_165 = arith.constant 0 : index
    %c0_166 = arith.constant 0 : index
    %523 = vector.load %arg13[%c1_164, %c0_165, %c0_166] : memref<2x32x64xf32, #tpu.memory_space<vmem>>, vector<1x32x64xf32>
    %524 = vector.shape_cast %523 : vector<1x32x64xf32> to vector<32x64xf32>
    %525 = arith.truncf %522 : vector<32x32xf32> to vector<32x32xbf16>
    %526 = arith.truncf %524 : vector<32x64xf32> to vector<32x64xbf16>
    %cst_167 = arith.constant dense<0.000000e+00> : vector<32x64xf32>
    %527 = tpu.matmul %525, %526, %cst_167 {dimension_numbers = #tpu.dot_dimension_numbers<[1], [0], [0], [1], [0, 0, 1, 1], [], []>} : vector<32x32xbf16>, vector<32x64xbf16>, vector<32x64xf32> -> vector<32x64xf32>
    %c1_168 = arith.constant 1 : index
    %c0_169 = arith.constant 0 : index
    %c0_170 = arith.constant 0 : index
    %528 = vector.load %arg14[%c1_168, %c0_169, %c0_170] : memref<2x1x64xf32, #tpu.memory_space<vmem>>, vector<1x1x64xf32>
    %529 = vector.shape_cast %528 : vector<1x1x64xf32> to vector<1x64xf32>
    %530 = vector.broadcast %529 : vector<1x64xf32> to vector<32x64xf32>
    %531 = arith.addf %527, %530 : vector<32x64xf32>
    %cst_171 = arith.constant 0.000000e+00 : f32
    %532 = vector.broadcast %cst_171 : f32 to vector<32x64xf32>
    %533 = arith.maximumf %531, %532 : vector<32x64xf32>
    %c1_172 = arith.constant 1 : index
    %c0_173 = arith.constant 0 : index
    %c0_174 = arith.constant 0 : index
    %534 = vector.load %arg15[%c1_172, %c0_173, %c0_174] : memref<2x64x32xf32, #tpu.memory_space<vmem>>, vector<1x64x32xf32>
    %535 = vector.shape_cast %534 : vector<1x64x32xf32> to vector<64x32xf32>
    %536 = arith.truncf %533 : vector<32x64xf32> to vector<32x64xbf16>
    %537 = arith.truncf %535 : vector<64x32xf32> to vector<64x32xbf16>
    %cst_175 = arith.constant dense<0.000000e+00> : vector<32x32xf32>
    %538 = tpu.matmul %536, %537, %cst_175 {dimension_numbers = #tpu.dot_dimension_numbers<[1], [0], [0], [1], [0, 0, 1, 1], [], []>} : vector<32x64xbf16>, vector<64x32xbf16>, vector<32x32xf32> -> vector<32x32xf32>
    %539 = arith.addf %496, %538 : vector<32x32xf32>
    %c1_176 = arith.constant 1 : index
    %c0_177 = arith.constant 0 : index
    %c0_178 = arith.constant 0 : index
    %540 = vector.load %arg16[%c1_176, %c0_177, %c0_178] : memref<2x1x32xf32, #tpu.memory_space<vmem>>, vector<1x1x32xf32>
    %541 = vector.shape_cast %540 : vector<1x1x32xf32> to vector<1x32xf32>
    %542 = vector.broadcast %541 : vector<1x32xf32> to vector<32x32xf32>
    %543 = arith.addf %539, %542 : vector<32x32xf32>
    %544 = vector.extract_strided_slice %543 {offsets = [0, 0], sizes = [16, 32], strides = [1, 1]} : vector<32x32xf32> to vector<16x32xf32>
    %cst_179 = arith.constant dense<0.000000e+00> : vector<32xf32>
    %545 = vector.multi_reduction <add>, %544, %cst_179 [0] : vector<16x32xf32> to vector<32xf32>
    %546 = vector.shape_cast %545 : vector<32xf32> to vector<1x32xf32>
    %cst_180 = arith.constant 1.600000e+01 : f32
    %547 = vector.broadcast %cst_180 : f32 to vector<1x32xf32>
    %548 = arith.divf %546, %547 : vector<1x32xf32>
    %549 = vector.extract_strided_slice %543 {offsets = [16, 0], sizes = [16, 32], strides = [1, 1]} : vector<32x32xf32> to vector<16x32xf32>
    %cst_181 = arith.constant dense<0.000000e+00> : vector<32xf32>
    %550 = vector.multi_reduction <add>, %549, %cst_181 [0] : vector<16x32xf32> to vector<32xf32>
    %551 = vector.shape_cast %550 : vector<32xf32> to vector<1x32xf32>
    %cst_182 = arith.constant 1.600000e+01 : f32
    %552 = vector.broadcast %cst_182 : f32 to vector<1x32xf32>
    %553 = arith.divf %551, %552 : vector<1x32xf32>
    %cst_183 = arith.constant 0.000000e+00 : f32
    %554 = vector.broadcast %cst_183 : f32 to vector<6x32xf32>
    %555 = tpu.concatenate %548, %553, %554 in 0 : vector<1x32xf32>, vector<1x32xf32>, vector<6x32xf32> -> vector<8x32xf32>
    %c0_184 = arith.constant 0 : index
    %c0_185 = arith.constant 0 : index
    %556 = vector.load %arg17[%c0_184, %c0_185] : memref<32x32xf32, #tpu.memory_space<vmem>>, vector<32x32xf32>
    %557 = arith.truncf %555 : vector<8x32xf32> to vector<8x32xbf16>
    %558 = arith.truncf %556 : vector<32x32xf32> to vector<32x32xbf16>
    %cst_186 = arith.constant dense<0.000000e+00> : vector<8x32xf32>
    %559 = tpu.matmul %557, %558, %cst_186 {dimension_numbers = #tpu.dot_dimension_numbers<[1], [0], [0], [1], [0, 0, 1, 1], [], []>} : vector<8x32xbf16>, vector<32x32xbf16>, vector<8x32xf32> -> vector<8x32xf32>
    %c0_187 = arith.constant 0 : index
    %c0_188 = arith.constant 0 : index
    %560 = vector.load %arg18[%c0_187, %c0_188] : memref<1x32xf32, #tpu.memory_space<vmem>>, vector<1x32xf32>
    %561 = vector.broadcast %560 : vector<1x32xf32> to vector<8x32xf32>
    %562 = arith.addf %559, %561 : vector<8x32xf32>
    %cst_189 = arith.constant 0.000000e+00 : f32
    %563 = vector.broadcast %cst_189 : f32 to vector<8x32xf32>
    %564 = arith.maximumf %562, %563 : vector<8x32xf32>
    %c0_190 = arith.constant 0 : index
    %c0_191 = arith.constant 0 : index
    %565 = vector.load %arg19[%c0_190, %c0_191] : memref<32x128xf32, #tpu.memory_space<vmem>>, vector<32x128xf32>
    %566 = arith.truncf %564 : vector<8x32xf32> to vector<8x32xbf16>
    %567 = arith.truncf %565 : vector<32x128xf32> to vector<32x128xbf16>
    %cst_192 = arith.constant dense<0.000000e+00> : vector<8x128xf32>
    %568 = tpu.matmul %566, %567, %cst_192 {dimension_numbers = #tpu.dot_dimension_numbers<[1], [0], [0], [1], [0, 0, 1, 1], [], []>} : vector<8x32xbf16>, vector<32x128xbf16>, vector<8x128xf32> -> vector<8x128xf32>
    %c0_193 = arith.constant 0 : index
    %c0_194 = arith.constant 0 : index
    %569 = vector.load %arg20[%c0_193, %c0_194] : memref<1x128xf32, #tpu.memory_space<vmem>>, vector<1x128xf32>
    %570 = vector.broadcast %569 : vector<1x128xf32> to vector<8x128xf32>
    %571 = arith.addf %568, %570 : vector<8x128xf32>
    %c0_195 = arith.constant 0 : index
    %c0_196 = arith.constant 0 : index
    %572 = vector.load %arg21[%c0_195, %c0_196] : memref<8x128xf32, #tpu.memory_space<vmem>>, vector<8x128xf32>
    tpu.vector_store %arg21[%c0_195, %c0_196], %571 {strides = array<i32>} : memref<8x128xf32, #tpu.memory_space<vmem>>, vector<8x128xf32>,
    return
  }
  func.func @transform_0(%arg0: i32) -> (i32, i32) {
    %c0_i32 = arith.constant 0 : i32
    %c0_i32_0 = arith.constant 0 : i32
    return %arg0, %c0_i32 : i32, i32
  }
  func.func @transform_1(%arg0: i32) -> (i32, i32) {
    %c0_i32 = arith.constant 0 : i32
    %c0_i32_0 = arith.constant 0 : i32
    %c0_i32_1 = arith.constant 0 : i32
    return %c0_i32, %c0_i32_0 : i32, i32
  }
  func.func @transform_2(%arg0: i32) -> (i32, i32) {
    %c0_i32 = arith.constant 0 : i32
    %c0_i32_0 = arith.constant 0 : i32
    %c0_i32_1 = arith.constant 0 : i32
    return %c0_i32, %c0_i32_0 : i32, i32
  }
  func.func @transform_3(%arg0: i32) -> (i32, i32) {
    %c0_i32 = arith.constant 0 : i32
    %c0_i32_0 = arith.constant 0 : i32
    %c0_i32_1 = arith.constant 0 : i32
    return %c0_i32, %c0_i32_0 : i32, i32
  }
  func.func @transform_4(%arg0: i32) -> (i32, i32, i32) {
    %c0_i32 = arith.constant 0 : i32
    %c0_i32_0 = arith.constant 0 : i32
    %c0_i32_1 = arith.constant 0 : i32
    %c0_i32_2 = arith.constant 0 : i32
    return %c0_i32, %c0_i32_0, %c0_i32_1 : i32, i32, i32
  }
  func.func @transform_5(%arg0: i32) -> (i32, i32, i32) {
    %c0_i32 = arith.constant 0 : i32
    %c0_i32_0 = arith.constant 0 : i32
    %c0_i32_1 = arith.constant 0 : i32
    %c0_i32_2 = arith.constant 0 : i32
    return %c0_i32, %c0_i32_0, %c0_i32_1 : i32, i32, i32
  }
  func.func @transform_6(%arg0: i32) -> (i32, i32, i32) {
    %c0_i32 = arith.constant 0 : i32
    %c0_i32_0 = arith.constant 0 : i32
    %c0_i32_1 = arith.constant 0 : i32
    %c0_i32_2 = arith.constant 0 : i32
    return %c0_i32, %c0_i32_0, %c0_i32_1 : i32, i32, i32
  }
  func.func @transform_7(%arg0: i32) -> (i32, i32, i32) {
    %c0_i32 = arith.constant 0 : i32
    %c0_i32_0 = arith.constant 0 : i32
    %c0_i32_1 = arith.constant 0 : i32
    %c0_i32_2 = arith.constant 0 : i32
    return %c0_i32, %c0_i32_0, %c0_i32_1 : i32, i32, i32
  }
  func.func @transform_8(%arg0: i32) -> (i32, i32, i32) {
    %c0_i32 = arith.constant 0 : i32
    %c0_i32_0 = arith.constant 0 : i32
    %c0_i32_1 = arith.constant 0 : i32
    %c0_i32_2 = arith.constant 0 : i32
    return %c0_i32, %c0_i32_0, %c0_i32_1 : i32, i32, i32
  }
  func.func @transform_9(%arg0: i32) -> (i32, i32, i32) {
    %c0_i32 = arith.constant 0 : i32
    %c0_i32_0 = arith.constant 0 : i32
    %c0_i32_1 = arith.constant 0 : i32
    %c0_i32_2 = arith.constant 0 : i32
    return %c0_i32, %c0_i32_0, %c0_i32_1 : i32, i32, i32
  }
  func.func @transform_10(%arg0: i32) -> (i32, i32, i32) {
    %c0_i32 = arith.constant 0 : i32
    %c0_i32_0 = arith.constant 0 : i32
    %c0_i32_1 = arith.constant 0 : i32
    %c0_i32_2 = arith.constant 0 : i32
    return %c0_i32, %c0_i32_0, %c0_i32_1 : i32, i32, i32
  }
  func.func @transform_11(%arg0: i32) -> (i32, i32, i32) {
    %c0_i32 = arith.constant 0 : i32
    %c0_i32_0 = arith.constant 0 : i32
    %c0_i32_1 = arith.constant 0 : i32
    %c0_i32_2 = arith.constant 0 : i32
    return %c0_i32, %c0_i32_0, %c0_i32_1 : i32, i32, i32
  }
  func.func @transform_12(%arg0: i32) -> (i32, i32, i32) {
    %c0_i32 = arith.constant 0 : i32
    %c0_i32_0 = arith.constant 0 : i32
    %c0_i32_1 = arith.constant 0 : i32
    %c0_i32_2 = arith.constant 0 : i32
    return %c0_i32, %c0_i32_0, %c0_i32_1 : i32, i32, i32
  }
  func.func @transform_13(%arg0: i32) -> (i32, i32, i32) {
    %c0_i32 = arith.constant 0 : i32
    %c0_i32_0 = arith.constant 0 : i32
    %c0_i32_1 = arith.constant 0 : i32
    %c0_i32_2 = arith.constant 0 : i32
    return %c0_i32, %c0_i32_0, %c0_i32_1 : i32, i32, i32
  }
  func.func @transform_14(%arg0: i32) -> (i32, i32, i32) {
    %c0_i32 = arith.constant 0 : i32
    %c0_i32_0 = arith.constant 0 : i32
    %c0_i32_1 = arith.constant 0 : i32
    %c0_i32_2 = arith.constant 0 : i32
    return %c0_i32, %c0_i32_0, %c0_i32_1 : i32, i32, i32
  }
  func.func @transform_15(%arg0: i32) -> (i32, i32, i32) {
    %c0_i32 = arith.constant 0 : i32
    %c0_i32_0 = arith.constant 0 : i32
    %c0_i32_1 = arith.constant 0 : i32
    %c0_i32_2 = arith.constant 0 : i32
    return %c0_i32, %c0_i32_0, %c0_i32_1 : i32, i32, i32
  }
  func.func @transform_16(%arg0: i32) -> (i32, i32) {
    %c0_i32 = arith.constant 0 : i32
    %c0_i32_0 = arith.constant 0 : i32
    %c0_i32_1 = arith.constant 0 : i32
    return %c0_i32, %c0_i32_0 : i32, i32
  }
  func.func @transform_17(%arg0: i32) -> (i32, i32) {
    %c0_i32 = arith.constant 0 : i32
    %c0_i32_0 = arith.constant 0 : i32
    %c0_i32_1 = arith.constant 0 : i32
    return %c0_i32, %c0_i32_0 : i32, i32
  }
  func.func @transform_18(%arg0: i32) -> (i32, i32) {
    %c0_i32 = arith.constant 0 : i32
    %c0_i32_0 = arith.constant 0 : i32
    %c0_i32_1 = arith.constant 0 : i32
    return %c0_i32, %c0_i32_0 : i32, i32
  }
  func.func @transform_19(%arg0: i32) -> (i32, i32) {
    %c0_i32 = arith.constant 0 : i32
    %c0_i32_0 = arith.constant 0 : i32
    %c0_i32_1 = arith.constant 0 : i32
    return %c0_i32, %c0_i32_0 : i32, i32
  }
  func.func @transform_20(%arg0: i32) -> (i32, i32) {
    %c0_i32 = arith.constant 0 : i32
    %c0_i32_0 = arith.constant 0 : i32
    return %arg0, %c0_i32 : i32, i32
  }
}

</mosaic_0001>

<llo_original>
// kernel: transformer_model_forward.1
$region0: #{transformer_model_forward.1}
  #allocation0 [shape = 'u32[]', space=smem, size = 0x4, offset = 0x4, fixed_abs, tag = 'smem constant byte address 0x4 - core index']
  #allocation1 [shape = 'u32[144,128]{1,0:T(1,128)}', space=vmem, size = 0x12000, scoped, tag = 'internal scratch']
  %s0 = inlined_call_operand.vmem [shape: f32[64,8], index: 0, kind: input, shape index: {}]
  %s1 = inlined_call_operand.vmem [shape: f32[32,32], index: 1, kind: input, shape index: {}]
  %s2 = inlined_call_operand.vmem [shape: f32[24,32], index: 2, kind: input, shape index: {}]
  %s3 = inlined_call_operand.vmem [shape: f32[1,32], index: 3, kind: input, shape index: {}]
  %s4 = inlined_call_operand.vmem [shape: f32[2,1,32], index: 4, kind: input, shape index: {}]
  %s5 = inlined_call_operand.vmem [shape: f32[2,1,32], index: 5, kind: input, shape index: {}]
  %s6 = inlined_call_operand.vmem [shape: f32[2,32,96], index: 6, kind: input, shape index: {}]
  %s7 = inlined_call_operand.vmem [shape: f32[2,1,96], index: 7, kind: input, shape index: {}]
  %s8 = inlined_call_operand.vmem [shape: f32[2,32,32], index: 8, kind: input, shape index: {}]
  %s9 = inlined_call_operand.vmem [shape: f32[2,1,32], index: 9, kind: input, shape index: {}]
  %s10 = inlined_call_operand.vmem [shape: f32[2,1,32], index: 10, kind: input, shape index: {}]
  %s11 = inlined_call_operand.vmem [shape: f32[2,1,32], index: 11, kind: input, shape index: {}]
  %s12 = inlined_call_operand.vmem [shape: f32[2,32,64], index: 12, kind: input, shape index: {}]
  %s13 = inlined_call_operand.vmem [shape: f32[2,1,64], index: 13, kind: input, shape index: {}]
  %s14 = inlined_call_operand.vmem [shape: f32[2,64,32], index: 14, kind: input, shape index: {}]
  %s15 = inlined_call_operand.vmem [shape: f32[2,1,32], index: 15, kind: input, shape index: {}]
  %s16 = inlined_call_operand.vmem [shape: f32[32,32], index: 16, kind: input, shape index: {}]
  %s17 = inlined_call_operand.vmem [shape: f32[1,32], index: 17, kind: input, shape index: {}]
  %s18 = inlined_call_operand.vmem [shape: f32[32,128], index: 18, kind: input, shape index: {}]
  %s19 = inlined_call_operand.vmem [shape: f32[1,128], index: 19, kind: input, shape index: {}]
  %s20 = inlined_call_operand.vmem [shape: f32[16,128], index: 20, kind: output, shape index: {}]
  %s21 = sld [smem:[#allocation0]]
  $region113: #{transformer_model_forward.1} parent=0
    _
  %s23 = ssub.s32 1, %s21
  %s24 = scalar_select 0, %s23, %s21
  loop: start=0, step=1, limit=4
  $region2: #{transformer_model_forward.1} parent=0 // loop_pre_header
    _
  $region3: #{transformer_model_forward.1} parent=0 // loop_header
    %s26 = sphi 0, %s30
    %p27 = scmp.ge.s32.totalorder %s26, 4
    %s36 = sphi 0, %s38
    %s39 = sphi 0, %s36
    %s40 = sphi 0, %s39
    %s56 = sphi 0, %s40
    %s60 = sphi 0, %s60
    %s62 = sphi 0, %s60
    %s63 = sphi 0, %s62
    %s77 = sphi 0, %s63
    %s81 = sphi 0, %s81
    %s83 = sphi 0, %s81
    %s84 = sphi 0, %s83
    %s98 = sphi 0, %s84
    %s102 = sphi 0, %s102
    %s104 = sphi 0, %s102
    %s105 = sphi 0, %s104
    %s119 = sphi 0, %s105
    %s123 = sphi 0, %s123
    %s125 = sphi 0, %s123
    %s126 = sphi 0, %s125
    %s140 = sphi 0, %s126
    %s144 = sphi 0, %s144
    %s146 = sphi 0, %s144
    %s147 = sphi 0, %s146
    %s161 = sphi 0, %s147
    %s165 = sphi 0, %s165
    %s167 = sphi 0, %s165
    %s168 = sphi 0, %s167
    %s182 = sphi 0, %s168
    %s186 = sphi 0, %s186
    %s188 = sphi 0, %s186
    %s189 = sphi 0, %s188
    %s203 = sphi 0, %s189
    %s207 = sphi 0, %s207
    %s209 = sphi 0, %s207
    %s210 = sphi 0, %s209
    %s224 = sphi 0, %s210
    %s228 = sphi 0, %s228
    %s230 = sphi 0, %s228
    %s231 = sphi 0, %s230
    %s245 = sphi 0, %s231
    %s249 = sphi 0, %s249
    %s251 = sphi 0, %s249
    %s252 = sphi 0, %s251
    %s266 = sphi 0, %s252
    %s270 = sphi 0, %s270
    %s272 = sphi 0, %s270
    %s273 = sphi 0, %s272
    %s287 = sphi 0, %s273
    %s291 = sphi 0, %s291
    %s293 = sphi 0, %s291
    %s294 = sphi 0, %s293
    %s308 = sphi 0, %s294
    %s312 = sphi 0, %s312
    %s314 = sphi 0, %s312
    %s315 = sphi 0, %s314
    %s329 = sphi 0, %s315
    %s333 = sphi 0, %s333
    %s335 = sphi 0, %s333
    %s336 = sphi 0, %s335
    %s350 = sphi 0, %s336
    %s354 = sphi 0, %s354
    %s356 = sphi 0, %s354
    %s357 = sphi 0, %s356
    %s371 = sphi 0, %s357
    %s375 = sphi 0, %s375
    %s377 = sphi 0, %s375
    %s378 = sphi 0, %s377
    %s392 = sphi 0, %s378
    %s396 = sphi 0, %s396
    %s398 = sphi 0, %s396
    %s399 = sphi 0, %s398
    %s413 = sphi 0, %s399
    %s417 = sphi 0, %s417
    %s419 = sphi 0, %s417
    %s420 = sphi 0, %s419
    %s434 = sphi 0, %s420
    %s438 = sphi 0, %s438
    %s440 = sphi 0, %s438
    %s441 = sphi 0, %s440
    %s455 = sphi 0, %s441
    %s461 = sphi 0, %s463
    %s464 = sphi 0, %s461
    %s465 = sphi 0, %s464
    %s481 = sphi 0, %s465
  $region4: #{transformer_model_forward.1} parent=0 // loop_header_branch
    %29 = sbr.rel (%p27) target = $region8
  $region5: #{transformer_model_forward.1} parent=0 // loop_body
    %s31 = ssub.s32 %s26, 1
    %s32 = ssub.s32 %s26, 2
    %s33 = sadd.s32 %s26, 1
    %s34 = ssub.s32 %s26, %s33
    %p35 = scmp.eq.s32.totalorder %s34, 0
    %s37 = sadd.s32 %s36, 1
    %s38 = scalar_select %p35, %s36, %s37
    %p41 = pneg %p35
    %p42 = scmp.eq.s32.totalorder %s26, 1
    %p43 = por %p41, %p42
    %p44 = scmp.ne.s32.totalorder %s36, %s39
    %p45 = scmp.eq.s32.totalorder %s26, 0
    %p46 = por %p44, %p45
    %p47 = scmp.ne.s32.totalorder %s36, %s39
    %p48 = scmp.eq.s32.totalorder %s31, 1
    %p49 = por %p47, %p48
    %p50 = scmp.ne.s32.totalorder %s39, %s40
    %p51 = scmp.eq.s32.totalorder %s31, 0
    %p52 = por %p50, %p51
    %p53 = scmp.ne.s32.totalorder %s39, %s40
    %p54 = scmp.eq.s32.totalorder %s32, 1
    %p55 = por %p53, %p54
    %p57 = scmp.ne.s32.totalorder %s40, %s56
    %p58 = scmp.eq.s32.totalorder %s32, 0
    %p59 = por %p57, %p58
    %s61 = sadd.s32 %s60, 1
    %p64 = scmp.eq.s32.totalorder %s26, 1
    %p65 = scmp.ne.s32.totalorder %s60, %s62
    %p66 = scmp.eq.s32.totalorder %s26, 0
    %p67 = por %p65, %p66
    %p68 = scmp.ne.s32.totalorder %s60, %s62
    %p69 = scmp.eq.s32.totalorder %s31, 1
    %p70 = por %p68, %p69
    %p71 = scmp.ne.s32.totalorder %s62, %s63
    %p72 = scmp.eq.s32.totalorder %s31, 0
    %p73 = por %p71, %p72
    %p74 = scmp.ne.s32.totalorder %s62, %s63
    %p75 = scmp.eq.s32.totalorder %s32, 1
    %p76 = por %p74, %p75
    %p78 = scmp.ne.s32.totalorder %s63, %s77
    %p79 = scmp.eq.s32.totalorder %s32, 0
    %p80 = por %p78, %p79
    %s82 = sadd.s32 %s81, 1
    %p85 = scmp.eq.s32.totalorder %s26, 1
    %p86 = scmp.ne.s32.totalorder %s81, %s83
    %p87 = scmp.eq.s32.totalorder %s26, 0
    %p88 = por %p86, %p87
    %p89 = scmp.ne.s32.totalorder %s81, %s83
    %p90 = scmp.eq.s32.totalorder %s31, 1
    %p91 = por %p89, %p90
    %p92 = scmp.ne.s32.totalorder %s83, %s84
    %p93 = scmp.eq.s32.totalorder %s31, 0
    %p94 = por %p92, %p93
    %p95 = scmp.ne.s32.totalorder %s83, %s84
    %p96 = scmp.eq.s32.totalorder %s32, 1
    %p97 = por %p95, %p96
    %p99 = scmp.ne.s32.totalorder %s84, %s98
    %p100 = scmp.eq.s32.totalorder %s32, 0
    %p101 = por %p99, %p100
    %s103 = sadd.s32 %s102, 1
    %p106 = scmp.eq.s32.totalorder %s26, 1
    %p107 = scmp.ne.s32.totalorder %s102, %s104
    %p108 = scmp.eq.s32.totalorder %s26, 0
    %p109 = por %p107, %p108
    %p110 = scmp.ne.s32.totalorder %s102, %s104
    %p111 = scmp.eq.s32.totalorder %s31, 1
    %p112 = por %p110, %p111
    %p113 = scmp.ne.s32.totalorder %s104, %s105
    %p114 = scmp.eq.s32.totalorder %s31, 0
    %p115 = por %p113, %p114
    %p116 = scmp.ne.s32.totalorder %s104, %s105
    %p117 = scmp.eq.s32.totalorder %s32, 1
    %p118 = por %p116, %p117
    %p120 = scmp.ne.s32.totalorder %s105, %s119
    %p121 = scmp.eq.s32.totalorder %s32, 0
    %p122 = por %p120, %p121
    %s124 = sadd.s32 %s123, 1
    %p127 = scmp.eq.s32.totalorder %s26, 1
    %p128 = scmp.ne.s32.totalorder %s123, %s125
    %p129 = scmp.eq.s32.totalorder %s26, 0
    %p130 = por %p128, %p129
    %p131 = scmp.ne.s32.totalorder %s123, %s125
    %p132 = scmp.eq.s32.totalorder %s31, 1
    %p133 = por %p131, %p132
    %p134 = scmp.ne.s32.totalorder %s125, %s126
    %p135 = scmp.eq.s32.totalorder %s31, 0
    %p136 = por %p134, %p135
    %p137 = scmp.ne.s32.totalorder %s125, %s126
    %p138 = scmp.eq.s32.totalorder %s32, 1
    %p139 = por %p137, %p138
    %p141 = scmp.ne.s32.totalorder %s126, %s140
    %p142 = scmp.eq.s32.totalorder %s32, 0
    %p143 = por %p141, %p142
    %s145 = sadd.s32 %s144, 1
    %p148 = scmp.eq.s32.totalorder %s26, 1
    %p149 = scmp.ne.s32.totalorder %s144, %s146
    %p150 = scmp.eq.s32.totalorder %s26, 0
    %p151 = por %p149, %p150
    %p152 = scmp.ne.s32.totalorder %s144, %s146
    %p153 = scmp.eq.s32.totalorder %s31, 1
    %p154 = por %p152, %p153
    %p155 = scmp.ne.s32.totalorder %s146, %s147
    %p156 = scmp.eq.s32.totalorder %s31, 0
    %p157 = por %p155, %p156
    %p158 = scmp.ne.s32.totalorder %s146, %s147
    %p159 = scmp.eq.s32.totalorder %s32, 1
    %p160 = por %p158, %p159
    %p162 = scmp.ne.s32.totalorder %s147, %s161
    %p163 = scmp.eq.s32.totalorder %s32, 0
    %p164 = por %p162, %p163
    %s166 = sadd.s32 %s165, 1
    %p169 = scmp.eq.s32.totalorder %s26, 1
    %p170 = scmp.ne.s32.totalorder %s165, %s167
    %p171 = scmp.eq.s32.totalorder %s26, 0
    %p172 = por %p170, %p171
    %p173 = scmp.ne.s32.totalorder %s165, %s167
    %p174 = scmp.eq.s32.totalorder %s31, 1
    %p175 = por %p173, %p174
    %p176 = scmp.ne.s32.totalorder %s167, %s168
    %p177 = scmp.eq.s32.totalorder %s31, 0
    %p178 = por %p176, %p177
    %p179 = scmp.ne.s32.totalorder %s167, %s168
    %p180 = scmp.eq.s32.totalorder %s32, 1
    %p181 = por %p179, %p180
    %p183 = scmp.ne.s32.totalorder %s168, %s182
    %p184 = scmp.eq.s32.totalorder %s32, 0
    %p185 = por %p183, %p184
    %s187 = sadd.s32 %s186, 1
    %p190 = scmp.eq.s32.totalorder %s26, 1
    %p191 = scmp.ne.s32.totalorder %s186, %s188
    %p192 = scmp.eq.s32.totalorder %s26, 0
    %p193 = por %p191, %p192
    %p194 = scmp.ne.s32.totalorder %s186, %s188
    %p195 = scmp.eq.s32.totalorder %s31, 1
    %p196 = por %p194, %p195
    %p197 = scmp.ne.s32.totalorder %s188, %s189
    %p198 = scmp.eq.s32.totalorder %s31, 0
    %p199 = por %p197, %p198
    %p200 = scmp.ne.s32.totalorder %s188, %s189
    %p201 = scmp.eq.s32.totalorder %s32, 1
    %p202 = por %p200, %p201
    %p204 = scmp.ne.s32.totalorder %s189, %s203
    %p205 = scmp.eq.s32.totalorder %s32, 0
    %p206 = por %p204, %p205
    %s208 = sadd.s32 %s207, 1
    %p211 = scmp.eq.s32.totalorder %s26, 1
    %p212 = scmp.ne.s32.totalorder %s207, %s209
    %p213 = scmp.eq.s32.totalorder %s26, 0
    %p214 = por %p212, %p213
    %p215 = scmp.ne.s32.totalorder %s207, %s209
    %p216 = scmp.eq.s32.totalorder %s31, 1
    %p217 = por %p215, %p216
    %p218 = scmp.ne.s32.totalorder %s209, %s210
    %p219 = scmp.eq.s32.totalorder %s31, 0
    %p220 = por %p218, %p219
    %p221 = scmp.ne.s32.totalorder %s209, %s210
    %p222 = scmp.eq.s32.totalorder %s32, 1
    %p223 = por %p221, %p222
    %p225 = scmp.ne.s32.totalorder %s210, %s224
    %p226 = scmp.eq.s32.totalorder %s32, 0
    %p227 = por %p225, %p226
    %s229 = sadd.s32 %s228, 1
    %p232 = scmp.eq.s32.totalorder %s26, 1
    %p233 = scmp.ne.s32.totalorder %s228, %s230
    %p234 = scmp.eq.s32.totalorder %s26, 0
    %p235 = por %p233, %p234
    %p236 = scmp.ne.s32.totalorder %s228, %s230
    %p237 = scmp.eq.s32.totalorder %s31, 1
    %p238 = por %p236, %p237
    %p239 = scmp.ne.s32.totalorder %s230, %s231
    %p240 = scmp.eq.s32.totalorder %s31, 0
    %p241 = por %p239, %p240
    %p242 = scmp.ne.s32.totalorder %s230, %s231
    %p243 = scmp.eq.s32.totalorder %s32, 1
    %p244 = por %p242, %p243
    %p246 = scmp.ne.s32.totalorder %s231, %s245
    %p247 = scmp.eq.s32.totalorder %s32, 0
    %p248 = por %p246, %p247
    %s250 = sadd.s32 %s249, 1
    %p253 = scmp.eq.s32.totalorder %s26, 1
    %p254 = scmp.ne.s32.totalorder %s249, %s251
    %p255 = scmp.eq.s32.totalorder %s26, 0
    %p256 = por %p254, %p255
    %p257 = scmp.ne.s32.totalorder %s249, %s251
    %p258 = scmp.eq.s32.totalorder %s31, 1
    %p259 = por %p257, %p258
    %p260 = scmp.ne.s32.totalorder %s251, %s252
    %p261 = scmp.eq.s32.totalorder %s31, 0
    %p262 = por %p260, %p261
    %p263 = scmp.ne.s32.totalorder %s251, %s252
    %p264 = scmp.eq.s32.totalorder %s32, 1
    %p265 = por %p263, %p264
    %p267 = scmp.ne.s32.totalorder %s252, %s266
    %p268 = scmp.eq.s32.totalorder %s32, 0
    %p269 = por %p267, %p268
    %s271 = sadd.s32 %s270, 1
    %p274 = scmp.eq.s32.totalorder %s26, 1
    %p275 = scmp.ne.s32.totalorder %s270, %s272
    %p276 = scmp.eq.s32.totalorder %s26, 0
    %p277 = por %p275, %p276
    %p278 = scmp.ne.s32.totalorder %s270, %s272
    %p279 = scmp.eq.s32.totalorder %s31, 1
    %p280 = por %p278, %p279
    %p281 = scmp.ne.s32.totalorder %s272, %s273
    %p282 = scmp.eq.s32.totalorder %s31, 0
    %p283 = por %p281, %p282
    %p284 = scmp.ne.s32.totalorder %s272, %s273
    %p285 = scmp.eq.s32.totalorder %s32, 1
    %p286 = por %p284, %p285
    %p288 = scmp.ne.s32.totalorder %s273, %s287
    %p289 = scmp.eq.s32.totalorder %s32, 0
    %p290 = por %p288, %p289
    %s292 = sadd.s32 %s291, 1
    %p295 = scmp.eq.s32.totalorder %s26, 1
    %p296 = scmp.ne.s32.totalorder %s291, %s293
    %p297 = scmp.eq.s32.totalorder %s26, 0
    %p298 = por %p296, %p297
    %p299 = scmp.ne.s32.totalorder %s291, %s293
    %p300 = scmp.eq.s32.totalorder %s31, 1
    %p301 = por %p299, %p300
    %p302 = scmp.ne.s32.totalorder %s293, %s294
    %p303 = scmp.eq.s32.totalorder %s31, 0
    %p304 = por %p302, %p303
    %p305 = scmp.ne.s32.totalorder %s293, %s294
    %p306 = scmp.eq.s32.totalorder %s32, 1
    %p307 = por %p305, %p306
    %p309 = scmp.ne.s32.totalorder %s294, %s308
    %p310 = scmp.eq.s32.totalorder %s32, 0
    %p311 = por %p309, %p310
    %s313 = sadd.s32 %s312, 1
    %p316 = scmp.eq.s32.totalorder %s26, 1
    %p317 = scmp.ne.s32.totalorder %s312, %s314
    %p318 = scmp.eq.s32.totalorder %s26, 0
    %p319 = por %p317, %p318
    %p320 = scmp.ne.s32.totalorder %s312, %s314
    %p321 = scmp.eq.s32.totalorder %s31, 1
    %p322 = por %p320, %p321
    %p323 = scmp.ne.s32.totalorder %s314, %s315
    %p324 = scmp.eq.s32.totalorder %s31, 0
    %p325 = por %p323, %p324
    %p326 = scmp.ne.s32.totalorder %s314, %s315
    %p327 = scmp.eq.s32.totalorder %s32, 1
    %p328 = por %p326, %p327
    %p330 = scmp.ne.s32.totalorder %s315, %s329
    %p331 = scmp.eq.s32.totalorder %s32, 0
    %p332 = por %p330, %p331
    %s334 = sadd.s32 %s333, 1
    %p337 = scmp.eq.s32.totalorder %s26, 1
    %p338 = scmp.ne.s32.totalorder %s333, %s335
    %p339 = scmp.eq.s32.totalorder %s26, 0
    %p340 = por %p338, %p339
    %p341 = scmp.ne.s32.totalorder %s333, %s335
    %p342 = scmp.eq.s32.totalorder %s31, 1
    %p343 = por %p341, %p342
    %p344 = scmp.ne.s32.totalorder %s335, %s336
    %p345 = scmp.eq.s32.totalorder %s31, 0
    %p346 = por %p344, %p345
    %p347 = scmp.ne.s32.totalorder %s335, %s336
    %p348 = scmp.eq.s32.totalorder %s32, 1
    %p349 = por %p347, %p348
    %p351 = scmp.ne.s32.totalorder %s336, %s350
    %p352 = scmp.eq.s32.totalorder %s32, 0
    %p353 = por %p351, %p352
    %s355 = sadd.s32 %s354, 1
    %p358 = scmp.eq.s32.totalorder %s26, 1
    %p359 = scmp.ne.s32.totalorder %s354, %s356
    %p360 = scmp.eq.s32.totalorder %s26, 0
    %p361 = por %p359, %p360
    %p362 = scmp.ne.s32.totalorder %s354, %s356
    %p363 = scmp.eq.s32.totalorder %s31, 1
    %p364 = por %p362, %p363
    %p365 = scmp.ne.s32.totalorder %s356, %s357
    %p366 = scmp.eq.s32.totalorder %s31, 0
    %p367 = por %p365, %p366
    %p368 = scmp.ne.s32.totalorder %s356, %s357
    %p369 = scmp.eq.s32.totalorder %s32, 1
    %p370 = por %p368, %p369
    %p372 = scmp.ne.s32.totalorder %s357, %s371
    %p373 = scmp.eq.s32.totalorder %s32, 0
    %p374 = por %p372, %p373
    %s376 = sadd.s32 %s375, 1
    %p379 = scmp.eq.s32.totalorder %s26, 1
    %p380 = scmp.ne.s32.totalorder %s375, %s377
    %p381 = scmp.eq.s32.totalorder %s26, 0
    %p382 = por %p380, %p381
    %p383 = scmp.ne.s32.totalorder %s375, %s377
    %p384 = scmp.eq.s32.totalorder %s31, 1
    %p385 = por %p383, %p384
    %p386 = scmp.ne.s32.totalorder %s377, %s378
    %p387 = scmp.eq.s32.totalorder %s31, 0
    %p388 = por %p386, %p387
    %p389 = scmp.ne.s32.totalorder %s377, %s378
    %p390 = scmp.eq.s32.totalorder %s32, 1
    %p391 = por %p389, %p390
    %p393 = scmp.ne.s32.totalorder %s378, %s392
    %p394 = scmp.eq.s32.totalorder %s32, 0
    %p395 = por %p393, %p394
    %s397 = sadd.s32 %s396, 1
    %p400 = scmp.eq.s32.totalorder %s26, 1
    %p401 = scmp.ne.s32.totalorder %s396, %s398
    %p402 = scmp.eq.s32.totalorder %s26, 0
    %p403 = por %p401, %p402
    %p404 = scmp.ne.s32.totalorder %s396, %s398
    %p405 = scmp.eq.s32.totalorder %s31, 1
    %p406 = por %p404, %p405
    %p407 = scmp.ne.s32.totalorder %s398, %s399
    %p408 = scmp.eq.s32.totalorder %s31, 0
    %p409 = por %p407, %p408
    %p410 = scmp.ne.s32.totalorder %s398, %s399
    %p411 = scmp.eq.s32.totalorder %s32, 1
    %p412 = por %p410, %p411
    %p414 = scmp.ne.s32.totalorder %s399, %s413
    %p415 = scmp.eq.s32.totalorder %s32, 0
    %p416 = por %p414, %p415
    %s418 = sadd.s32 %s417, 1
    %p421 = scmp.eq.s32.totalorder %s26, 1
    %p422 = scmp.ne.s32.totalorder %s417, %s419
    %p423 = scmp.eq.s32.totalorder %s26, 0
    %p424 = por %p422, %p423
    %p425 = scmp.ne.s32.totalorder %s417, %s419
    %p426 = scmp.eq.s32.totalorder %s31, 1
    %p427 = por %p425, %p426
    %p428 = scmp.ne.s32.totalorder %s419, %s420
    %p429 = scmp.eq.s32.totalorder %s31, 0
    %p430 = por %p428, %p429
    %p431 = scmp.ne.s32.totalorder %s419, %s420
    %p432 = scmp.eq.s32.totalorder %s32, 1
    %p433 = por %p431, %p432
    %p435 = scmp.ne.s32.totalorder %s420, %s434
    %p436 = scmp.eq.s32.totalorder %s32, 0
    %p437 = por %p435, %p436
    %s439 = sadd.s32 %s438, 1
    %p442 = scmp.eq.s32.totalorder %s26, 1
    %p443 = scmp.ne.s32.totalorder %s438, %s440
    %p444 = scmp.eq.s32.totalorder %s26, 0
    %p445 = por %p443, %p444
    %p446 = scmp.ne.s32.totalorder %s438, %s440
    %p447 = scmp.eq.s32.totalorder %s31, 1
    %p448 = por %p446, %p447
    %p449 = scmp.ne.s32.totalorder %s440, %s441
    %p450 = scmp.eq.s32.totalorder %s31, 0
    %p451 = por %p449, %p450
    %p452 = scmp.ne.s32.totalorder %s440, %s441
    %p453 = scmp.eq.s32.totalorder %s32, 1
    %p454 = por %p452, %p453
    %p456 = scmp.ne.s32.totalorder %s441, %s455
    %p457 = scmp.eq.s32.totalorder %s32, 0
    %p458 = por %p456, %p457
    %s459 = ssub.s32 %s26, %s33
    %p460 = scmp.eq.s32.totalorder %s459, 0
    %s462 = sadd.s32 %s461, 1
    %s463 = scalar_select %p460, %s461, %s462
    %p466 = pneg %p460
    %p467 = scmp.eq.s32.totalorder %s26, 1
    %p468 = por %p466, %p467
    %p469 = scmp.ne.s32.totalorder %s461, %s464
    %p470 = scmp.eq.s32.totalorder %s26, 0
    %p471 = por %p469, %p470
    %p472 = scmp.ne.s32.totalorder %s461, %s464
    %p473 = scmp.eq.s32.totalorder %s31, 1
    %p474 = por %p472, %p473
    %p475 = scmp.ne.s32.totalorder %s464, %s465
    %p476 = scmp.eq.s32.totalorder %s31, 0
    %p477 = por %p475, %p476
    %p478 = scmp.ne.s32.totalorder %s464, %s465
    %p479 = scmp.eq.s32.totalorder %s32, 1
    %p480 = por %p478, %p479
    %p482 = scmp.ne.s32.totalorder %s465, %s481
    %p483 = scmp.eq.s32.totalorder %s32, 0
    %p484 = por %p482, %p483
    %p485 = scmp.le.s32.totalorder 1, %s26
    %p486 = scmp.lt.s32.totalorder %s26, 3
    %p487 = pnand %p485, %p486
    %p488 = pneg %p487
    // Predicated region
    $region9: #{transformer_model_forward.1} parent=5 // pred_check
      _
    $region10: #{transformer_model_forward.1} parent=5 // pred_check_branch
      %490 = sbr.rel (%p487) target = $region12
    $region11: #{transformer_model_forward.1} parent=5 // pred_region
      %s491 = ssub.s32 %s26, 1
      // Predicated region
      $region13: #{transformer_model_forward.1} parent=11 // pred_check
        %p492 = pneg %p73
      $region14: #{transformer_model_forward.1} parent=11 // pred_check_branch
        %494 = sbr.rel (%p492) target = $region16
      $region15: #{transformer_model_forward.1} parent=11 // pred_region
        _
      $region16: #{transformer_model_forward.1} parent=11 // pred_fallthru
        _
      // Predicated region
      $region17: #{transformer_model_forward.1} parent=11 // pred_check
        %p495 = pneg %p94
      $region18: #{transformer_model_forward.1} parent=11 // pred_check_branch
        %497 = sbr.rel (%p495) target = $region20
      $region19: #{transformer_model_forward.1} parent=11 // pred_region
        _
      $region20: #{transformer_model_forward.1} parent=11 // pred_fallthru
        _
      // Predicated region
      $region21: #{transformer_model_forward.1} parent=11 // pred_check
        %p498 = pneg %p115
      $region22: #{transformer_model_forward.1} parent=11 // pred_check_branch
        %500 = sbr.rel (%p498) target = $region24
      $region23: #{transformer_model_forward.1} parent=11 // pred_region
        _
      $region24: #{transformer_model_forward.1} parent=11 // pred_fallthru
        _
      // Predicated region
      $region25: #{transformer_model_forward.1} parent=11 // pred_check
        %p501 = pneg %p136
      $region26: #{transformer_model_forward.1} parent=11 // pred_check_branch
        %503 = sbr.rel (%p501) target = $region28
      $region27: #{transformer_model_forward.1} parent=11 // pred_region
        _
      $region28: #{transformer_model_forward.1} parent=11 // pred_fallthru
        _
      // Predicated region
      $region29: #{transformer_model_forward.1} parent=11 // pred_check
        %p504 = pneg %p157
      $region30: #{transformer_model_forward.1} parent=11 // pred_check_branch
        %506 = sbr.rel (%p504) target = $region32
      $region31: #{transformer_model_forward.1} parent=11 // pred_region
        _
      $region32: #{transformer_model_forward.1} parent=11 // pred_fallthru
        _
      // Predicated region
      $region33: #{transformer_model_forward.1} parent=11 // pred_check
        %p507 = pneg %p178
      $region34: #{transformer_model_forward.1} parent=11 // pred_check_branch
        %509 = sbr.rel (%p507) target = $region36
      $region35: #{transformer_model_forward.1} parent=11 // pred_region
        _
      $region36: #{transformer_model_forward.1} parent=11 // pred_fallthru
        _
      // Predicated region
      $region37: #{transformer_model_forward.1} parent=11 // pred_check
        %p510 = pneg %p199
      $region38: #{transformer_model_forward.1} parent=11 // pred_check_branch
        %512 = sbr.rel (%p510) target = $region40
      $region39: #{transformer_model_forward.1} parent=11 // pred_region
        _
      $region40: #{transformer_model_forward.1} parent=11 // pred_fallthru
        _
      // Predicated region
      $region41: #{transformer_model_forward.1} parent=11 // pred_check
        %p513 = pneg %p220
      $region42: #{transformer_model_forward.1} parent=11 // pred_check_branch
        %515 = sbr.rel (%p513) target = $region44
      $region43: #{transformer_model_forward.1} parent=11 // pred_region
        _
      $region44: #{transformer_model_forward.1} parent=11 // pred_fallthru
        _
      // Predicated region
      $region45: #{transformer_model_forward.1} parent=11 // pred_check
        %p516 = pneg %p241
      $region46: #{transformer_model_forward.1} parent=11 // pred_check_branch
        %518 = sbr.rel (%p516) target = $region48
      $region47: #{transformer_model_forward.1} parent=11 // pred_region
        _
      $region48: #{transformer_model_forward.1} parent=11 // pred_fallthru
        _
      // Predicated region
      $region49: #{transformer_model_forward.1} parent=11 // pred_check
        %p519 = pneg %p262
      $region50: #{transformer_model_forward.1} parent=11 // pred_check_branch
        %521 = sbr.rel (%p519) target = $region52
      $region51: #{transformer_model_forward.1} parent=11 // pred_region
        _
      $region52: #{transformer_model_forward.1} parent=11 // pred_fallthru
        _
      // Predicated region
      $region53: #{transformer_model_forward.1} parent=11 // pred_check
        %p522 = pneg %p283
      $region54: #{transformer_model_forward.1} parent=11 // pred_check_branch
        %524 = sbr.rel (%p522) target = $region56
      $region55: #{transformer_model_forward.1} parent=11 // pred_region
        _
      $region56: #{transformer_model_forward.1} parent=11 // pred_fallthru
        _
      // Predicated region
      $region57: #{transformer_model_forward.1} parent=11 // pred_check
        %p525 = pneg %p304
      $region58: #{transformer_model_forward.1} parent=11 // pred_check_branch
        %527 = sbr.rel (%p525) target = $region60
      $region59: #{transformer_model_forward.1} parent=11 // pred_region
        _
      $region60: #{transformer_model_forward.1} parent=11 // pred_fallthru
        _
      // Predicated region
      $region61: #{transformer_model_forward.1} parent=11 // pred_check
        %p528 = pneg %p325
      $region62: #{transformer_model_forward.1} parent=11 // pred_check_branch
        %530 = sbr.rel (%p528) target = $region64
      $region63: #{transformer_model_forward.1} parent=11 // pred_region
        _
      $region64: #{transformer_model_forward.1} parent=11 // pred_fallthru
        _
      // Predicated region
      $region65: #{transformer_model_forward.1} parent=11 // pred_check
        %p531 = pneg %p346
      $region66: #{transformer_model_forward.1} parent=11 // pred_check_branch
        %533 = sbr.rel (%p531) target = $region68
      $region67: #{transformer_model_forward.1} parent=11 // pred_region
        _
      $region68: #{transformer_model_forward.1} parent=11 // pred_fallthru
        _
      // Predicated region
      $region69: #{transformer_model_forward.1} parent=11 // pred_check
        %p534 = pneg %p367
      $region70: #{transformer_model_forward.1} parent=11 // pred_check_branch
        %536 = sbr.rel (%p534) target = $region72
      $region71: #{transformer_model_forward.1} parent=11 // pred_region
        _
      $region72: #{transformer_model_forward.1} parent=11 // pred_fallthru
        _
      // Predicated region
      $region73: #{transformer_model_forward.1} parent=11 // pred_check
        %p537 = pneg %p388
      $region74: #{transformer_model_forward.1} parent=11 // pred_check_branch
        %539 = sbr.rel (%p537) target = $region76
      $region75: #{transformer_model_forward.1} parent=11 // pred_region
        _
      $region76: #{transformer_model_forward.1} parent=11 // pred_fallthru
        _
      // Predicated region
      $region77: #{transformer_model_forward.1} parent=11 // pred_check
        %p540 = pneg %p409
      $region78: #{transformer_model_forward.1} parent=11 // pred_check_branch
        %542 = sbr.rel (%p540) target = $region80
      $region79: #{transformer_model_forward.1} parent=11 // pred_region
        _
      $region80: #{transformer_model_forward.1} parent=11 // pred_fallthru
        _
      // Predicated region
      $region81: #{transformer_model_forward.1} parent=11 // pred_check
        %p543 = pneg %p430
      $region82: #{transformer_model_forward.1} parent=11 // pred_check_branch
        %545 = sbr.rel (%p543) target = $region84
      $region83: #{transformer_model_forward.1} parent=11 // pred_region
        _
      $region84: #{transformer_model_forward.1} parent=11 // pred_fallthru
        _
      // Predicated region
      $region85: #{transformer_model_forward.1} parent=11 // pred_check
        %p546 = pneg %p451
      $region86: #{transformer_model_forward.1} parent=11 // pred_check_branch
        %548 = sbr.rel (%p546) target = $region88
      $region87: #{transformer_model_forward.1} parent=11 // pred_region
        _
      $region88: #{transformer_model_forward.1} parent=11 // pred_fallthru
        _
    $region12: #{transformer_model_forward.1} parent=5 // pred_fallthru
      _
    %p549 = scmp.lt.s32.totalorder %s26, 2
    // Predicated region
    $region89: #{transformer_model_forward.1} parent=5 // pred_check
      %p550 = pneg %p549
    $region90: #{transformer_model_forward.1} parent=5 // pred_check_branch
      %552 = sbr.rel (%p550) target = $region92
    $region91: #{transformer_model_forward.1} parent=5 // pred_region
      // Predicated region
      $region93: #{transformer_model_forward.1} parent=91 // pred_check
        %p553 = pneg %p46
      $region94: #{transformer_model_forward.1} parent=91 // pred_check_branch
        %555 = sbr.rel (%p553) target = $region96
      $region95: #{transformer_model_forward.1} parent=91 // pred_region
        %s556 = smul.u32 4, %s26
        %p557 = scmp.lt.s32.totalorder %s556, 7
        %s558 = scalar_select %p557, %s556, 7
        %s559 = smul.addr %s558, 8
        %s560 = scalar_lea.vmem %s0, %s559
        %s561 = smul.u32 4, %s26
      $region96: #{transformer_model_forward.1} parent=91 // pred_fallthru
        _
    $region92: #{transformer_model_forward.1} parent=5 // pred_fallthru
      _
    %p562 = scmp.le.s32.totalorder 1, %s26
    %p563 = scmp.lt.s32.totalorder %s26, 3
    %p564 = pnand %p562, %p563
    %p565 = pneg %p564
    // Predicated region
    $region97: #{transformer_model_forward.1} parent=5 // pred_check
      _
    $region98: #{transformer_model_forward.1} parent=5 // pred_check_branch
      %567 = sbr.rel (%p564) target = $region100
    $region99: #{transformer_model_forward.1} parent=5 // pred_region
      %s568 = ssub.s32 %s26, 1
      %s569 = smul.u32 4, %s31
      %p570 = scmp.lt.s32.totalorder %s569, 7
      %s571 = scalar_select %p570, %s569, 7
      %s572 = smul.addr %s571, 8
      %s573 = scalar_lea.vmem %s0, %s572
      %p574 = pneg %p52
      %p575 = pneg %p49
      %p576 = pneg %p73
      %p577 = pneg %p70
      %p578 = pneg %p94
      %p579 = pneg %p91
      %p580 = pneg %p115
      %p581 = pneg %p112
      %p582 = pneg %p136
      %p583 = pneg %p133
      %p584 = pneg %p157
      %p585 = pneg %p154
      %p586 = pneg %p178
      %p587 = pneg %p175
      %p588 = pneg %p199
      %p589 = pneg %p196
      %p590 = pneg %p220
      %p591 = pneg %p217
      %p592 = pneg %p241
      %p593 = pneg %p238
      %p594 = pneg %p262
      %p595 = pneg %p259
      %p596 = pneg %p283
      %p597 = pneg %p280
      %p598 = pneg %p304
      %p599 = pneg %p301
      %p600 = pneg %p325
      %p601 = pneg %p322
      %p602 = pneg %p346
      %p603 = pneg %p343
      %p604 = pneg %p367
      %p605 = pneg %p364
      %p606 = pneg %p388
      %p607 = pneg %p385
      %p608 = pneg %p409
      %p609 = pneg %p406
      %p610 = pneg %p430
      %p611 = pneg %p427
      %p612 = pneg %p451
      %p613 = pneg %p448
      %p614 = pneg %p477
      %p615 = pneg %p474
      %p616 = scmp.lt.s32.totalorder %s31, 1
      %s617 = scalar_select %p616, %s31, 1
      %s618 = smul.addr %s617, 8
      %s619 = scalar_lea.vmem %s20, %s618
      %s620 = smul.u32 4, %s31
      %p621 = scmp.lt.s32.totalorder %s620, 7
      %s622 = scalar_select %p621, %s620, 7
      %s623 = smul.addr %s622, 8
      %s624 = scalar_lea.vmem %s0, %s623
      %s625 = smul.u32 4, %s31
      %p626 = scmp.lt.s32.totalorder %s31, 1
      %s627 = scalar_select %p626, %s31, 1
      %s628 = smul.addr %s627, 8
      %s629 = scalar_lea.vmem %s20, %s628
      %v631 = vld [vmem:[%s624] sm:$0xff]
      %v632 = vld [vmem:[%s624 + $0x8] sm:$0xff]
      %v633 = vld [vmem:[%s624 + $0x10] sm:$0xff]
      %v634 = vld [vmem:[%s624 + $0x18] sm:$0xff]
      %v635 = vlaneseq
      %v636 = vshrl.u32 %v635, 7
      %v637 = vadd.s32 %v636, 8
      %v638 = vadd.s32 %v636, 16
      %v639 = vadd.s32 %v636, 24
      %v640 = vrot.slane %v631, 7
      %v641 = vrot.slane %v632, 7
      %v642 = vrot.slane %v633, 7
      %v643 = vrot.slane %v634, 7
      %vm644 = vcmp.lt.s32.totalorder %v636, 1
      %v645 = vsel %vm644, %v642, %v643
      %v646 = vsel %vm644, %v641, %v642
      %v647 = vsel %vm644, %v640, %v641
      %v648 = vsel %vm644, %v643, %v640
      %vm649 = vcmp.lt.s32.totalorder %v636, 0
      %vm650 = vcmp.lt.s32.totalorder %v637, 0
      %vm651 = vcmp.lt.s32.totalorder %v638, 0
      %vm652 = vcmp.lt.s32.totalorder %v639, 0
      %vm653 = vcmp.ge.s32.totalorder %v636, 1
      %vm654 = vcmp.ge.s32.totalorder %v637, 1
      %vm655 = vcmp.ge.s32.totalorder %v638, 1
      %vm656 = vcmp.ge.s32.totalorder %v639, 1
      %vm657 = vmor %vm649, %vm653
      %vm658 = vmor %vm650, %vm654
      %vm659 = vmor %vm651, %vm655
      %vm660 = vmor %vm652, %vm656
      %vm661 = vcmp.lt.s32.totalorder %v636, 16
      %vm662 = vcmp.lt.s32.totalorder %v637, 16
      %vm663 = vcmp.lt.s32.totalorder %v638, 16
      %vm664 = vcmp.lt.s32.totalorder %v639, 16
      %vm665 = vcmp.ge.s32.totalorder %v636, 17
      %vm666 = vcmp.ge.s32.totalorder %v637, 17
      %vm667 = vcmp.ge.s32.totalorder %v638, 17
      %vm668 = vcmp.ge.s32.totalorder %v639, 17
      %vm669 = vmor %vm661, %vm665
      %vm670 = vmor %vm662, %vm666
      %vm671 = vmor %vm663, %vm667
      %vm672 = vmor %vm664, %vm668
      %vm673 = vmand %vm657, %vm669
      %vm674 = vmand %vm658, %vm670
      %vm675 = vmand %vm659, %vm671
      %vm676 = vmand %vm660, %vm672
      %v677 = vsel %vm673, 1, 0
      %v678 = vsel %vm674, 1, 0
      %v679 = vsel %vm675, 1, 0
      %v680 = vsel %vm676, 1, 0
      %vm681 = vcmp.eq.s32.totalorder %v677, 1
      %vm682 = vcmp.eq.s32.totalorder %v678, 1
      %vm683 = vcmp.eq.s32.totalorder %v679, 1
      %vm684 = vcmp.eq.s32.totalorder %v680, 1
      %v685 = vsel %vm681, %v648, 0.0
      %v686 = vsel %vm682, %v647, 0.0
      %v687 = vsel %vm683, %v646, 0.0
      %v688 = vsel %vm684, %v645, 0.0
      %v689 = vrot.slane %v631, 1
      %v690 = vrot.slane %v632, 1
      %v691 = vrot.slane %v633, 1
      %v692 = vrot.slane %v634, 1
      %vm693 = vcmp.lt.s32.totalorder %v636, 7
      %v694 = vsel %vm693, %v691, %v692
      %v695 = vsel %vm693, %v690, %v691
      %v696 = vsel %vm693, %v689, %v690
      %v697 = vsel %vm693, %v692, %v689
      %vm698 = vcmp.lt.s32.totalorder %v636, 15
      %vm699 = vcmp.lt.s32.totalorder %v637, 15
      %vm700 = vcmp.lt.s32.totalorder %v638, 15
      %vm701 = vcmp.lt.s32.totalorder %v639, 15
      %vm702 = vcmp.ge.s32.totalorder %v636, 16
      %vm703 = vcmp.ge.s32.totalorder %v637, 16
      %vm704 = vcmp.ge.s32.totalorder %v638, 16
      %vm705 = vcmp.ge.s32.totalorder %v639, 16
      %vm706 = vmor %vm698, %vm702
      %vm707 = vmor %vm699, %vm703
      %vm708 = vmor %vm700, %vm704
      %vm709 = vmor %vm701, %vm705
      %vm710 = vcmp.lt.s32.totalorder %v636, 31
      %vm711 = vcmp.lt.s32.totalorder %v637, 31
      %vm712 = vcmp.lt.s32.totalorder %v638, 31
      %vm713 = vcmp.lt.s32.totalorder %v639, 31
      %vm714 = vcmp.ge.s32.totalorder %v636, 32
      %vm715 = vcmp.ge.s32.totalorder %v637, 32
      %vm716 = vcmp.ge.s32.totalorder %v638, 32
      %vm717 = vcmp.ge.s32.totalorder %v639, 32
      %vm718 = vmor %vm710, %vm714
      %vm719 = vmor %vm711, %vm715
      %vm720 = vmor %vm712, %vm716
      %vm721 = vmor %vm713, %vm717
      %vm722 = vmand %vm706, %vm718
      %vm723 = vmand %vm707, %vm719
      %vm724 = vmand %vm708, %vm720
      %vm725 = vmand %vm709, %vm721
      %v726 = vsel %vm722, 1, 0
      %v727 = vsel %vm723, 1, 0
      %v728 = vsel %vm724, 1, 0
      %v729 = vsel %vm725, 1, 0
      %vm730 = vcmp.eq.s32.totalorder %v726, 1
      %vm731 = vcmp.eq.s32.totalorder %v727, 1
      %vm732 = vcmp.eq.s32.totalorder %v728, 1
      %vm733 = vcmp.eq.s32.totalorder %v729, 1
      %v734 = vsel %vm730, %v696, 0.0
      %v735 = vsel %vm731, %v695, 0.0
      %v736 = vsel %vm732, %v694, 0.0
      %v737 = vsel %vm733, %v697, 0.0
      %742 = vrot.lane.b32.xlu0 %v631, 8
      %v743 = vpop.permute.xlu0 %742
      %744 = vrot.lane.b32.xlu0 %v632, 8
      %v745 = vpop.permute.xlu0 %744
      %746 = vrot.lane.b32.xlu0 %v633, 8
      %v747 = vpop.permute.xlu0 %746
      %748 = vrot.lane.b32.xlu0 %v634, 8
      %v749 = vpop.permute.xlu0 %748
      %758 = vrot.lane.b32.xlu0 %v734, 16
      %v759 = vpop.permute.xlu0 %758
      %760 = vrot.lane.b32.xlu0 %v735, 16
      %v761 = vpop.permute.xlu0 %760
      %762 = vrot.lane.b32.xlu0 %v736, 16
      %v763 = vpop.permute.xlu0 %762
      %764 = vrot.lane.b32.xlu0 %v737, 16
      %v765 = vpop.permute.xlu0 %764
      %vm770 = vcmask 64512
      %v771 = vsel %vm770, %v685, %v743
      %v772 = vsel %vm770, %v686, %v745
      %v773 = vsel %vm770, %v687, %v747
      %v774 = vsel %vm770, %v688, %v749
      %vm775 = vcmask 130048
      %v776 = vsel %vm775, %v771, %v759
      %v777 = vsel %vm775, %v772, %v761
      %v778 = vsel %vm775, %v773, %v763
      %v779 = vsel %vm775, %v774, %v765
      %v780 = vld [vmem:[%s2] sm:$0xff]
      %v781 = vld [vmem:[%s2 + $0x8] sm:$0xff]
      %v782 = vld [vmem:[%s2 + $0x10] sm:$0xff]
      %v783 = vpack.c.bf16 %v777, %v776
      %v784 = vpack.c.bf16 %v779, %v778
      %v785 = vpack.c.bf16 %v781, %v780
      %v786 = vpack.c.bf16 %v782, %v782
      %v787 = vld [vmem:[%s3] sm:$0x1]
      %v789 = vlaneseq
      %v790 = vshrl.u32 %v789, 7
      %v791 = vsub.s32 0, %v790
      %v792 = vrot.slane %v787, %v791
      %vm794 = vcmask 195584
      %v796 = vsel %vm794, %v783, 0
      %v799 = vsel %vm794, %v784, 0
      %vm801 = vcmask 1043456
      %v803 = vsel %vm801, %v786, 0
      %805 = vmatprep.subr.bf16.mxu0 0
      %806 = vmatpush1.bf16.msra.mxu0 %v785
      %807 = vmatprep.subr.bf16.mxu0 0
      %808 = vmatpush1.bf16.msra.mxu0 %v803
      %809 = vmatprep.subr.bf16.mxu0 0
      %810 = vmatpush1.bf16.msra.mxu0 0
      %811 = vmatprep.subr.bf16.mxu0 0
      %812 = vmatpush1.bf16.msra.mxu0 0
      %813 = vmatprep.subr.bf16.mxu0 0
      %814 = vmatpush1.bf16.msra.mxu0 0
      %815 = vmatprep.subr.bf16.mxu0 0
      %816 = vmatpush1.bf16.msra.mxu0 0
      %817 = vmatprep.subr.bf16.mxu0 0
      %818 = vmatpush1.bf16.msra.mxu0 0
      %819 = vmatprep.subr.bf16.mxu0 0
      %820 = vmatpush1.bf16.msra.mxu0 0
      %821 = vmatprep.subr.bf16.mxu0 0
      %822 = vmatpush1.bf16.msra.mxu0 0
      %823 = vmatprep.subr.bf16.mxu0 0
      %824 = vmatpush1.bf16.msra.mxu0 0
      %825 = vmatprep.subr.bf16.mxu0 0
      %826 = vmatpush1.bf16.msra.mxu0 0
      %827 = vmatprep.subr.bf16.mxu0 0
      %828 = vmatpush1.bf16.msra.mxu0 0
      %829 = vmatprep.subr.bf16.mxu0 0
      %830 = vmatpush1.bf16.msra.mxu0 0
      %831 = vmatprep.subr.bf16.mxu0 0
      %832 = vmatpush1.bf16.msra.mxu0 0
      %833 = vmatprep.subr.bf16.mxu0 0
      %834 = vmatpush1.bf16.msra.mxu0 0
      %835 = vmatprep.subr.bf16.mxu0 0
      %836 = vmatpush1.bf16.msra.mxu0 0
      %837 = vmatprep.mubr.bf16.mxu0 0
      %838 = vmatmul.mubr.bf16.gmra.mrb[0].mxu0 %v796
      %v839 = vpop.f32.mrb[0].mxu0
      %v840 = vadd.f32 %v792, %v839
      %v841 = vpop.f32.mrb[0].mxu0
      %v842 = vpop.f32.mrb[0].mxu0
      %v843 = vadd.f32 %v792, %v842
      %v844 = vpop.f32.mrb[0].mxu0
      %845 = vmatprep.mubr.bf16.mxu0 0
      %846 = vmatmul.mubr.bf16.gmra.mrb[0].mxu0 %v799
      %v847 = vpop.f32.mrb[0].mxu0
      %v848 = vadd.f32 %v792, %v847
      %v849 = vpop.f32.mrb[0].mxu0
      %v850 = vpop.f32.mrb[0].mxu0
      %v851 = vadd.f32 %v792, %v850
      %v852 = vpop.f32.mrb[0].mxu0
      %853 = vdwg.mxu0
      %v854 = vmax.f32 %v840, 0.0
      %v855 = vmax.f32 %v843, 0.0
      %v856 = vmax.f32 %v848, 0.0
      %v857 = vmax.f32 %v851, 0.0
      %v858 = vld [vmem:[%s1] sm:$0xff]
      %v859 = vld [vmem:[%s1 + $0x8] sm:$0xff]
      %v860 = vld [vmem:[%s1 + $0x10] sm:$0xff]
      %v861 = vld [vmem:[%s1 + $0x18] sm:$0xff]
      %v862 = vadd.f32 %v854, %v858
      %v863 = vadd.f32 %v855, %v859
      %v864 = vadd.f32 %v856, %v860
      %v865 = vadd.f32 %v857, %v861
      %v866 = vld [vmem:[%s4] sm:$0x1]
      %v867 = vld [vmem:[%s5] sm:$0x1]
      %vm868 = vcmask 261120
      %v869 = vsel %vm868, %v862, 0.0
      %870 = vadd.xlane.f32.xlu0 %v869
      %v871 = vpop.xlane.xlu0 %870
      %v872 = vsel %vm868, %v863, 0.0
      %873 = vadd.xlane.f32.xlu0 %v872
      %v874 = vpop.xlane.xlu0 %873
      %v875 = vsel %vm868, %v864, 0.0
      %876 = vadd.xlane.f32.xlu0 %v875
      %v877 = vpop.xlane.xlu0 %876
      %v878 = vsel %vm868, %v865, 0.0
      %879 = vadd.xlane.f32.xlu0 %v878
      %v880 = vpop.xlane.xlu0 %879
      %v881 = vrcp.pop 32.0
      %v882 = vmul.f32 %v871, %v881
      %v883 = vmul.f32 %v874, %v881
      %v884 = vmul.f32 %v877, %v881
      %v885 = vmul.f32 %v880, %v881
      %v886 = vsub.f32 %v862, %v882
      %v887 = vsub.f32 %v863, %v883
      %v888 = vsub.f32 %v864, %v884
      %v889 = vsub.f32 %v865, %v885
      %v890 = vmul.f32 %v886, %v886
      %v891 = vmul.f32 %v887, %v887
      %v892 = vmul.f32 %v888, %v888
      %v893 = vmul.f32 %v889, %v889
      %v894 = vsel %vm868, %v890, 0.0
      %895 = vadd.xlane.f32.xlu0 %v894
      %v896 = vpop.xlane.xlu0 %895
      %v897 = vsel %vm868, %v891, 0.0
      %898 = vadd.xlane.f32.xlu0 %v897
      %v899 = vpop.xlane.xlu0 %898
      %v900 = vsel %vm868, %v892, 0.0
      %901 = vadd.xlane.f32.xlu0 %v900
      %v902 = vpop.xlane.xlu0 %901
      %v903 = vsel %vm868, %v893, 0.0
      %904 = vadd.xlane.f32.xlu0 %v903
      %v905 = vpop.xlane.xlu0 %904
      %v906 = vmul.f32 %v896, %v881
      %v907 = vmul.f32 %v899, %v881
      %v908 = vmul.f32 %v902, %v881
      %v909 = vmul.f32 %v905, %v881
      %v910 = vadd.f32 %v906, 1e-05
      %v911 = vadd.f32 %v907, 1e-05
      %v912 = vadd.f32 %v908, 1e-05
      %v913 = vadd.f32 %v909, 1e-05
      %v914 = vrsqrt.pop %v910
      %v915 = vrsqrt.pop %v911
      %v916 = vrsqrt.pop %v912
      %v917 = vrsqrt.pop %v913
      %v918 = vmul.f32 %v886, %v914
      %v919 = vmul.f32 %v887, %v915
      %v920 = vmul.f32 %v888, %v916
      %v921 = vmul.f32 %v889, %v917
      %v923 = vlaneseq
      %v924 = vshrl.u32 %v923, 7
      %v925 = vsub.s32 0, %v924
      %v926 = vrot.slane %v866, %v925
      %v928 = vmul.f32 %v918, %v926
      %v929 = vmul.f32 %v919, %v926
      %v930 = vmul.f32 %v920, %v926
      %v931 = vmul.f32 %v921, %v926
      %v933 = vlaneseq
      %v934 = vshrl.u32 %v933, 7
      %v935 = vsub.s32 0, %v934
      %v936 = vrot.slane %v867, %v935
      %v938 = vadd.f32 %v928, %v936
      %v939 = vadd.f32 %v929, %v936
      %v940 = vadd.f32 %v930, %v936
      %v941 = vadd.f32 %v931, %v936
      %v942 = vld [vmem:[%s6] sm:$0xff]
      %v943 = vld [vmem:[%s6 + $0x8] sm:$0xff]
      %v944 = vld [vmem:[%s6 + $0x10] sm:$0xff]
      %v945 = vld [vmem:[%s6 + $0x18] sm:$0xff]
      %v946 = vpack.c.bf16 %v939, %v938
      %v947 = vpack.c.bf16 %v941, %v940
      %v948 = vpack.c.bf16 %v943, %v942
      %v949 = vpack.c.bf16 %v945, %v944
      %v950 = vld [vmem:[%s7] sm:$0x1]
      %v952 = vlaneseq
      %v953 = vshrl.u32 %v952, 7
      %v954 = vsub.s32 0, %v953
      %v955 = vrot.slane %v950, %v954
      %v958 = vsel %vm868, %v946, 0
      %v961 = vsel %vm868, %v947, 0
      %963 = vmatprep.subr.bf16.mxu0 0
      %964 = vmatpush1.bf16.msra.mxu0 %v948
      %965 = vmatprep.subr.bf16.mxu0 0
      %966 = vmatpush1.bf16.msra.mxu0 %v949
      %967 = vmatprep.subr.bf16.mxu0 0
      %968 = vmatpush1.bf16.msra.mxu0 0
      %969 = vmatprep.subr.bf16.mxu0 0
      %970 = vmatpush1.bf16.msra.mxu0 0
      %971 = vmatprep.subr.bf16.mxu0 0
      %972 = vmatpush1.bf16.msra.mxu0 0
      %973 = vmatprep.subr.bf16.mxu0 0
      %974 = vmatpush1.bf16.msra.mxu0 0
      %975 = vmatprep.subr.bf16.mxu0 0
      %976 = vmatpush1.bf16.msra.mxu0 0
      %977 = vmatprep.subr.bf16.mxu0 0
      %978 = vmatpush1.bf16.msra.mxu0 0
      %979 = vmatprep.subr.bf16.mxu0 0
      %980 = vmatpush1.bf16.msra.mxu0 0
      %981 = vmatprep.subr.bf16.mxu0 0
      %982 = vmatpush1.bf16.msra.mxu0 0
      %983 = vmatprep.subr.bf16.mxu0 0
      %984 = vmatpush1.bf16.msra.mxu0 0
      %985 = vmatprep.subr.bf16.mxu0 0
      %986 = vmatpush1.bf16.msra.mxu0 0
      %987 = vmatprep.subr.bf16.mxu0 0
      %988 = vmatpush1.bf16.msra.mxu0 0
      %989 = vmatprep.subr.bf16.mxu0 0
      %990 = vmatpush1.bf16.msra.mxu0 0
      %991 = vmatprep.subr.bf16.mxu0 0
      %992 = vmatpush1.bf16.msra.mxu0 0
      %993 = vmatprep.subr.bf16.mxu0 0
      %994 = vmatpush1.bf16.msra.mxu0 0
      %995 = vmatprep.mubr.bf16.mxu0 0
      %996 = vmatmul.mubr.bf16.gmra.mrb[0].mxu0 %v958
      %v997 = vpop.f32.mrb[0].mxu0
      %v998 = vadd.f32 %v955, %v997
      %v999 = vpop.f32.mrb[0].mxu0
      %v1000 = vpop.f32.mrb[0].mxu0
      %v1001 = vadd.f32 %v955, %v1000
      %v1002 = vpop.f32.mrb[0].mxu0
      %1003 = vmatprep.mubr.bf16.mxu0 0
      %1004 = vmatmul.mubr.bf16.gmra.mrb[0].mxu0 %v961
      %v1005 = vpop.f32.mrb[0].mxu0
      %v1006 = vadd.f32 %v955, %v1005
      %v1007 = vpop.f32.mrb[0].mxu0
      %v1008 = vpop.f32.mrb[0].mxu0
      %v1009 = vadd.f32 %v955, %v1008
      %v1010 = vpop.f32.mrb[0].mxu0
      %1011 = vdwg.mxu0
      %v1012 = vpack.c.bf16 %v1001, %v998
      %1014 = vrot.lane.b32.xlu0 %v1012, 96
      %v1015 = vpop.permute.xlu0 %1014
      %v1017 = vsel %vm770, %v1012, 0
      %v1020 = vsel %vm770, %v1015, 0
      %1022 = vmatprep.subr.bf16.mxu0 0
      %1023 = vmatpush1.bf16.xpose.msra.mxu0 %v1020
      %1024 = vmatprep.subr.bf16.mxu0 0
      %1025 = vmatpush1.bf16.xpose.msra.mxu0 0
      %1026 = vmatprep.subr.bf16.mxu0 0
      %1027 = vmatpush1.bf16.xpose.msra.mxu0 0
      %1028 = vmatprep.subr.bf16.mxu0 0
      %1029 = vmatpush1.bf16.xpose.msra.mxu0 0
      %1030 = vmatprep.subr.bf16.mxu0 0
      %1031 = vmatpush1.bf16.xpose.msra.mxu0 0
      %1032 = vmatprep.subr.bf16.mxu0 0
      %1033 = vmatpush1.bf16.xpose.msra.mxu0 0
      %1034 = vmatprep.subr.bf16.mxu0 0
      %1035 = vmatpush1.bf16.xpose.msra.mxu0 0
      %1036 = vmatprep.subr.bf16.mxu0 0
      %1037 = vmatpush1.bf16.xpose.msra.mxu0 0
      %1038 = vmatprep.subr.bf16.mxu0 0
      %1039 = vmatpush1.bf16.xpose.msra.mxu0 0
      %1040 = vmatprep.subr.bf16.mxu0 0
      %1041 = vmatpush1.bf16.xpose.msra.mxu0 0
      %1042 = vmatprep.subr.bf16.mxu0 0
      %1043 = vmatpush1.bf16.xpose.msra.mxu0 0
      %1044 = vmatprep.subr.bf16.mxu0 0
      %1045 = vmatpush1.bf16.xpose.msra.mxu0 0
      %1046 = vmatprep.subr.bf16.mxu0 0
      %1047 = vmatpush1.bf16.xpose.msra.mxu0 0
      %1048 = vmatprep.subr.bf16.mxu0 0
      %1049 = vmatpush1.bf16.xpose.msra.mxu0 0
      %1050 = vmatprep.subr.bf16.mxu0 0
      %1051 = vmatpush1.bf16.xpose.msra.mxu0 0
      %1052 = vmatprep.subr.bf16.mxu0 0
      %1053 = vmatpush1.bf16.xpose.msra.mxu0 0
      %1054 = vmatprep.mubr.bf16.mxu0 0
      %1055 = vmatmul.mubr.bf16.gmra.mrb[0].mxu0 %v1017
      %v1056 = vpop.f32.mrb[0].mxu0
      %v1057 = vadd.f32 0.0, %v1056
      %v1058 = vpop.f32.mrb[0].mxu0
      %v1059 = vpop.f32.mrb[0].mxu0
      %v1060 = vadd.f32 0.0, %v1059
      %v1061 = vpop.f32.mrb[0].mxu0
      %1062 = vdwg.mxu0
      %v1063 = vsel %vm775, %v1057, -inf
      %1064 = vmax.xlane.f32.xlu0 %v1063
      %v1065 = vpop.xlane.xlu0 %1064
      %v1066 = vsel %vm775, %v1060, -inf
      %1067 = vmax.xlane.f32.xlu0 %v1066
      %v1068 = vpop.xlane.xlu0 %1067
      %v1069 = vsub.f32 %v1057, %v1065
      %v1070 = vsub.f32 %v1060, %v1068
      %v1071 = vmul.f32 %v1069, 1.442695
      %v1072 = vpow.pop %v1071
      %v1073 = vmul.f32 %v1070, 1.442695
      %v1074 = vpow.pop %v1073
      %v1075 = vsel %vm775, %v1072, 0.0
      %1076 = vadd.xlane.f32.xlu0 %v1075
      %v1077 = vpop.xlane.xlu0 %1076
      %v1078 = vsel %vm775, %v1074, 0.0
      %1079 = vadd.xlane.f32.xlu0 %v1078
      %v1080 = vpop.xlane.xlu0 %1079
      %v1081 = vrcp.pop %v1077
      %v1082 = vrcp.pop %v1080
      %v1083 = vmul.f32 %v1072, %v1081
      %v1084 = vmul.f32 %v1074, %v1082
      %v1085 = vpack.c.bf16 %v1084, %v1083
      %1086 = vrot.lane.b32.xlu0 %v1012, 64
      %v1087 = vpop.permute.xlu0 %1086
      %v1090 = vsel %vm775, %v1085, 0
      %1092 = vmatprep.subr.bf16.mxu0 0
      %1093 = vmatpush1.bf16.msra.mxu0 %v1087
      %1094 = vmatprep.subr.bf16.mxu0 0
      %1095 = vmatpush1.bf16.msra.mxu0 0
      %1096 = vmatprep.subr.bf16.mxu0 0
      %1097 = vmatpush1.bf16.msra.mxu0 0
      %1098 = vmatprep.subr.bf16.mxu0 0
      %1099 = vmatpush1.bf16.msra.mxu0 0
      %1100 = vmatprep.subr.bf16.mxu0 0
      %1101 = vmatpush1.bf16.msra.mxu0 0
      %1102 = vmatprep.subr.bf16.mxu0 0
      %1103 = vmatpush1.bf16.msra.mxu0 0
      %1104 = vmatprep.subr.bf16.mxu0 0
      %1105 = vmatpush1.bf16.msra.mxu0 0
      %1106 = vmatprep.subr.bf16.mxu0 0
      %1107 = vmatpush1.bf16.msra.mxu0 0
      %1108 = vmatprep.subr.bf16.mxu0 0
      %1109 = vmatpush1.bf16.msra.mxu0 0
      %1110 = vmatprep.subr.bf16.mxu0 0
      %1111 = vmatpush1.bf16.msra.mxu0 0
      %1112 = vmatprep.subr.bf16.mxu0 0
      %1113 = vmatpush1.bf16.msra.mxu0 0
      %1114 = vmatprep.subr.bf16.mxu0 0
      %1115 = vmatpush1.bf16.msra.mxu0 0
      %1116 = vmatprep.subr.bf16.mxu0 0
      %1117 = vmatpush1.bf16.msra.mxu0 0
      %1118 = vmatprep.subr.bf16.mxu0 0
      %1119 = vmatpush1.bf16.msra.mxu0 0
      %1120 = vmatprep.subr.bf16.mxu0 0
      %1121 = vmatpush1.bf16.msra.mxu0 0
      %1122 = vmatprep.subr.bf16.mxu0 0
      %1123 = vmatpush1.bf16.msra.mxu0 0
      %1124 = vmatprep.mubr.bf16.mxu0 0
      %1125 = vmatmul.mubr.bf16.gmra.mrb[0].mxu0 %v1090
      %v1126 = vpop.f32.mrb[0].mxu0
      %v1127 = vadd.f32 0.0, %v1126
      %v1128 = vpop.f32.mrb[0].mxu0
      %v1129 = vpop.f32.mrb[0].mxu0
      %v1130 = vadd.f32 0.0, %v1129
      %v1131 = vpop.f32.mrb[0].mxu0
      %1132 = vdwg.mxu0
      %1133 = vrot.lane.b32.xlu0 %v1012, 120
      %v1134 = vpop.permute.xlu0 %1133
      %1135 = vrot.lane.b32.xlu0 %v1012, 88
      %v1136 = vpop.permute.xlu0 %1135
      %v1138 = vsel %vm770, %v1134, 0
      %v1141 = vsel %vm770, %v1136, 0
      %1143 = vmatprep.subr.bf16.mxu0 0
      %1144 = vmatpush1.bf16.xpose.msra.mxu0 %v1141
      %1145 = vmatprep.subr.bf16.mxu0 0
      %1146 = vmatpush1.bf16.xpose.msra.mxu0 0
      %1147 = vmatprep.subr.bf16.mxu0 0
      %1148 = vmatpush1.bf16.xpose.msra.mxu0 0
      %1149 = vmatprep.subr.bf16.mxu0 0
      %1150 = vmatpush1.bf16.xpose.msra.mxu0 0
      %1151 = vmatprep.subr.bf16.mxu0 0
      %1152 = vmatpush1.bf16.xpose.msra.mxu0 0
      %1153 = vmatprep.subr.bf16.mxu0 0
      %1154 = vmatpush1.bf16.xpose.msra.mxu0 0
      %1155 = vmatprep.subr.bf16.mxu0 0
      %1156 = vmatpush1.bf16.xpose.msra.mxu0 0
      %1157 = vmatprep.subr.bf16.mxu0 0
      %1158 = vmatpush1.bf16.xpose.msra.mxu0 0
      %1159 = vmatprep.subr.bf16.mxu0 0
      %1160 = vmatpush1.bf16.xpose.msra.mxu0 0
      %1161 = vmatprep.subr.bf16.mxu0 0
      %1162 = vmatpush1.bf16.xpose.msra.mxu0 0
      %1163 = vmatprep.subr.bf16.mxu0 0
      %1164 = vmatpush1.bf16.xpose.msra.mxu0 0
      %1165 = vmatprep.subr.bf16.mxu0 0
      %1166 = vmatpush1.bf16.xpose.msra.mxu0 0
      %1167 = vmatprep.subr.bf16.mxu0 0
      %1168 = vmatpush1.bf16.xpose.msra.mxu0 0
      %1169 = vmatprep.subr.bf16.mxu0 0
      %1170 = vmatpush1.bf16.xpose.msra.mxu0 0
      %1171 = vmatprep.subr.bf16.mxu0 0
      %1172 = vmatpush1.bf16.xpose.msra.mxu0 0
      %1173 = vmatprep.subr.bf16.mxu0 0
      %1174 = vmatpush1.bf16.xpose.msra.mxu0 0
      %1175 = vmatprep.mubr.bf16.mxu0 0
      %1176 = vmatmul.mubr.bf16.gmra.mrb[0].mxu0 %v1138
      %v1177 = vpop.f32.mrb[0].mxu0
      %v1178 = vadd.f32 0.0, %v1177
      %v1179 = vpop.f32.mrb[0].mxu0
      %v1180 = vpop.f32.mrb[0].mxu0
      %v1181 = vadd.f32 0.0, %v1180
      %v1182 = vpop.f32.mrb[0].mxu0
      %1183 = vdwg.mxu0
      %v1184 = vsel %vm775, %v1178, -inf
      %1185 = vmax.xlane.f32.xlu0 %v1184
      %v1186 = vpop.xlane.xlu0 %1185
      %v1187 = vsel %vm775, %v1181, -inf
      %1188 = vmax.xlane.f32.xlu0 %v1187
      %v1189 = vpop.xlane.xlu0 %1188
      %v1190 = vsub.f32 %v1178, %v1186
      %v1191 = vsub.f32 %v1181, %v1189
      %v1192 = vmul.f32 %v1190, 1.442695
      %v1193 = vpow.pop %v1192
      %v1194 = vmul.f32 %v1191, 1.442695
      %v1195 = vpow.pop %v1194
      %v1196 = vsel %vm775, %v1193, 0.0
      %1197 = vadd.xlane.f32.xlu0 %v1196
      %v1198 = vpop.xlane.xlu0 %1197
      %v1199 = vsel %vm775, %v1195, 0.0
      %1200 = vadd.xlane.f32.xlu0 %v1199
      %v1201 = vpop.xlane.xlu0 %1200
      %v1202 = vrcp.pop %v1198
      %v1203 = vrcp.pop %v1201
      %v1204 = vmul.f32 %v1193, %v1202
      %v1205 = vmul.f32 %v1195, %v1203
      %v1206 = vpack.c.bf16 %v1205, %v1204
      %1207 = vrot.lane.b32.xlu0 %v1012, 56
      %v1208 = vpop.permute.xlu0 %1207
      %v1211 = vsel %vm775, %v1206, 0
      %1213 = vmatprep.subr.bf16.mxu0 0
      %1214 = vmatpush1.bf16.msra.mxu0 %v1208
      %1215 = vmatprep.subr.bf16.mxu0 0
      %1216 = vmatpush1.bf16.msra.mxu0 0
      %1217 = vmatprep.subr.bf16.mxu0 0
      %1218 = vmatpush1.bf16.msra.mxu0 0
      %1219 = vmatprep.subr.bf16.mxu0 0
      %1220 = vmatpush1.bf16.msra.mxu0 0
      %1221 = vmatprep.subr.bf16.mxu0 0
      %1222 = vmatpush1.bf16.msra.mxu0 0
      %1223 = vmatprep.subr.bf16.mxu0 0
      %1224 = vmatpush1.bf16.msra.mxu0 0
      %1225 = vmatprep.subr.bf16.mxu0 0
      %1226 = vmatpush1.bf16.msra.mxu0 0
      %1227 = vmatprep.subr.bf16.mxu0 0
      %1228 = vmatpush1.bf16.msra.mxu0 0
      %1229 = vmatprep.subr.bf16.mxu0 0
      %1230 = vmatpush1.bf16.msra.mxu0 0
      %1231 = vmatprep.subr.bf16.mxu0 0
      %1232 = vmatpush1.bf16.msra.mxu0 0
      %1233 = vmatprep.subr.bf16.mxu0 0
      %1234 = vmatpush1.bf16.msra.mxu0 0
      %1235 = vmatprep.subr.bf16.mxu0 0
      %1236 = vmatpush1.bf16.msra.mxu0 0
      %1237 = vmatprep.subr.bf16.mxu0 0
      %1238 = vmatpush1.bf16.msra.mxu0 0
      %1239 = vmatprep.subr.bf16.mxu0 0
      %1240 = vmatpush1.bf16.msra.mxu0 0
      %1241 = vmatprep.subr.bf16.mxu0 0
      %1242 = vmatpush1.bf16.msra.mxu0 0
      %1243 = vmatprep.subr.bf16.mxu0 0
      %1244 = vmatpush1.bf16.msra.mxu0 0
      %1245 = vmatprep.mubr.bf16.mxu0 0
      %1246 = vmatmul.mubr.bf16.gmra.mrb[0].mxu0 %v1211
      %v1247 = vpop.f32.mrb[0].mxu0
      %v1248 = vadd.f32 0.0, %v1247
      %v1249 = vpop.f32.mrb[0].mxu0
      %v1250 = vpop.f32.mrb[0].mxu0
      %v1251 = vadd.f32 0.0, %v1250
      %v1252 = vpop.f32.mrb[0].mxu0
      %1253 = vdwg.mxu0
      %1254 = vrot.lane.b32.xlu0 %v1012, 112
      %v1255 = vpop.permute.xlu0 %1254
      %1256 = vrot.lane.b32.xlu0 %v1012, 80
      %v1257 = vpop.permute.xlu0 %1256
      %v1259 = vsel %vm770, %v1255, 0
      %v1262 = vsel %vm770, %v1257, 0
      %1264 = vmatprep.subr.bf16.mxu0 0
      %1265 = vmatpush1.bf16.xpose.msra.mxu0 %v1262
      %1266 = vmatprep.subr.bf16.mxu0 0
      %1267 = vmatpush1.bf16.xpose.msra.mxu0 0
      %1268 = vmatprep.subr.bf16.mxu0 0
      %1269 = vmatpush1.bf16.xpose.msra.mxu0 0
      %1270 = vmatprep.subr.bf16.mxu0 0
      %1271 = vmatpush1.bf16.xpose.msra.mxu0 0
      %1272 = vmatprep.subr.bf16.mxu0 0
      %1273 = vmatpush1.bf16.xpose.msra.mxu0 0
      %1274 = vmatprep.subr.bf16.mxu0 0
      %1275 = vmatpush1.bf16.xpose.msra.mxu0 0
      %1276 = vmatprep.subr.bf16.mxu0 0
      %1277 = vmatpush1.bf16.xpose.msra.mxu0 0
      %1278 = vmatprep.subr.bf16.mxu0 0
      %1279 = vmatpush1.bf16.xpose.msra.mxu0 0
      %1280 = vmatprep.subr.bf16.mxu0 0
      %1281 = vmatpush1.bf16.xpose.msra.mxu0 0
      %1282 = vmatprep.subr.bf16.mxu0 0
      %1283 = vmatpush1.bf16.xpose.msra.mxu0 0
      %1284 = vmatprep.subr.bf16.mxu0 0
      %1285 = vmatpush1.bf16.xpose.msra.mxu0 0
      %1286 = vmatprep.subr.bf16.mxu0 0
      %1287 = vmatpush1.bf16.xpose.msra.mxu0 0
      %1288 = vmatprep.subr.bf16.mxu0 0
      %1289 = vmatpush1.bf16.xpose.msra.mxu0 0
      %1290 = vmatprep.subr.bf16.mxu0 0
      %1291 = vmatpush1.bf16.xpose.msra.mxu0 0
      %1292 = vmatprep.subr.bf16.mxu0 0
      %1293 = vmatpush1.bf16.xpose.msra.mxu0 0
      %1294 = vmatprep.subr.bf16.mxu0 0
      %1295 = vmatpush1.bf16.xpose.msra.mxu0 0
      %1296 = vmatprep.mubr.bf16.mxu0 0
      %1297 = vmatmul.mubr.bf16.gmra.mrb[0].mxu0 %v1259
      %v1298 = vpop.f32.mrb[0].mxu0
      %v1299 = vadd.f32 0.0, %v1298
      %v1300 = vpop.f32.mrb[0].mxu0
      %v1301 = vpop.f32.mrb[0].mxu0
      %v1302 = vadd.f32 0.0, %v1301
      %v1303 = vpop.f32.mrb[0].mxu0
      %1304 = vdwg.mxu0
      %v1305 = vsel %vm775, %v1299, -inf
      %1306 = vmax.xlane.f32.xlu0 %v1305
      %v1307 = vpop.xlane.xlu0 %1306
      %v1308 = vsel %vm775, %v1302, -inf
      %1309 = vmax.xlane.f32.xlu0 %v1308
      %v1310 = vpop.xlane.xlu0 %1309
      %v1311 = vsub.f32 %v1299, %v1307
      %v1312 = vsub.f32 %v1302, %v1310
      %v1313 = vmul.f32 %v1311, 1.442695
      %v1314 = vpow.pop %v1313
      %v1315 = vmul.f32 %v1312, 1.442695
      %v1316 = vpow.pop %v1315
      %v1317 = vsel %vm775, %v1314, 0.0
      %1318 = vadd.xlane.f32.xlu0 %v1317
      %v1319 = vpop.xlane.xlu0 %1318
      %v1320 = vsel %vm775, %v1316, 0.0
      %1321 = vadd.xlane.f32.xlu0 %v1320
      %v1322 = vpop.xlane.xlu0 %1321
      %v1323 = vrcp.pop %v1319
      %v1324 = vrcp.pop %v1322
      %v1325 = vmul.f32 %v1314, %v1323
      %v1326 = vmul.f32 %v1316, %v1324
      %v1327 = vpack.c.bf16 %v1326, %v1325
      %1328 = vrot.lane.b32.xlu0 %v1012, 48
      %v1329 = vpop.permute.xlu0 %1328
      %v1332 = vsel %vm775, %v1327, 0
      %1334 = vmatprep.subr.bf16.mxu0 0
      %1335 = vmatpush1.bf16.msra.mxu0 %v1329
      %1336 = vmatprep.subr.bf16.mxu0 0
      %1337 = vmatpush1.bf16.msra.mxu0 0
      %1338 = vmatprep.subr.bf16.mxu0 0
      %1339 = vmatpush1.bf16.msra.mxu0 0
      %1340 = vmatprep.subr.bf16.mxu0 0
      %1341 = vmatpush1.bf16.msra.mxu0 0
      %1342 = vmatprep.subr.bf16.mxu0 0
      %1343 = vmatpush1.bf16.msra.mxu0 0
      %1344 = vmatprep.subr.bf16.mxu0 0
      %1345 = vmatpush1.bf16.msra.mxu0 0
      %1346 = vmatprep.subr.bf16.mxu0 0
      %1347 = vmatpush1.bf16.msra.mxu0 0
      %1348 = vmatprep.subr.bf16.mxu0 0
      %1349 = vmatpush1.bf16.msra.mxu0 0
      %1350 = vmatprep.subr.bf16.mxu0 0
      %1351 = vmatpush1.bf16.msra.mxu0 0
      %1352 = vmatprep.subr.bf16.mxu0 0
      %1353 = vmatpush1.bf16.msra.mxu0 0
      %1354 = vmatprep.subr.bf16.mxu0 0
      %1355 = vmatpush1.bf16.msra.mxu0 0
      %1356 = vmatprep.subr.bf16.mxu0 0
      %1357 = vmatpush1.bf16.msra.mxu0 0
      %1358 = vmatprep.subr.bf16.mxu0 0
      %1359 = vmatpush1.bf16.msra.mxu0 0
      %1360 = vmatprep.subr.bf16.mxu0 0
      %1361 = vmatpush1.bf16.msra.mxu0 0
      %1362 = vmatprep.subr.bf16.mxu0 0
      %1363 = vmatpush1.bf16.msra.mxu0 0
      %1364 = vmatprep.subr.bf16.mxu0 0
      %1365 = vmatpush1.bf16.msra.mxu0 0
      %1366 = vmatprep.mubr.bf16.mxu0 0
      %1367 = vmatmul.mubr.bf16.gmra.mrb[0].mxu0 %v1332
      %v1368 = vpop.f32.mrb[0].mxu0
      %v1369 = vadd.f32 0.0, %v1368
      %v1370 = vpop.f32.mrb[0].mxu0
      %v1371 = vpop.f32.mrb[0].mxu0
      %v1372 = vadd.f32 0.0, %v1371
      %v1373 = vpop.f32.mrb[0].mxu0
      %1374 = vdwg.mxu0
      %1375 = vrot.lane.b32.xlu0 %v1012, 104
      %v1376 = vpop.permute.xlu0 %1375
      %1377 = vrot.lane.b32.xlu0 %v1012, 72
      %v1378 = vpop.permute.xlu0 %1377
      %v1380 = vsel %vm770, %v1376, 0
      %v1383 = vsel %vm770, %v1378, 0
      %1385 = vmatprep.subr.bf16.mxu0 0
      %1386 = vmatpush1.bf16.xpose.msra.mxu0 %v1383
      %1387 = vmatprep.subr.bf16.mxu0 0
      %1388 = vmatpush1.bf16.xpose.msra.mxu0 0
      %1389 = vmatprep.subr.bf16.mxu0 0
      %1390 = vmatpush1.bf16.xpose.msra.mxu0 0
      %1391 = vmatprep.subr.bf16.mxu0 0
      %1392 = vmatpush1.bf16.xpose.msra.mxu0 0
      %1393 = vmatprep.subr.bf16.mxu0 0
      %1394 = vmatpush1.bf16.xpose.msra.mxu0 0
      %1395 = vmatprep.subr.bf16.mxu0 0
      %1396 = vmatpush1.bf16.xpose.msra.mxu0 0
      %1397 = vmatprep.subr.bf16.mxu0 0
      %1398 = vmatpush1.bf16.xpose.msra.mxu0 0
      %1399 = vmatprep.subr.bf16.mxu0 0
      %1400 = vmatpush1.bf16.xpose.msra.mxu0 0
      %1401 = vmatprep.subr.bf16.mxu0 0
      %1402 = vmatpush1.bf16.xpose.msra.mxu0 0
      %1403 = vmatprep.subr.bf16.mxu0 0
      %1404 = vmatpush1.bf16.xpose.msra.mxu0 0
      %1405 = vmatprep.subr.bf16.mxu0 0
      %1406 = vmatpush1.bf16.xpose.msra.mxu0 0
      %1407 = vmatprep.subr.bf16.mxu0 0
      %1408 = vmatpush1.bf16.xpose.msra.mxu0 0
      %1409 = vmatprep.subr.bf16.mxu0 0
      %1410 = vmatpush1.bf16.xpose.msra.mxu0 0
      %1411 = vmatprep.subr.bf16.mxu0 0
      %1412 = vmatpush1.bf16.xpose.msra.mxu0 0
      %1413 = vmatprep.subr.bf16.mxu0 0
      %1414 = vmatpush1.bf16.xpose.msra.mxu0 0
      %1415 = vmatprep.subr.bf16.mxu0 0
      %1416 = vmatpush1.bf16.xpose.msra.mxu0 0
      %1417 = vmatprep.mubr.bf16.mxu0 0
      %1418 = vmatmul.mubr.bf16.gmra.mrb[0].mxu0 %v1380
      %v1419 = vpop.f32.mrb[0].mxu0
      %v1420 = vadd.f32 0.0, %v1419
      %v1421 = vpop.f32.mrb[0].mxu0
      %v1422 = vpop.f32.mrb[0].mxu0
      %v1423 = vadd.f32 0.0, %v1422
      %v1424 = vpop.f32.mrb[0].mxu0
      %1425 = vdwg.mxu0
      %v1426 = vsel %vm775, %v1420, -inf
      %1427 = vmax.xlane.f32.xlu0 %v1426
      %v1428 = vpop.xlane.xlu0 %1427
      %v1429 = vsel %vm775, %v1423, -inf
      %1430 = vmax.xlane.f32.xlu0 %v1429
      %v1431 = vpop.xlane.xlu0 %1430
      %v1432 = vsub.f32 %v1420, %v1428
      %v1433 = vsub.f32 %v1423, %v1431
      %v1434 = vmul.f32 %v1432, 1.442695
      %v1435 = vpow.pop %v1434
      %v1436 = vmul.f32 %v1433, 1.442695
      %v1437 = vpow.pop %v1436
      %v1438 = vsel %vm775, %v1435, 0.0
      %1439 = vadd.xlane.f32.xlu0 %v1438
      %v1440 = vpop.xlane.xlu0 %1439
      %v1441 = vsel %vm775, %v1437, 0.0
      %1442 = vadd.xlane.f32.xlu0 %v1441
      %v1443 = vpop.xlane.xlu0 %1442
      %v1444 = vrcp.pop %v1440
      %v1445 = vrcp.pop %v1443
      %v1446 = vmul.f32 %v1435, %v1444
      %v1447 = vmul.f32 %v1437, %v1445
      %v1448 = vpack.c.bf16 %v1447, %v1446
      %1449 = vrot.lane.b32.xlu0 %v1012, 40
      %v1450 = vpop.permute.xlu0 %1449
      %v1453 = vsel %vm775, %v1448, 0
      %1455 = vmatprep.subr.bf16.mxu0 0
      %1456 = vmatpush1.bf16.msra.mxu0 %v1450
      %1457 = vmatprep.subr.bf16.mxu0 0
      %1458 = vmatpush1.bf16.msra.mxu0 0
      %1459 = vmatprep.subr.bf16.mxu0 0
      %1460 = vmatpush1.bf16.msra.mxu0 0
      %1461 = vmatprep.subr.bf16.mxu0 0
      %1462 = vmatpush1.bf16.msra.mxu0 0
      %1463 = vmatprep.subr.bf16.mxu0 0
      %1464 = vmatpush1.bf16.msra.mxu0 0
      %1465 = vmatprep.subr.bf16.mxu0 0
      %1466 = vmatpush1.bf16.msra.mxu0 0
      %1467 = vmatprep.subr.bf16.mxu0 0
      %1468 = vmatpush1.bf16.msra.mxu0 0
      %1469 = vmatprep.subr.bf16.mxu0 0
      %1470 = vmatpush1.bf16.msra.mxu0 0
      %1471 = vmatprep.subr.bf16.mxu0 0
      %1472 = vmatpush1.bf16.msra.mxu0 0
      %1473 = vmatprep.subr.bf16.mxu0 0
      %1474 = vmatpush1.bf16.msra.mxu0 0
      %1475 = vmatprep.subr.bf16.mxu0 0
      %1476 = vmatpush1.bf16.msra.mxu0 0
      %1477 = vmatprep.subr.bf16.mxu0 0
      %1478 = vmatpush1.bf16.msra.mxu0 0
      %1479 = vmatprep.subr.bf16.mxu0 0
      %1480 = vmatpush1.bf16.msra.mxu0 0
      %1481 = vmatprep.subr.bf16.mxu0 0
      %1482 = vmatpush1.bf16.msra.mxu0 0
      %1483 = vmatprep.subr.bf16.mxu0 0
      %1484 = vmatpush1.bf16.msra.mxu0 0
      %1485 = vmatprep.subr.bf16.mxu0 0
      %1486 = vmatpush1.bf16.msra.mxu0 0
      %1487 = vmatprep.mubr.bf16.mxu0 0
      %1488 = vmatmul.mubr.bf16.gmra.mrb[0].mxu0 %v1453
      %v1489 = vpop.f32.mrb[0].mxu0
      %v1490 = vadd.f32 0.0, %v1489
      %v1491 = vpop.f32.mrb[0].mxu0
      %v1492 = vpop.f32.mrb[0].mxu0
      %v1493 = vadd.f32 0.0, %v1492
      %v1494 = vpop.f32.mrb[0].mxu0
      %1495 = vdwg.mxu0
      %1498 = vrot.lane.b32.xlu0 %v1248, 8
      %v1499 = vpop.permute.xlu0 %1498
      %1500 = vrot.lane.b32.xlu0 %v1251, 8
      %v1501 = vpop.permute.xlu0 %1500
      %1506 = vrot.lane.b32.xlu0 %v1369, 16
      %v1507 = vpop.permute.xlu0 %1506
      %1508 = vrot.lane.b32.xlu0 %v1372, 16
      %v1509 = vpop.permute.xlu0 %1508
      %1514 = vrot.lane.b32.xlu0 %v1490, 24
      %v1515 = vpop.permute.xlu0 %1514
      %1516 = vrot.lane.b32.xlu0 %v1493, 24
      %v1517 = vpop.permute.xlu0 %1516
      %v1520 = vsel %vm770, %v1127, %v1499
      %v1521 = vsel %vm770, %v1130, %v1501
      %v1522 = vsel %vm775, %v1520, %v1507
      %v1523 = vsel %vm775, %v1521, %v1509
      %v1524 = vsel %vm794, %v1522, %v1515
      %v1525 = vsel %vm794, %v1523, %v1517
      %v1526 = vpack.c.bf16 %v1009, %v1006
      %1528 = vrot.lane.b32.xlu0 %v1526, 96
      %v1529 = vpop.permute.xlu0 %1528
      %v1531 = vsel %vm770, %v1526, 0
      %v1534 = vsel %vm770, %v1529, 0
      %1536 = vmatprep.subr.bf16.mxu0 0
      %1537 = vmatpush1.bf16.xpose.msra.mxu0 %v1534
      %1538 = vmatprep.subr.bf16.mxu0 0
      %1539 = vmatpush1.bf16.xpose.msra.mxu0 0
      %1540 = vmatprep.subr.bf16.mxu0 0
      %1541 = vmatpush1.bf16.xpose.msra.mxu0 0
      %1542 = vmatprep.subr.bf16.mxu0 0
      %1543 = vmatpush1.bf16.xpose.msra.mxu0 0
      %1544 = vmatprep.subr.bf16.mxu0 0
      %1545 = vmatpush1.bf16.xpose.msra.mxu0 0
      %1546 = vmatprep.subr.bf16.mxu0 0
      %1547 = vmatpush1.bf16.xpose.msra.mxu0 0
      %1548 = vmatprep.subr.bf16.mxu0 0
      %1549 = vmatpush1.bf16.xpose.msra.mxu0 0
      %1550 = vmatprep.subr.bf16.mxu0 0
      %1551 = vmatpush1.bf16.xpose.msra.mxu0 0
      %1552 = vmatprep.subr.bf16.mxu0 0
      %1553 = vmatpush1.bf16.xpose.msra.mxu0 0
      %1554 = vmatprep.subr.bf16.mxu0 0
      %1555 = vmatpush1.bf16.xpose.msra.mxu0 0
      %1556 = vmatprep.subr.bf16.mxu0 0
      %1557 = vmatpush1.bf16.xpose.msra.mxu0 0
      %1558 = vmatprep.subr.bf16.mxu0 0
      %1559 = vmatpush1.bf16.xpose.msra.mxu0 0
      %1560 = vmatprep.subr.bf16.mxu0 0
      %1561 = vmatpush1.bf16.xpose.msra.mxu0 0
      %1562 = vmatprep.subr.bf16.mxu0 0
      %1563 = vmatpush1.bf16.xpose.msra.mxu0 0
      %1564 = vmatprep.subr.bf16.mxu0 0
      %1565 = vmatpush1.bf16.xpose.msra.mxu0 0
      %1566 = vmatprep.subr.bf16.mxu0 0
      %1567 = vmatpush1.bf16.xpose.msra.mxu0 0
      %1568 = vmatprep.mubr.bf16.mxu0 0
      %1569 = vmatmul.mubr.bf16.gmra.mrb[0].mxu0 %v1531
      %v1570 = vpop.f32.mrb[0].mxu0
      %v1571 = vadd.f32 0.0, %v1570
      %v1572 = vpop.f32.mrb[0].mxu0
      %v1573 = vpop.f32.mrb[0].mxu0
      %v1574 = vadd.f32 0.0, %v1573
      %v1575 = vpop.f32.mrb[0].mxu0
      %1576 = vdwg.mxu0
      %v1577 = vsel %vm775, %v1571, -inf
      %1578 = vmax.xlane.f32.xlu0 %v1577
      %v1579 = vpop.xlane.xlu0 %1578
      %v1580 = vsel %vm775, %v1574, -inf
      %1581 = vmax.xlane.f32.xlu0 %v1580
      %v1582 = vpop.xlane.xlu0 %1581
      %v1583 = vsub.f32 %v1571, %v1579
      %v1584 = vsub.f32 %v1574, %v1582
      %v1585 = vmul.f32 %v1583, 1.442695
      %v1586 = vpow.pop %v1585
      %v1587 = vmul.f32 %v1584, 1.442695
      %v1588 = vpow.pop %v1587
      %v1589 = vsel %vm775, %v1586, 0.0
      %1590 = vadd.xlane.f32.xlu0 %v1589
      %v1591 = vpop.xlane.xlu0 %1590
      %v1592 = vsel %vm775, %v1588, 0.0
      %1593 = vadd.xlane.f32.xlu0 %v1592
      %v1594 = vpop.xlane.xlu0 %1593
      %v1595 = vrcp.pop %v1591
      %v1596 = vrcp.pop %v1594
      %v1597 = vmul.f32 %v1586, %v1595
      %v1598 = vmul.f32 %v1588, %v1596
      %v1599 = vpack.c.bf16 %v1598, %v1597
      %1600 = vrot.lane.b32.xlu0 %v1526, 64
      %v1601 = vpop.permute.xlu0 %1600
      %v1604 = vsel %vm775, %v1599, 0
      %1606 = vmatprep.subr.bf16.mxu0 0
      %1607 = vmatpush1.bf16.msra.mxu0 %v1601
      %1608 = vmatprep.subr.bf16.mxu0 0
      %1609 = vmatpush1.bf16.msra.mxu0 0
      %1610 = vmatprep.subr.bf16.mxu0 0
      %1611 = vmatpush1.bf16.msra.mxu0 0
      %1612 = vmatprep.subr.bf16.mxu0 0
      %1613 = vmatpush1.bf16.msra.mxu0 0
      %1614 = vmatprep.subr.bf16.mxu0 0
      %1615 = vmatpush1.bf16.msra.mxu0 0
      %1616 = vmatprep.subr.bf16.mxu0 0
      %1617 = vmatpush1.bf16.msra.mxu0 0
      %1618 = vmatprep.subr.bf16.mxu0 0
      %1619 = vmatpush1.bf16.msra.mxu0 0
      %1620 = vmatprep.subr.bf16.mxu0 0
      %1621 = vmatpush1.bf16.msra.mxu0 0
      %1622 = vmatprep.subr.bf16.mxu0 0
      %1623 = vmatpush1.bf16.msra.mxu0 0
      %1624 = vmatprep.subr.bf16.mxu0 0
      %1625 = vmatpush1.bf16.msra.mxu0 0
      %1626 = vmatprep.subr.bf16.mxu0 0
      %1627 = vmatpush1.bf16.msra.mxu0 0
      %1628 = vmatprep.subr.bf16.mxu0 0
      %1629 = vmatpush1.bf16.msra.mxu0 0
      %1630 = vmatprep.subr.bf16.mxu0 0
      %1631 = vmatpush1.bf16.msra.mxu0 0
      %1632 = vmatprep.subr.bf16.mxu0 0
      %1633 = vmatpush1.bf16.msra.mxu0 0
      %1634 = vmatprep.subr.bf16.mxu0 0
      %1635 = vmatpush1.bf16.msra.mxu0 0
      %1636 = vmatprep.subr.bf16.mxu0 0
      %1637 = vmatpush1.bf16.msra.mxu0 0
      %1638 = vmatprep.mubr.bf16.mxu0 0
      %1639 = vmatmul.mubr.bf16.gmra.mrb[0].mxu0 %v1604
      %v1640 = vpop.f32.mrb[0].mxu0
      %v1641 = vadd.f32 0.0, %v1640
      %v1642 = vpop.f32.mrb[0].mxu0
      %v1643 = vpop.f32.mrb[0].mxu0
      %v1644 = vadd.f32 0.0, %v1643
      %v1645 = vpop.f32.mrb[0].mxu0
      %1646 = vdwg.mxu0
      %1647 = vrot.lane.b32.xlu0 %v1526, 120
      %v1648 = vpop.permute.xlu0 %1647
      %1649 = vrot.lane.b32.xlu0 %v1526, 88
      %v1650 = vpop.permute.xlu0 %1649
      %v1652 = vsel %vm770, %v1648, 0
      %v1655 = vsel %vm770, %v1650, 0
      %1657 = vmatprep.subr.bf16.mxu0 0
      %1658 = vmatpush1.bf16.xpose.msra.mxu0 %v1655
      %1659 = vmatprep.subr.bf16.mxu0 0
      %1660 = vmatpush1.bf16.xpose.msra.mxu0 0
      %1661 = vmatprep.subr.bf16.mxu0 0
      %1662 = vmatpush1.bf16.xpose.msra.mxu0 0
      %1663 = vmatprep.subr.bf16.mxu0 0
      %1664 = vmatpush1.bf16.xpose.msra.mxu0 0
      %1665 = vmatprep.subr.bf16.mxu0 0
      %1666 = vmatpush1.bf16.xpose.msra.mxu0 0
      %1667 = vmatprep.subr.bf16.mxu0 0
      %1668 = vmatpush1.bf16.xpose.msra.mxu0 0
      %1669 = vmatprep.subr.bf16.mxu0 0
      %1670 = vmatpush1.bf16.xpose.msra.mxu0 0
      %1671 = vmatprep.subr.bf16.mxu0 0
      %1672 = vmatpush1.bf16.xpose.msra.mxu0 0
      %1673 = vmatprep.subr.bf16.mxu0 0
      %1674 = vmatpush1.bf16.xpose.msra.mxu0 0
      %1675 = vmatprep.subr.bf16.mxu0 0
      %1676 = vmatpush1.bf16.xpose.msra.mxu0 0
      %1677 = vmatprep.subr.bf16.mxu0 0
      %1678 = vmatpush1.bf16.xpose.msra.mxu0 0
      %1679 = vmatprep.subr.bf16.mxu0 0
      %1680 = vmatpush1.bf16.xpose.msra.mxu0 0
      %1681 = vmatprep.subr.bf16.mxu0 0
      %1682 = vmatpush1.bf16.xpose.msra.mxu0 0
      %1683 = vmatprep.subr.bf16.mxu0 0
      %1684 = vmatpush1.bf16.xpose.msra.mxu0 0
      %1685 = vmatprep.subr.bf16.mxu0 0
      %1686 = vmatpush1.bf16.xpose.msra.mxu0 0
      %1687 = vmatprep.subr.bf16.mxu0 0
      %1688 = vmatpush1.bf16.xpose.msra.mxu0 0
      %1689 = vmatprep.mubr.bf16.mxu0 0
      %1690 = vmatmul.mubr.bf16.gmra.mrb[0].mxu0 %v1652
      %v1691 = vpop.f32.mrb[0].mxu0
      %v1692 = vadd.f32 0.0, %v1691
      %v1693 = vpop.f32.mrb[0].mxu0
      %v1694 = vpop.f32.mrb[0].mxu0
      %v1695 = vadd.f32 0.0, %v1694
      %v1696 = vpop.f32.mrb[0].mxu0
      %1697 = vdwg.mxu0
      %v1698 = vsel %vm775, %v1692, -inf
      %1699 = vmax.xlane.f32.xlu0 %v1698
      %v1700 = vpop.xlane.xlu0 %1699
      %v1701 = vsel %vm775, %v1695, -inf
      %1702 = vmax.xlane.f32.xlu0 %v1701
      %v1703 = vpop.xlane.xlu0 %1702
      %v1704 = vsub.f32 %v1692, %v1700
      %v1705 = vsub.f32 %v1695, %v1703
      %v1706 = vmul.f32 %v1704, 1.442695
      %v1707 = vpow.pop %v1706
      %v1708 = vmul.f32 %v1705, 1.442695
      %v1709 = vpow.pop %v1708
      %v1710 = vsel %vm775, %v1707, 0.0
      %1711 = vadd.xlane.f32.xlu0 %v1710
      %v1712 = vpop.xlane.xlu0 %1711
      %v1713 = vsel %vm775, %v1709, 0.0
      %1714 = vadd.xlane.f32.xlu0 %v1713
      %v1715 = vpop.xlane.xlu0 %1714
      %v1716 = vrcp.pop %v1712
      %v1717 = vrcp.pop %v1715
      %v1718 = vmul.f32 %v1707, %v1716
      %v1719 = vmul.f32 %v1709, %v1717
      %v1720 = vpack.c.bf16 %v1719, %v1718
      %1721 = vrot.lane.b32.xlu0 %v1526, 56
      %v1722 = vpop.permute.xlu0 %1721
      %v1725 = vsel %vm775, %v1720, 0
      %1727 = vmatprep.subr.bf16.mxu0 0
      %1728 = vmatpush1.bf16.msra.mxu0 %v1722
      %1729 = vmatprep.subr.bf16.mxu0 0
      %1730 = vmatpush1.bf16.msra.mxu0 0
      %1731 = vmatprep.subr.bf16.mxu0 0
      %1732 = vmatpush1.bf16.msra.mxu0 0
      %1733 = vmatprep.subr.bf16.mxu0 0
      %1734 = vmatpush1.bf16.msra.mxu0 0
      %1735 = vmatprep.subr.bf16.mxu0 0
      %1736 = vmatpush1.bf16.msra.mxu0 0
      %1737 = vmatprep.subr.bf16.mxu0 0
      %1738 = vmatpush1.bf16.msra.mxu0 0
      %1739 = vmatprep.subr.bf16.mxu0 0
      %1740 = vmatpush1.bf16.msra.mxu0 0
      %1741 = vmatprep.subr.bf16.mxu0 0
      %1742 = vmatpush1.bf16.msra.mxu0 0
      %1743 = vmatprep.subr.bf16.mxu0 0
      %1744 = vmatpush1.bf16.msra.mxu0 0
      %1745 = vmatprep.subr.bf16.mxu0 0
      %1746 = vmatpush1.bf16.msra.mxu0 0
      %1747 = vmatprep.subr.bf16.mxu0 0
      %1748 = vmatpush1.bf16.msra.mxu0 0
      %1749 = vmatprep.subr.bf16.mxu0 0
      %1750 = vmatpush1.bf16.msra.mxu0 0
      %1751 = vmatprep.subr.bf16.mxu0 0
      %1752 = vmatpush1.bf16.msra.mxu0 0
      %1753 = vmatprep.subr.bf16.mxu0 0
      %1754 = vmatpush1.bf16.msra.mxu0 0
      %1755 = vmatprep.subr.bf16.mxu0 0
      %1756 = vmatpush1.bf16.msra.mxu0 0
      %1757 = vmatprep.subr.bf16.mxu0 0
      %1758 = vmatpush1.bf16.msra.mxu0 0
      %1759 = vmatprep.mubr.bf16.mxu0 0
      %1760 = vmatmul.mubr.bf16.gmra.mrb[0].mxu0 %v1725
      %v1761 = vpop.f32.mrb[0].mxu0
      %v1762 = vadd.f32 0.0, %v1761
      %v1763 = vpop.f32.mrb[0].mxu0
      %v1764 = vpop.f32.mrb[0].mxu0
      %v1765 = vadd.f32 0.0, %v1764
      %v1766 = vpop.f32.mrb[0].mxu0
      %1767 = vdwg.mxu0
      %1768 = vrot.lane.b32.xlu0 %v1526, 112
      %v1769 = vpop.permute.xlu0 %1768
      %1770 = vrot.lane.b32.xlu0 %v1526, 80
      %v1771 = vpop.permute.xlu0 %1770
      %v1773 = vsel %vm770, %v1769, 0
      %v1776 = vsel %vm770, %v1771, 0
      %1778 = vmatprep.subr.bf16.mxu0 0
      %1779 = vmatpush1.bf16.xpose.msra.mxu0 %v1776
      %1780 = vmatprep.subr.bf16.mxu0 0
      %1781 = vmatpush1.bf16.xpose.msra.mxu0 0
      %1782 = vmatprep.subr.bf16.mxu0 0
      %1783 = vmatpush1.bf16.xpose.msra.mxu0 0
      %1784 = vmatprep.subr.bf16.mxu0 0
      %1785 = vmatpush1.bf16.xpose.msra.mxu0 0
      %1786 = vmatprep.subr.bf16.mxu0 0
      %1787 = vmatpush1.bf16.xpose.msra.mxu0 0
      %1788 = vmatprep.subr.bf16.mxu0 0
      %1789 = vmatpush1.bf16.xpose.msra.mxu0 0
      %1790 = vmatprep.subr.bf16.mxu0 0
      %1791 = vmatpush1.bf16.xpose.msra.mxu0 0
      %1792 = vmatprep.subr.bf16.mxu0 0
      %1793 = vmatpush1.bf16.xpose.msra.mxu0 0
      %1794 = vmatprep.subr.bf16.mxu0 0
      %1795 = vmatpush1.bf16.xpose.msra.mxu0 0
      %1796 = vmatprep.subr.bf16.mxu0 0
      %1797 = vmatpush1.bf16.xpose.msra.mxu0 0
      %1798 = vmatprep.subr.bf16.mxu0 0
      %1799 = vmatpush1.bf16.xpose.msra.mxu0 0
      %1800 = vmatprep.subr.bf16.mxu0 0
      %1801 = vmatpush1.bf16.xpose.msra.mxu0 0
      %1802 = vmatprep.subr.bf16.mxu0 0
      %1803 = vmatpush1.bf16.xpose.msra.mxu0 0
      %1804 = vmatprep.subr.bf16.mxu0 0
      %1805 = vmatpush1.bf16.xpose.msra.mxu0 0
      %1806 = vmatprep.subr.bf16.mxu0 0
      %1807 = vmatpush1.bf16.xpose.msra.mxu0 0
      %1808 = vmatprep.subr.bf16.mxu0 0
      %1809 = vmatpush1.bf16.xpose.msra.mxu0 0
      %1810 = vmatprep.mubr.bf16.mxu0 0
      %1811 = vmatmul.mubr.bf16.gmra.mrb[0].mxu0 %v1773
      %v1812 = vpop.f32.mrb[0].mxu0
      %v1813 = vadd.f32 0.0, %v1812
      %v1814 = vpop.f32.mrb[0].mxu0
      %v1815 = vpop.f32.mrb[0].mxu0
      %v1816 = vadd.f32 0.0, %v1815
      %v1817 = vpop.f32.mrb[0].mxu0
      %1818 = vdwg.mxu0
      %v1819 = vsel %vm775, %v1813, -inf
      %1820 = vmax.xlane.f32.xlu0 %v1819
      %v1821 = vpop.xlane.xlu0 %1820
      %v1822 = vsel %vm775, %v1816, -inf
      %1823 = vmax.xlane.f32.xlu0 %v1822
      %v1824 = vpop.xlane.xlu0 %1823
      %v1825 = vsub.f32 %v1813, %v1821
      %v1826 = vsub.f32 %v1816, %v1824
      %v1827 = vmul.f32 %v1825, 1.442695
      %v1828 = vpow.pop %v1827
      %v1829 = vmul.f32 %v1826, 1.442695
      %v1830 = vpow.pop %v1829
      %v1831 = vsel %vm775, %v1828, 0.0
      %1832 = vadd.xlane.f32.xlu0 %v1831
      %v1833 = vpop.xlane.xlu0 %1832
      %v1834 = vsel %vm775, %v1830, 0.0
      %1835 = vadd.xlane.f32.xlu0 %v1834
      %v1836 = vpop.xlane.xlu0 %1835
      %v1837 = vrcp.pop %v1833
      %v1838 = vrcp.pop %v1836
      %v1839 = vmul.f32 %v1828, %v1837
      %v1840 = vmul.f32 %v1830, %v1838
      %v1841 = vpack.c.bf16 %v1840, %v1839
      %1842 = vrot.lane.b32.xlu0 %v1526, 48
      %v1843 = vpop.permute.xlu0 %1842
      %v1846 = vsel %vm775, %v1841, 0
      %1848 = vmatprep.subr.bf16.mxu0 0
      %1849 = vmatpush1.bf16.msra.mxu0 %v1843
      %1850 = vmatprep.subr.bf16.mxu0 0
      %1851 = vmatpush1.bf16.msra.mxu0 0
      %1852 = vmatprep.subr.bf16.mxu0 0
      %1853 = vmatpush1.bf16.msra.mxu0 0
      %1854 = vmatprep.subr.bf16.mxu0 0
      %1855 = vmatpush1.bf16.msra.mxu0 0
      %1856 = vmatprep.subr.bf16.mxu0 0
      %1857 = vmatpush1.bf16.msra.mxu0 0
      %1858 = vmatprep.subr.bf16.mxu0 0
      %1859 = vmatpush1.bf16.msra.mxu0 0
      %1860 = vmatprep.subr.bf16.mxu0 0
      %1861 = vmatpush1.bf16.msra.mxu0 0
      %1862 = vmatprep.subr.bf16.mxu0 0
      %1863 = vmatpush1.bf16.msra.mxu0 0
      %1864 = vmatprep.subr.bf16.mxu0 0
      %1865 = vmatpush1.bf16.msra.mxu0 0
      %1866 = vmatprep.subr.bf16.mxu0 0
      %1867 = vmatpush1.bf16.msra.mxu0 0
      %1868 = vmatprep.subr.bf16.mxu0 0
      %1869 = vmatpush1.bf16.msra.mxu0 0
      %1870 = vmatprep.subr.bf16.mxu0 0
      %1871 = vmatpush1.bf16.msra.mxu0 0
      %1872 = vmatprep.subr.bf16.mxu0 0
      %1873 = vmatpush1.bf16.msra.mxu0 0
      %1874 = vmatprep.subr.bf16.mxu0 0
      %1875 = vmatpush1.bf16.msra.mxu0 0
      %1876 = vmatprep.subr.bf16.mxu0 0
      %1877 = vmatpush1.bf16.msra.mxu0 0
      %1878 = vmatprep.subr.bf16.mxu0 0
      %1879 = vmatpush1.bf16.msra.mxu0 0
      %1880 = vmatprep.mubr.bf16.mxu0 0
      %1881 = vmatmul.mubr.bf16.gmra.mrb[0].mxu0 %v1846
      %v1882 = vpop.f32.mrb[0].mxu0
      %v1883 = vadd.f32 0.0, %v1882
      %v1884 = vpop.f32.mrb[0].mxu0
      %v1885 = vpop.f32.mrb[0].mxu0
      %v1886 = vadd.f32 0.0, %v1885
      %v1887 = vpop.f32.mrb[0].mxu0
      %1888 = vdwg.mxu0
      %1889 = vrot.lane.b32.xlu0 %v1526, 104
      %v1890 = vpop.permute.xlu0 %1889
      %1891 = vrot.lane.b32.xlu0 %v1526, 72
      %v1892 = vpop.permute.xlu0 %1891
      %v1894 = vsel %vm770, %v1890, 0
      %v1897 = vsel %vm770, %v1892, 0
      %1899 = vmatprep.subr.bf16.mxu0 0
      %1900 = vmatpush1.bf16.xpose.msra.mxu0 %v1897
      %1901 = vmatprep.subr.bf16.mxu0 0
      %1902 = vmatpush1.bf16.xpose.msra.mxu0 0
      %1903 = vmatprep.subr.bf16.mxu0 0
      %1904 = vmatpush1.bf16.xpose.msra.mxu0 0
      %1905 = vmatprep.subr.bf16.mxu0 0
      %1906 = vmatpush1.bf16.xpose.msra.mxu0 0
      %1907 = vmatprep.subr.bf16.mxu0 0
      %1908 = vmatpush1.bf16.xpose.msra.mxu0 0
      %1909 = vmatprep.subr.bf16.mxu0 0
      %1910 = vmatpush1.bf16.xpose.msra.mxu0 0
      %1911 = vmatprep.subr.bf16.mxu0 0
      %1912 = vmatpush1.bf16.xpose.msra.mxu0 0
      %1913 = vmatprep.subr.bf16.mxu0 0
      %1914 = vmatpush1.bf16.xpose.msra.mxu0 0
      %1915 = vmatprep.subr.bf16.mxu0 0
      %1916 = vmatpush1.bf16.xpose.msra.mxu0 0
      %1917 = vmatprep.subr.bf16.mxu0 0
      %1918 = vmatpush1.bf16.xpose.msra.mxu0 0
      %1919 = vmatprep.subr.bf16.mxu0 0
      %1920 = vmatpush1.bf16.xpose.msra.mxu0 0
      %1921 = vmatprep.subr.bf16.mxu0 0
      %1922 = vmatpush1.bf16.xpose.msra.mxu0 0
      %1923 = vmatprep.subr.bf16.mxu0 0
      %1924 = vmatpush1.bf16.xpose.msra.mxu0 0
      %1925 = vmatprep.subr.bf16.mxu0 0
      %1926 = vmatpush1.bf16.xpose.msra.mxu0 0
      %1927 = vmatprep.subr.bf16.mxu0 0
      %1928 = vmatpush1.bf16.xpose.msra.mxu0 0
      %1929 = vmatprep.subr.bf16.mxu0 0
      %1930 = vmatpush1.bf16.xpose.msra.mxu0 0
      %1931 = vmatprep.mubr.bf16.mxu0 0
      %1932 = vmatmul.mubr.bf16.gmra.mrb[0].mxu0 %v1894
      %v1933 = vpop.f32.mrb[0].mxu0
      %v1934 = vadd.f32 0.0, %v1933
      %v1935 = vpop.f32.mrb[0].mxu0
      %v1936 = vpop.f32.mrb[0].mxu0
      %v1937 = vadd.f32 0.0, %v1936
      %v1938 = vpop.f32.mrb[0].mxu0
      %1939 = vdwg.mxu0
      %v1940 = vsel %vm775, %v1934, -inf
      %1941 = vmax.xlane.f32.xlu0 %v1940
      %v1942 = vpop.xlane.xlu0 %1941
      %v1943 = vsel %vm775, %v1937, -inf
      %1944 = vmax.xlane.f32.xlu0 %v1943
      %v1945 = vpop.xlane.xlu0 %1944
      %v1946 = vsub.f32 %v1934, %v1942
      %v1947 = vsub.f32 %v1937, %v1945
      %v1948 = vmul.f32 %v1946, 1.442695
      %v1949 = vpow.pop %v1948
      %v1950 = vmul.f32 %v1947, 1.442695
      %v1951 = vpow.pop %v1950
      %v1952 = vsel %vm775, %v1949, 0.0
      %1953 = vadd.xlane.f32.xlu0 %v1952
      %v1954 = vpop.xlane.xlu0 %1953
      %v1955 = vsel %vm775, %v1951, 0.0
      %1956 = vadd.xlane.f32.xlu0 %v1955
      %v1957 = vpop.xlane.xlu0 %1956
      %v1958 = vrcp.pop %v1954
      %v1959 = vrcp.pop %v1957
      %v1960 = vmul.f32 %v1949, %v1958
      %v1961 = vmul.f32 %v1951, %v1959
      %v1962 = vpack.c.bf16 %v1961, %v1960
      %1963 = vrot.lane.b32.xlu0 %v1526, 40
      %v1964 = vpop.permute.xlu0 %1963
      %v1967 = vsel %vm775, %v1962, 0
      %1969 = vmatprep.subr.bf16.mxu0 0
      %1970 = vmatpush1.bf16.msra.mxu0 %v1964
      %1971 = vmatprep.subr.bf16.mxu0 0
      %1972 = vmatpush1.bf16.msra.mxu0 0
      %1973 = vmatprep.subr.bf16.mxu0 0
      %1974 = vmatpush1.bf16.msra.mxu0 0
      %1975 = vmatprep.subr.bf16.mxu0 0
      %1976 = vmatpush1.bf16.msra.mxu0 0
      %1977 = vmatprep.subr.bf16.mxu0 0
      %1978 = vmatpush1.bf16.msra.mxu0 0
      %1979 = vmatprep.subr.bf16.mxu0 0
      %1980 = vmatpush1.bf16.msra.mxu0 0
      %1981 = vmatprep.subr.bf16.mxu0 0
      %1982 = vmatpush1.bf16.msra.mxu0 0
      %1983 = vmatprep.subr.bf16.mxu0 0
      %1984 = vmatpush1.bf16.msra.mxu0 0
      %1985 = vmatprep.subr.bf16.mxu0 0
      %1986 = vmatpush1.bf16.msra.mxu0 0
      %1987 = vmatprep.subr.bf16.mxu0 0
      %1988 = vmatpush1.bf16.msra.mxu0 0
      %1989 = vmatprep.subr.bf16.mxu0 0
      %1990 = vmatpush1.bf16.msra.mxu0 0
      %1991 = vmatprep.subr.bf16.mxu0 0
      %1992 = vmatpush1.bf16.msra.mxu0 0
      %1993 = vmatprep.subr.bf16.mxu0 0
      %1994 = vmatpush1.bf16.msra.mxu0 0
      %1995 = vmatprep.subr.bf16.mxu0 0
      %1996 = vmatpush1.bf16.msra.mxu0 0
      %1997 = vmatprep.subr.bf16.mxu0 0
      %1998 = vmatpush1.bf16.msra.mxu0 0
      %1999 = vmatprep.subr.bf16.mxu0 0
      %2000 = vmatpush1.bf16.msra.mxu0 0
      %2001 = vmatprep.mubr.bf16.mxu0 0
      %2002 = vmatmul.mubr.bf16.gmra.mrb[0].mxu0 %v1967
      %v2003 = vpop.f32.mrb[0].mxu0
      %v2004 = vadd.f32 0.0, %v2003
      %v2005 = vpop.f32.mrb[0].mxu0
      %v2006 = vpop.f32.mrb[0].mxu0
      %v2007 = vadd.f32 0.0, %v2006
      %v2008 = vpop.f32.mrb[0].mxu0
      %2009 = vdwg.mxu0
      %2012 = vrot.lane.b32.xlu0 %v1762, 8
      %v2013 = vpop.permute.xlu0 %2012
      %2014 = vrot.lane.b32.xlu0 %v1765, 8
      %v2015 = vpop.permute.xlu0 %2014
      %2020 = vrot.lane.b32.xlu0 %v1883, 16
      %v2021 = vpop.permute.xlu0 %2020
      %2022 = vrot.lane.b32.xlu0 %v1886, 16
      %v2023 = vpop.permute.xlu0 %2022
      %2028 = vrot.lane.b32.xlu0 %v2004, 24
      %v2029 = vpop.permute.xlu0 %2028
      %2030 = vrot.lane.b32.xlu0 %v2007, 24
      %v2031 = vpop.permute.xlu0 %2030
      %v2034 = vsel %vm770, %v1641, %v2013
      %v2035 = vsel %vm770, %v1644, %v2015
      %v2036 = vsel %vm775, %v2034, %v2021
      %v2037 = vsel %vm775, %v2035, %v2023
      %v2038 = vsel %vm794, %v2036, %v2029
      %v2039 = vsel %vm794, %v2037, %v2031
      %v2040 = vld [vmem:[%s8] sm:$0xff]
      %v2041 = vld [vmem:[%s8 + $0x8] sm:$0xff]
      %v2042 = vld [vmem:[%s8 + $0x10] sm:$0xff]
      %v2043 = vld [vmem:[%s8 + $0x18] sm:$0xff]
      %v2044 = vpack.c.bf16 %v1525, %v1524
      %v2045 = vpack.c.bf16 %v2039, %v2038
      %v2046 = vpack.c.bf16 %v2041, %v2040
      %v2047 = vpack.c.bf16 %v2043, %v2042
      %v2049 = vsel %vm868, %v2044, 0
      %v2052 = vsel %vm868, %v2045, 0
      %2054 = vmatprep.subr.bf16.mxu0 0
      %2055 = vmatpush1.bf16.msra.mxu0 %v2046
      %2056 = vmatprep.subr.bf16.mxu0 0
      %2057 = vmatpush1.bf16.msra.mxu0 %v2047
      %2058 = vmatprep.subr.bf16.mxu0 0
      %2059 = vmatpush1.bf16.msra.mxu0 0
      %2060 = vmatprep.subr.bf16.mxu0 0
      %2061 = vmatpush1.bf16.msra.mxu0 0
      %2062 = vmatprep.subr.bf16.mxu0 0
      %2063 = vmatpush1.bf16.msra.mxu0 0
      %2064 = vmatprep.subr.bf16.mxu0 0
      %2065 = vmatpush1.bf16.msra.mxu0 0
      %2066 = vmatprep.subr.bf16.mxu0 0
      %2067 = vmatpush1.bf16.msra.mxu0 0
      %2068 = vmatprep.subr.bf16.mxu0 0
      %2069 = vmatpush1.bf16.msra.mxu0 0
      %2070 = vmatprep.subr.bf16.mxu0 0
      %2071 = vmatpush1.bf16.msra.mxu0 0
      %2072 = vmatprep.subr.bf16.mxu0 0
      %2073 = vmatpush1.bf16.msra.mxu0 0
      %2074 = vmatprep.subr.bf16.mxu0 0
      %2075 = vmatpush1.bf16.msra.mxu0 0
      %2076 = vmatprep.subr.bf16.mxu0 0
      %2077 = vmatpush1.bf16.msra.mxu0 0
      %2078 = vmatprep.subr.bf16.mxu0 0
      %2079 = vmatpush1.bf16.msra.mxu0 0
      %2080 = vmatprep.subr.bf16.mxu0 0
      %2081 = vmatpush1.bf16.msra.mxu0 0
      %2082 = vmatprep.subr.bf16.mxu0 0
      %2083 = vmatpush1.bf16.msra.mxu0 0
      %2084 = vmatprep.subr.bf16.mxu0 0
      %2085 = vmatpush1.bf16.msra.mxu0 0
      %2086 = vmatprep.mubr.bf16.mxu0 0
      %2087 = vmatmul.mubr.bf16.gmra.mrb[0].mxu0 %v2049
      %v2088 = vpop.f32.mrb[0].mxu0
      %v2089 = vadd.f32 0.0, %v2088
      %v2090 = vpop.f32.mrb[0].mxu0
      %v2091 = vpop.f32.mrb[0].mxu0
      %v2092 = vadd.f32 0.0, %v2091
      %v2093 = vpop.f32.mrb[0].mxu0
      %2094 = vmatprep.mubr.bf16.mxu0 0
      %2095 = vmatmul.mubr.bf16.gmra.mrb[0].mxu0 %v2052
      %v2096 = vpop.f32.mrb[0].mxu0
      %v2097 = vadd.f32 0.0, %v2096
      %v2098 = vpop.f32.mrb[0].mxu0
      %v2099 = vpop.f32.mrb[0].mxu0
      %v2100 = vadd.f32 0.0, %v2099
      %v2101 = vpop.f32.mrb[0].mxu0
      %2102 = vdwg.mxu0
      %v2103 = vadd.f32 %v862, %v2089
      %v2104 = vadd.f32 %v863, %v2092
      %v2105 = vadd.f32 %v864, %v2097
      %v2106 = vadd.f32 %v865, %v2100
      %v2107 = vld [vmem:[%s9] sm:$0x1]
      %v2109 = vlaneseq
      %v2110 = vshrl.u32 %v2109, 7
      %v2111 = vsub.s32 0, %v2110
      %v2112 = vrot.slane %v2107, %v2111
      %v2114 = vadd.f32 %v2103, %v2112
      %v2115 = vadd.f32 %v2104, %v2112
      %v2116 = vadd.f32 %v2105, %v2112
      %v2117 = vadd.f32 %v2106, %v2112
      %v2118 = vld [vmem:[%s10] sm:$0x1]
      %v2119 = vld [vmem:[%s11] sm:$0x1]
      %v2120 = vsel %vm868, %v2114, 0.0
      %2121 = vadd.xlane.f32.xlu0 %v2120
      %v2122 = vpop.xlane.xlu0 %2121
      %v2123 = vsel %vm868, %v2115, 0.0
      %2124 = vadd.xlane.f32.xlu0 %v2123
      %v2125 = vpop.xlane.xlu0 %2124
      %v2126 = vsel %vm868, %v2116, 0.0
      %2127 = vadd.xlane.f32.xlu0 %v2126
      %v2128 = vpop.xlane.xlu0 %2127
      %v2129 = vsel %vm868, %v2117, 0.0
      %2130 = vadd.xlane.f32.xlu0 %v2129
      %v2131 = vpop.xlane.xlu0 %2130
      %v2132 = vmul.f32 %v2122, %v881
      %v2133 = vmul.f32 %v2125, %v881
      %v2134 = vmul.f32 %v2128, %v881
      %v2135 = vmul.f32 %v2131, %v881
      %v2136 = vsub.f32 %v2114, %v2132
      %v2137 = vsub.f32 %v2115, %v2133
      %v2138 = vsub.f32 %v2116, %v2134
      %v2139 = vsub.f32 %v2117, %v2135
      %v2140 = vmul.f32 %v2136, %v2136
      %v2141 = vmul.f32 %v2137, %v2137
      %v2142 = vmul.f32 %v2138, %v2138
      %v2143 = vmul.f32 %v2139, %v2139
      %v2144 = vsel %vm868, %v2140, 0.0
      %2145 = vadd.xlane.f32.xlu0 %v2144
      %v2146 = vpop.xlane.xlu0 %2145
      %v2147 = vsel %vm868, %v2141, 0.0
      %2148 = vadd.xlane.f32.xlu0 %v2147
      %v2149 = vpop.xlane.xlu0 %2148
      %v2150 = vsel %vm868, %v2142, 0.0
      %2151 = vadd.xlane.f32.xlu0 %v2150
      %v2152 = vpop.xlane.xlu0 %2151
      %v2153 = vsel %vm868, %v2143, 0.0
      %2154 = vadd.xlane.f32.xlu0 %v2153
      %v2155 = vpop.xlane.xlu0 %2154
      %v2156 = vmul.f32 %v2146, %v881
      %v2157 = vmul.f32 %v2149, %v881
      %v2158 = vmul.f32 %v2152, %v881
      %v2159 = vmul.f32 %v2155, %v881
      %v2160 = vadd.f32 %v2156, 1e-05
      %v2161 = vadd.f32 %v2157, 1e-05
      %v2162 = vadd.f32 %v2158, 1e-05
      %v2163 = vadd.f32 %v2159, 1e-05
      %v2164 = vrsqrt.pop %v2160
      %v2165 = vrsqrt.pop %v2161
      %v2166 = vrsqrt.pop %v2162
      %v2167 = vrsqrt.pop %v2163
      %v2168 = vmul.f32 %v2136, %v2164
      %v2169 = vmul.f32 %v2137, %v2165
      %v2170 = vmul.f32 %v2138, %v2166
      %v2171 = vmul.f32 %v2139, %v2167
      %v2173 = vlaneseq
      %v2174 = vshrl.u32 %v2173, 7
      %v2175 = vsub.s32 0, %v2174
      %v2176 = vrot.slane %v2118, %v2175
      %v2178 = vmul.f32 %v2168, %v2176
      %v2179 = vmul.f32 %v2169, %v2176
      %v2180 = vmul.f32 %v2170, %v2176
      %v2181 = vmul.f32 %v2171, %v2176
      %v2183 = vlaneseq
      %v2184 = vshrl.u32 %v2183, 7
      %v2185 = vsub.s32 0, %v2184
      %v2186 = vrot.slane %v2119, %v2185
      %v2188 = vadd.f32 %v2178, %v2186
      %v2189 = vadd.f32 %v2179, %v2186
      %v2190 = vadd.f32 %v2180, %v2186
      %v2191 = vadd.f32 %v2181, %v2186
      %v2192 = vld [vmem:[%s12] sm:$0xff]
      %v2193 = vld [vmem:[%s12 + $0x8] sm:$0xff]
      %v2194 = vld [vmem:[%s12 + $0x10] sm:$0xff]
      %v2195 = vld [vmem:[%s12 + $0x18] sm:$0xff]
      %v2196 = vpack.c.bf16 %v2189, %v2188
      %v2197 = vpack.c.bf16 %v2191, %v2190
      %v2198 = vpack.c.bf16 %v2193, %v2192
      %v2199 = vpack.c.bf16 %v2195, %v2194
      %v2200 = vld [vmem:[%s13] sm:$0x1]
      %v2202 = vlaneseq
      %v2203 = vshrl.u32 %v2202, 7
      %v2204 = vsub.s32 0, %v2203
      %v2205 = vrot.slane %v2200, %v2204
      %v2208 = vsel %vm868, %v2196, 0
      %v2211 = vsel %vm868, %v2197, 0
      %2213 = vmatprep.subr.bf16.mxu0 0
      %2214 = vmatpush1.bf16.msra.mxu0 %v2198
      %2215 = vmatprep.subr.bf16.mxu0 0
      %2216 = vmatpush1.bf16.msra.mxu0 %v2199
      %2217 = vmatprep.subr.bf16.mxu0 0
      %2218 = vmatpush1.bf16.msra.mxu0 0
      %2219 = vmatprep.subr.bf16.mxu0 0
      %2220 = vmatpush1.bf16.msra.mxu0 0
      %2221 = vmatprep.subr.bf16.mxu0 0
      %2222 = vmatpush1.bf16.msra.mxu0 0
      %2223 = vmatprep.subr.bf16.mxu0 0
      %2224 = vmatpush1.bf16.msra.mxu0 0
      %2225 = vmatprep.subr.bf16.mxu0 0
      %2226 = vmatpush1.bf16.msra.mxu0 0
      %2227 = vmatprep.subr.bf16.mxu0 0
      %2228 = vmatpush1.bf16.msra.mxu0 0
      %2229 = vmatprep.subr.bf16.mxu0 0
      %2230 = vmatpush1.bf16.msra.mxu0 0
      %2231 = vmatprep.subr.bf16.mxu0 0
      %2232 = vmatpush1.bf16.msra.mxu0 0
      %2233 = vmatprep.subr.bf16.mxu0 0
      %2234 = vmatpush1.bf16.msra.mxu0 0
      %2235 = vmatprep.subr.bf16.mxu0 0
      %2236 = vmatpush1.bf16.msra.mxu0 0
      %2237 = vmatprep.subr.bf16.mxu0 0
      %2238 = vmatpush1.bf16.msra.mxu0 0
      %2239 = vmatprep.subr.bf16.mxu0 0
      %2240 = vmatpush1.bf16.msra.mxu0 0
      %2241 = vmatprep.subr.bf16.mxu0 0
      %2242 = vmatpush1.bf16.msra.mxu0 0
      %2243 = vmatprep.subr.bf16.mxu0 0
      %2244 = vmatpush1.bf16.msra.mxu0 0
      %2245 = vmatprep.mubr.bf16.mxu0 0
      %2246 = vmatmul.mubr.bf16.gmra.mrb[0].mxu0 %v2208
      %v2247 = vpop.f32.mrb[0].mxu0
      %v2248 = vadd.f32 %v2205, %v2247
      %v2249 = vpop.f32.mrb[0].mxu0
      %v2250 = vpop.f32.mrb[0].mxu0
      %v2251 = vadd.f32 %v2205, %v2250
      %v2252 = vpop.f32.mrb[0].mxu0
      %2253 = vmatprep.mubr.bf16.mxu0 0
      %2254 = vmatmul.mubr.bf16.gmra.mrb[0].mxu0 %v2211
      %v2255 = vpop.f32.mrb[0].mxu0
      %v2256 = vadd.f32 %v2205, %v2255
      %v2257 = vpop.f32.mrb[0].mxu0
      %v2258 = vpop.f32.mrb[0].mxu0
      %v2259 = vadd.f32 %v2205, %v2258
      %v2260 = vpop.f32.mrb[0].mxu0
      %2261 = vdwg.mxu0
      %v2262 = vmax.f32 %v2248, 0.0
      %v2263 = vmax.f32 %v2251, 0.0
      %v2264 = vmax.f32 %v2256, 0.0
      %v2265 = vmax.f32 %v2259, 0.0
      %v2266 = vld [vmem:[%s14] sm:$0xff]
      %v2267 = vld [vmem:[%s14 + $0x8] sm:$0xff]
      %v2268 = vld [vmem:[%s14 + $0x10] sm:$0xff]
      %v2269 = vld [vmem:[%s14 + $0x18] sm:$0xff]
      %v2270 = vld [vmem:[%s14 + $0x20] sm:$0xff]
      %v2271 = vld [vmem:[%s14 + $0x28] sm:$0xff]
      %v2272 = vld [vmem:[%s14 + $0x30] sm:$0xff]
      %v2273 = vld [vmem:[%s14 + $0x38] sm:$0xff]
      %v2274 = vpack.c.bf16 %v2263, %v2262
      %v2275 = vpack.c.bf16 %v2265, %v2264
      %v2276 = vpack.c.bf16 %v2267, %v2266
      %v2277 = vpack.c.bf16 %v2269, %v2268
      %v2278 = vpack.c.bf16 %v2271, %v2270
      %v2279 = vpack.c.bf16 %v2273, %v2272
      %vm2280 = vcmask 523264
      %v2282 = vsel %vm2280, %v2274, 0
      %v2285 = vsel %vm2280, %v2275, 0
      %2287 = vmatprep.subr.bf16.mxu0 0
      %2288 = vmatpush1.bf16.msra.mxu0 %v2276
      %2289 = vmatprep.subr.bf16.mxu0 0
      %2290 = vmatpush1.bf16.msra.mxu0 %v2277
      %2291 = vmatprep.subr.bf16.mxu0 0
      %2292 = vmatpush1.bf16.msra.mxu0 %v2278
      %2293 = vmatprep.subr.bf16.mxu0 0
      %2294 = vmatpush1.bf16.msra.mxu0 %v2279
      %2295 = vmatprep.subr.bf16.mxu0 0
      %2296 = vmatpush1.bf16.msra.mxu0 0
      %2297 = vmatprep.subr.bf16.mxu0 0
      %2298 = vmatpush1.bf16.msra.mxu0 0
      %2299 = vmatprep.subr.bf16.mxu0 0
      %2300 = vmatpush1.bf16.msra.mxu0 0
      %2301 = vmatprep.subr.bf16.mxu0 0
      %2302 = vmatpush1.bf16.msra.mxu0 0
      %2303 = vmatprep.subr.bf16.mxu0 0
      %2304 = vmatpush1.bf16.msra.mxu0 0
      %2305 = vmatprep.subr.bf16.mxu0 0
      %2306 = vmatpush1.bf16.msra.mxu0 0
      %2307 = vmatprep.subr.bf16.mxu0 0
      %2308 = vmatpush1.bf16.msra.mxu0 0
      %2309 = vmatprep.subr.bf16.mxu0 0
      %2310 = vmatpush1.bf16.msra.mxu0 0
      %2311 = vmatprep.subr.bf16.mxu0 0
      %2312 = vmatpush1.bf16.msra.mxu0 0
      %2313 = vmatprep.subr.bf16.mxu0 0
      %2314 = vmatpush1.bf16.msra.mxu0 0
      %2315 = vmatprep.subr.bf16.mxu0 0
      %2316 = vmatpush1.bf16.msra.mxu0 0
      %2317 = vmatprep.subr.bf16.mxu0 0
      %2318 = vmatpush1.bf16.msra.mxu0 0
      %2319 = vmatprep.mubr.bf16.mxu0 0
      %2320 = vmatmul.mubr.bf16.gmra.mrb[0].mxu0 %v2282
      %v2321 = vpop.f32.mrb[0].mxu0
      %v2322 = vadd.f32 0.0, %v2321
      %v2323 = vpop.f32.mrb[0].mxu0
      %v2324 = vpop.f32.mrb[0].mxu0
      %v2325 = vadd.f32 0.0, %v2324
      %v2326 = vpop.f32.mrb[0].mxu0
      %2327 = vmatprep.mubr.bf16.mxu0 0
      %2328 = vmatmul.mubr.bf16.gmra.mrb[0].mxu0 %v2285
      %v2329 = vpop.f32.mrb[0].mxu0
      %v2330 = vadd.f32 0.0, %v2329
      %v2331 = vpop.f32.mrb[0].mxu0
      %v2332 = vpop.f32.mrb[0].mxu0
      %v2333 = vadd.f32 0.0, %v2332
      %v2334 = vpop.f32.mrb[0].mxu0
      %2335 = vdwg.mxu0
      %v2336 = vadd.f32 %v2114, %v2322
      %v2337 = vadd.f32 %v2115, %v2325
      %v2338 = vadd.f32 %v2116, %v2330
      %v2339 = vadd.f32 %v2117, %v2333
      %v2340 = vld [vmem:[%s15] sm:$0x1]
      %v2342 = vlaneseq
      %v2343 = vshrl.u32 %v2342, 7
      %v2344 = vsub.s32 0, %v2343
      %v2345 = vrot.slane %v2340, %v2344
      %v2347 = vadd.f32 %v2336, %v2345
      %v2348 = vadd.f32 %v2337, %v2345
      %v2349 = vadd.f32 %v2338, %v2345
      %v2350 = vadd.f32 %v2339, %v2345
      %s2351 = scalar_lea.vmem %s4, 1
      %v2352 = vld [vmem:[%s2351] sm:$0x1]
      %s2353 = scalar_lea.vmem %s5, 1
      %v2354 = vld [vmem:[%s2353] sm:$0x1]
      %v2355 = vsel %vm868, %v2347, 0.0
      %2356 = vadd.xlane.f32.xlu0 %v2355
      %v2357 = vpop.xlane.xlu0 %2356
      %v2358 = vsel %vm868, %v2348, 0.0
      %2359 = vadd.xlane.f32.xlu0 %v2358
      %v2360 = vpop.xlane.xlu0 %2359
      %v2361 = vsel %vm868, %v2349, 0.0
      %2362 = vadd.xlane.f32.xlu0 %v2361
      %v2363 = vpop.xlane.xlu0 %2362
      %v2364 = vsel %vm868, %v2350, 0.0
      %2365 = vadd.xlane.f32.xlu0 %v2364
      %v2366 = vpop.xlane.xlu0 %2365
      %v2367 = vmul.f32 %v2357, %v881
      %v2368 = vmul.f32 %v2360, %v881
      %v2369 = vmul.f32 %v2363, %v881
      %v2370 = vmul.f32 %v2366, %v881
      %v2371 = vsub.f32 %v2347, %v2367
      %v2372 = vsub.f32 %v2348, %v2368
      %v2373 = vsub.f32 %v2349, %v2369
      %v2374 = vsub.f32 %v2350, %v2370
      %v2375 = vmul.f32 %v2371, %v2371
      %v2376 = vmul.f32 %v2372, %v2372
      %v2377 = vmul.f32 %v2373, %v2373
      %v2378 = vmul.f32 %v2374, %v2374
      %v2379 = vsel %vm868, %v2375, 0.0
      %2380 = vadd.xlane.f32.xlu0 %v2379
      %v2381 = vpop.xlane.xlu0 %2380
      %v2382 = vsel %vm868, %v2376, 0.0
      %2383 = vadd.xlane.f32.xlu0 %v2382
      %v2384 = vpop.xlane.xlu0 %2383
      %v2385 = vsel %vm868, %v2377, 0.0
      %2386 = vadd.xlane.f32.xlu0 %v2385
      %v2387 = vpop.xlane.xlu0 %2386
      %v2388 = vsel %vm868, %v2378, 0.0
      %2389 = vadd.xlane.f32.xlu0 %v2388
      %v2390 = vpop.xlane.xlu0 %2389
      %v2391 = vmul.f32 %v2381, %v881
      %v2392 = vmul.f32 %v2384, %v881
      %v2393 = vmul.f32 %v2387, %v881
      %v2394 = vmul.f32 %v2390, %v881
      %v2395 = vadd.f32 %v2391, 1e-05
      %v2396 = vadd.f32 %v2392, 1e-05
      %v2397 = vadd.f32 %v2393, 1e-05
      %v2398 = vadd.f32 %v2394, 1e-05
      %v2399 = vrsqrt.pop %v2395
      %v2400 = vrsqrt.pop %v2396
      %v2401 = vrsqrt.pop %v2397
      %v2402 = vrsqrt.pop %v2398
      %v2403 = vmul.f32 %v2371, %v2399
      %v2404 = vmul.f32 %v2372, %v2400
      %v2405 = vmul.f32 %v2373, %v2401
      %v2406 = vmul.f32 %v2374, %v2402
      %v2408 = vlaneseq
      %v2409 = vshrl.u32 %v2408, 7
      %v2410 = vsub.s32 0, %v2409
      %v2411 = vrot.slane %v2352, %v2410
      %v2413 = vmul.f32 %v2403, %v2411
      %v2414 = vmul.f32 %v2404, %v2411
      %v2415 = vmul.f32 %v2405, %v2411
      %v2416 = vmul.f32 %v2406, %v2411
      %v2418 = vlaneseq
      %v2419 = vshrl.u32 %v2418, 7
      %v2420 = vsub.s32 0, %v2419
      %v2421 = vrot.slane %v2354, %v2420
      %v2423 = vadd.f32 %v2413, %v2421
      %v2424 = vadd.f32 %v2414, %v2421
      %v2425 = vadd.f32 %v2415, %v2421
      %v2426 = vadd.f32 %v2416, %v2421
      %s2427 = scalar_lea.vmem %s6, 32
      %v2428 = vld [vmem:[%s2427] sm:$0xff]
      %v2429 = vld [vmem:[%s2427 + $0x8] sm:$0xff]
      %v2430 = vld [vmem:[%s2427 + $0x10] sm:$0xff]
      %v2431 = vld [vmem:[%s2427 + $0x18] sm:$0xff]
      %v2432 = vpack.c.bf16 %v2424, %v2423
      %v2433 = vpack.c.bf16 %v2426, %v2425
      %v2434 = vpack.c.bf16 %v2429, %v2428
      %v2435 = vpack.c.bf16 %v2431, %v2430
      %s2436 = scalar_lea.vmem %s7, 1
      %v2437 = vld [vmem:[%s2436] sm:$0x1]
      %v2439 = vlaneseq
      %v2440 = vshrl.u32 %v2439, 7
      %v2441 = vsub.s32 0, %v2440
      %v2442 = vrot.slane %v2437, %v2441
      %v2445 = vsel %vm868, %v2432, 0
      %v2448 = vsel %vm868, %v2433, 0
      %2450 = vmatprep.subr.bf16.mxu0 0
      %2451 = vmatpush1.bf16.msra.mxu0 %v2434
      %2452 = vmatprep.subr.bf16.mxu0 0
      %2453 = vmatpush1.bf16.msra.mxu0 %v2435
      %2454 = vmatprep.subr.bf16.mxu0 0
      %2455 = vmatpush1.bf16.msra.mxu0 0
      %2456 = vmatprep.subr.bf16.mxu0 0
      %2457 = vmatpush1.bf16.msra.mxu0 0
      %2458 = vmatprep.subr.bf16.mxu0 0
      %2459 = vmatpush1.bf16.msra.mxu0 0
      %2460 = vmatprep.subr.bf16.mxu0 0
      %2461 = vmatpush1.bf16.msra.mxu0 0
      %2462 = vmatprep.subr.bf16.mxu0 0
      %2463 = vmatpush1.bf16.msra.mxu0 0
      %2464 = vmatprep.subr.bf16.mxu0 0
      %2465 = vmatpush1.bf16.msra.mxu0 0
      %2466 = vmatprep.subr.bf16.mxu0 0
      %2467 = vmatpush1.bf16.msra.mxu0 0
      %2468 = vmatprep.subr.bf16.mxu0 0
      %2469 = vmatpush1.bf16.msra.mxu0 0
      %2470 = vmatprep.subr.bf16.mxu0 0
      %2471 = vmatpush1.bf16.msra.mxu0 0
      %2472 = vmatprep.subr.bf16.mxu0 0
      %2473 = vmatpush1.bf16.msra.mxu0 0
      %2474 = vmatprep.subr.bf16.mxu0 0
      %2475 = vmatpush1.bf16.msra.mxu0 0
      %2476 = vmatprep.subr.bf16.mxu0 0
      %2477 = vmatpush1.bf16.msra.mxu0 0
      %2478 = vmatprep.subr.bf16.mxu0 0
      %2479 = vmatpush1.bf16.msra.mxu0 0
      %2480 = vmatprep.subr.bf16.mxu0 0
      %2481 = vmatpush1.bf16.msra.mxu0 0
      %2482 = vmatprep.mubr.bf16.mxu0 0
      %2483 = vmatmul.mubr.bf16.gmra.mrb[0].mxu0 %v2445
      %v2484 = vpop.f32.mrb[0].mxu0
      %v2485 = vadd.f32 %v2442, %v2484
      %v2486 = vpop.f32.mrb[0].mxu0
      %v2487 = vpop.f32.mrb[0].mxu0
      %v2488 = vadd.f32 %v2442, %v2487
      %v2489 = vpop.f32.mrb[0].mxu0
      %2490 = vmatprep.mubr.bf16.mxu0 0
      %2491 = vmatmul.mubr.bf16.gmra.mrb[0].mxu0 %v2448
      %v2492 = vpop.f32.mrb[0].mxu0
      %v2493 = vadd.f32 %v2442, %v2492
      %v2494 = vpop.f32.mrb[0].mxu0
      %v2495 = vpop.f32.mrb[0].mxu0
      %v2496 = vadd.f32 %v2442, %v2495
      %v2497 = vpop.f32.mrb[0].mxu0
      %2498 = vdwg.mxu0
      %v2499 = vpack.c.bf16 %v2488, %v2485
      %2501 = vrot.lane.b32.xlu0 %v2499, 96
      %v2502 = vpop.permute.xlu0 %2501
      %v2504 = vsel %vm770, %v2499, 0
      %v2507 = vsel %vm770, %v2502, 0
      %2509 = vmatprep.subr.bf16.mxu0 0
      %2510 = vmatpush1.bf16.xpose.msra.mxu0 %v2507
      %2511 = vmatprep.subr.bf16.mxu0 0
      %2512 = vmatpush1.bf16.xpose.msra.mxu0 0
      %2513 = vmatprep.subr.bf16.mxu0 0
      %2514 = vmatpush1.bf16.xpose.msra.mxu0 0
      %2515 = vmatprep.subr.bf16.mxu0 0
      %2516 = vmatpush1.bf16.xpose.msra.mxu0 0
      %2517 = vmatprep.subr.bf16.mxu0 0
      %2518 = vmatpush1.bf16.xpose.msra.mxu0 0
      %2519 = vmatprep.subr.bf16.mxu0 0
      %2520 = vmatpush1.bf16.xpose.msra.mxu0 0
      %2521 = vmatprep.subr.bf16.mxu0 0
      %2522 = vmatpush1.bf16.xpose.msra.mxu0 0
      %2523 = vmatprep.subr.bf16.mxu0 0
      %2524 = vmatpush1.bf16.xpose.msra.mxu0 0
      %2525 = vmatprep.subr.bf16.mxu0 0
      %2526 = vmatpush1.bf16.xpose.msra.mxu0 0
      %2527 = vmatprep.subr.bf16.mxu0 0
      %2528 = vmatpush1.bf16.xpose.msra.mxu0 0
      %2529 = vmatprep.subr.bf16.mxu0 0
      %2530 = vmatpush1.bf16.xpose.msra.mxu0 0
      %2531 = vmatprep.subr.bf16.mxu0 0
      %2532 = vmatpush1.bf16.xpose.msra.mxu0 0
      %2533 = vmatprep.subr.bf16.mxu0 0
      %2534 = vmatpush1.bf16.xpose.msra.mxu0 0
      %2535 = vmatprep.subr.bf16.mxu0 0
      %2536 = vmatpush1.bf16.xpose.msra.mxu0 0
      %2537 = vmatprep.subr.bf16.mxu0 0
      %2538 = vmatpush1.bf16.xpose.msra.mxu0 0
      %2539 = vmatprep.subr.bf16.mxu0 0
      %2540 = vmatpush1.bf16.xpose.msra.mxu0 0
      %2541 = vmatprep.mubr.bf16.mxu0 0
      %2542 = vmatmul.mubr.bf16.gmra.mrb[0].mxu0 %v2504
      %v2543 = vpop.f32.mrb[0].mxu0
      %v2544 = vadd.f32 0.0, %v2543
      %v2545 = vpop.f32.mrb[0].mxu0
      %v2546 = vpop.f32.mrb[0].mxu0
      %v2547 = vadd.f32 0.0, %v2546
      %v2548 = vpop.f32.mrb[0].mxu0
      %2549 = vdwg.mxu0
      %v2550 = vsel %vm775, %v2544, -inf
      %2551 = vmax.xlane.f32.xlu0 %v2550
      %v2552 = vpop.xlane.xlu0 %2551
      %v2553 = vsel %vm775, %v2547, -inf
      %2554 = vmax.xlane.f32.xlu0 %v2553
      %v2555 = vpop.xlane.xlu0 %2554
      %v2556 = vsub.f32 %v2544, %v2552
      %v2557 = vsub.f32 %v2547, %v2555
      %v2558 = vmul.f32 %v2556, 1.442695
      %v2559 = vpow.pop %v2558
      %v2560 = vmul.f32 %v2557, 1.442695
      %v2561 = vpow.pop %v2560
      %v2562 = vsel %vm775, %v2559, 0.0
      %2563 = vadd.xlane.f32.xlu0 %v2562
      %v2564 = vpop.xlane.xlu0 %2563
      %v2565 = vsel %vm775, %v2561, 0.0
      %2566 = vadd.xlane.f32.xlu0 %v2565
      %v2567 = vpop.xlane.xlu0 %2566
      %v2568 = vrcp.pop %v2564
      %v2569 = vrcp.pop %v2567
      %v2570 = vmul.f32 %v2559, %v2568
      %v2571 = vmul.f32 %v2561, %v2569
      %v2572 = vpack.c.bf16 %v2571, %v2570
      %2573 = vrot.lane.b32.xlu0 %v2499, 64
      %v2574 = vpop.permute.xlu0 %2573
      %v2577 = vsel %vm775, %v2572, 0
      %2579 = vmatprep.subr.bf16.mxu0 0
      %2580 = vmatpush1.bf16.msra.mxu0 %v2574
      %2581 = vmatprep.subr.bf16.mxu0 0
      %2582 = vmatpush1.bf16.msra.mxu0 0
      %2583 = vmatprep.subr.bf16.mxu0 0
      %2584 = vmatpush1.bf16.msra.mxu0 0
      %2585 = vmatprep.subr.bf16.mxu0 0
      %2586 = vmatpush1.bf16.msra.mxu0 0
      %2587 = vmatprep.subr.bf16.mxu0 0
      %2588 = vmatpush1.bf16.msra.mxu0 0
      %2589 = vmatprep.subr.bf16.mxu0 0
      %2590 = vmatpush1.bf16.msra.mxu0 0
      %2591 = vmatprep.subr.bf16.mxu0 0
      %2592 = vmatpush1.bf16.msra.mxu0 0
      %2593 = vmatprep.subr.bf16.mxu0 0
      %2594 = vmatpush1.bf16.msra.mxu0 0
      %2595 = vmatprep.subr.bf16.mxu0 0
      %2596 = vmatpush1.bf16.msra.mxu0 0
      %2597 = vmatprep.subr.bf16.mxu0 0
      %2598 = vmatpush1.bf16.msra.mxu0 0
      %2599 = vmatprep.subr.bf16.mxu0 0
      %2600 = vmatpush1.bf16.msra.mxu0 0
      %2601 = vmatprep.subr.bf16.mxu0 0
      %2602 = vmatpush1.bf16.msra.mxu0 0
      %2603 = vmatprep.subr.bf16.mxu0 0
      %2604 = vmatpush1.bf16.msra.mxu0 0
      %2605 = vmatprep.subr.bf16.mxu0 0
      %2606 = vmatpush1.bf16.msra.mxu0 0
      %2607 = vmatprep.subr.bf16.mxu0 0
      %2608 = vmatpush1.bf16.msra.mxu0 0
      %2609 = vmatprep.subr.bf16.mxu0 0
      %2610 = vmatpush1.bf16.msra.mxu0 0
      %2611 = vmatprep.mubr.bf16.mxu0 0
      %2612 = vmatmul.mubr.bf16.gmra.mrb[0].mxu0 %v2577
      %v2613 = vpop.f32.mrb[0].mxu0
      %v2614 = vadd.f32 0.0, %v2613
      %v2615 = vpop.f32.mrb[0].mxu0
      %v2616 = vpop.f32.mrb[0].mxu0
      %v2617 = vadd.f32 0.0, %v2616
      %v2618 = vpop.f32.mrb[0].mxu0
      %2619 = vdwg.mxu0
      %2620 = vrot.lane.b32.xlu0 %v2499, 120
      %v2621 = vpop.permute.xlu0 %2620
      %2622 = vrot.lane.b32.xlu0 %v2499, 88
      %v2623 = vpop.permute.xlu0 %2622
      %v2625 = vsel %vm770, %v2621, 0
      %v2628 = vsel %vm770, %v2623, 0
      %2630 = vmatprep.subr.bf16.mxu0 0
      %2631 = vmatpush1.bf16.xpose.msra.mxu0 %v2628
      %2632 = vmatprep.subr.bf16.mxu0 0
      %2633 = vmatpush1.bf16.xpose.msra.mxu0 0
      %2634 = vmatprep.subr.bf16.mxu0 0
      %2635 = vmatpush1.bf16.xpose.msra.mxu0 0
      %2636 = vmatprep.subr.bf16.mxu0 0
      %2637 = vmatpush1.bf16.xpose.msra.mxu0 0
      %2638 = vmatprep.subr.bf16.mxu0 0
      %2639 = vmatpush1.bf16.xpose.msra.mxu0 0
      %2640 = vmatprep.subr.bf16.mxu0 0
      %2641 = vmatpush1.bf16.xpose.msra.mxu0 0
      %2642 = vmatprep.subr.bf16.mxu0 0
      %2643 = vmatpush1.bf16.xpose.msra.mxu0 0
      %2644 = vmatprep.subr.bf16.mxu0 0
      %2645 = vmatpush1.bf16.xpose.msra.mxu0 0
      %2646 = vmatprep.subr.bf16.mxu0 0
      %2647 = vmatpush1.bf16.xpose.msra.mxu0 0
      %2648 = vmatprep.subr.bf16.mxu0 0
      %2649 = vmatpush1.bf16.xpose.msra.mxu0 0
      %2650 = vmatprep.subr.bf16.mxu0 0
      %2651 = vmatpush1.bf16.xpose.msra.mxu0 0
      %2652 = vmatprep.subr.bf16.mxu0 0
      %2653 = vmatpush1.bf16.xpose.msra.mxu0 0
      %2654 = vmatprep.subr.bf16.mxu0 0
      %2655 = vmatpush1.bf16.xpose.msra.mxu0 0
      %2656 = vmatprep.subr.bf16.mxu0 0
      %2657 = vmatpush1.bf16.xpose.msra.mxu0 0
      %2658 = vmatprep.subr.bf16.mxu0 0
      %2659 = vmatpush1.bf16.xpose.msra.mxu0 0
      %2660 = vmatprep.subr.bf16.mxu0 0
      %2661 = vmatpush1.bf16.xpose.msra.mxu0 0
      %2662 = vmatprep.mubr.bf16.mxu0 0
      %2663 = vmatmul.mubr.bf16.gmra.mrb[0].mxu0 %v2625
      %v2664 = vpop.f32.mrb[0].mxu0
      %v2665 = vadd.f32 0.0, %v2664
      %v2666 = vpop.f32.mrb[0].mxu0
      %v2667 = vpop.f32.mrb[0].mxu0
      %v2668 = vadd.f32 0.0, %v2667
      %v2669 = vpop.f32.mrb[0].mxu0
      %2670 = vdwg.mxu0
      %v2671 = vsel %vm775, %v2665, -inf
      %2672 = vmax.xlane.f32.xlu0 %v2671
      %v2673 = vpop.xlane.xlu0 %2672
      %v2674 = vsel %vm775, %v2668, -inf
      %2675 = vmax.xlane.f32.xlu0 %v2674
      %v2676 = vpop.xlane.xlu0 %2675
      %v2677 = vsub.f32 %v2665, %v2673
      %v2678 = vsub.f32 %v2668, %v2676
      %v2679 = vmul.f32 %v2677, 1.442695
      %v2680 = vpow.pop %v2679
      %v2681 = vmul.f32 %v2678, 1.442695
      %v2682 = vpow.pop %v2681
      %v2683 = vsel %vm775, %v2680, 0.0
      %2684 = vadd.xlane.f32.xlu0 %v2683
      %v2685 = vpop.xlane.xlu0 %2684
      %v2686 = vsel %vm775, %v2682, 0.0
      %2687 = vadd.xlane.f32.xlu0 %v2686
      %v2688 = vpop.xlane.xlu0 %2687
      %v2689 = vrcp.pop %v2685
      %v2690 = vrcp.pop %v2688
      %v2691 = vmul.f32 %v2680, %v2689
      %v2692 = vmul.f32 %v2682, %v2690
      %v2693 = vpack.c.bf16 %v2692, %v2691
      %2694 = vrot.lane.b32.xlu0 %v2499, 56
      %v2695 = vpop.permute.xlu0 %2694
      %v2698 = vsel %vm775, %v2693, 0
      %2700 = vmatprep.subr.bf16.mxu0 0
      %2701 = vmatpush1.bf16.msra.mxu0 %v2695
      %2702 = vmatprep.subr.bf16.mxu0 0
      %2703 = vmatpush1.bf16.msra.mxu0 0
      %2704 = vmatprep.subr.bf16.mxu0 0
      %2705 = vmatpush1.bf16.msra.mxu0 0
      %2706 = vmatprep.subr.bf16.mxu0 0
      %2707 = vmatpush1.bf16.msra.mxu0 0
      %2708 = vmatprep.subr.bf16.mxu0 0
      %2709 = vmatpush1.bf16.msra.mxu0 0
      %2710 = vmatprep.subr.bf16.mxu0 0
      %2711 = vmatpush1.bf16.msra.mxu0 0
      %2712 = vmatprep.subr.bf16.mxu0 0
      %2713 = vmatpush1.bf16.msra.mxu0 0
      %2714 = vmatprep.subr.bf16.mxu0 0
      %2715 = vmatpush1.bf16.msra.mxu0 0
      %2716 = vmatprep.subr.bf16.mxu0 0
      %2717 = vmatpush1.bf16.msra.mxu0 0
      %2718 = vmatprep.subr.bf16.mxu0 0
      %2719 = vmatpush1.bf16.msra.mxu0 0
      %2720 = vmatprep.subr.bf16.mxu0 0
      %2721 = vmatpush1.bf16.msra.mxu0 0
      %2722 = vmatprep.subr.bf16.mxu0 0
      %2723 = vmatpush1.bf16.msra.mxu0 0
      %2724 = vmatprep.subr.bf16.mxu0 0
      %2725 = vmatpush1.bf16.msra.mxu0 0
      %2726 = vmatprep.subr.bf16.mxu0 0
      %2727 = vmatpush1.bf16.msra.mxu0 0
      %2728 = vmatprep.subr.bf16.mxu0 0
      %2729 = vmatpush1.bf16.msra.mxu0 0
      %2730 = vmatprep.subr.bf16.mxu0 0
      %2731 = vmatpush1.bf16.msra.mxu0 0
      %2732 = vmatprep.mubr.bf16.mxu0 0
      %2733 = vmatmul.mubr.bf16.gmra.mrb[0].mxu0 %v2698
      %v2734 = vpop.f32.mrb[0].mxu0
      %v2735 = vadd.f32 0.0, %v2734
      %v2736 = vpop.f32.mrb[0].mxu0
      %v2737 = vpop.f32.mrb[0].mxu0
      %v2738 = vadd.f32 0.0, %v2737
      %v2739 = vpop.f32.mrb[0].mxu0
      %2740 = vdwg.mxu0
      %2741 = vrot.lane.b32.xlu0 %v2499, 112
      %v2742 = vpop.permute.xlu0 %2741
      %2743 = vrot.lane.b32.xlu0 %v2499, 80
      %v2744 = vpop.permute.xlu0 %2743
      %v2746 = vsel %vm770, %v2742, 0
      %v2749 = vsel %vm770, %v2744, 0
      %2751 = vmatprep.subr.bf16.mxu0 0
      %2752 = vmatpush1.bf16.xpose.msra.mxu0 %v2749
      %2753 = vmatprep.subr.bf16.mxu0 0
      %2754 = vmatpush1.bf16.xpose.msra.mxu0 0
      %2755 = vmatprep.subr.bf16.mxu0 0
      %2756 = vmatpush1.bf16.xpose.msra.mxu0 0
      %2757 = vmatprep.subr.bf16.mxu0 0
      %2758 = vmatpush1.bf16.xpose.msra.mxu0 0
      %2759 = vmatprep.subr.bf16.mxu0 0
      %2760 = vmatpush1.bf16.xpose.msra.mxu0 0
      %2761 = vmatprep.subr.bf16.mxu0 0
      %2762 = vmatpush1.bf16.xpose.msra.mxu0 0
      %2763 = vmatprep.subr.bf16.mxu0 0
      %2764 = vmatpush1.bf16.xpose.msra.mxu0 0
      %2765 = vmatprep.subr.bf16.mxu0 0
      %2766 = vmatpush1.bf16.xpose.msra.mxu0 0
      %2767 = vmatprep.subr.bf16.mxu0 0
      %2768 = vmatpush1.bf16.xpose.msra.mxu0 0
      %2769 = vmatprep.subr.bf16.mxu0 0
      %2770 = vmatpush1.bf16.xpose.msra.mxu0 0
      %2771 = vmatprep.subr.bf16.mxu0 0
      %2772 = vmatpush1.bf16.xpose.msra.mxu0 0
      %2773 = vmatprep.subr.bf16.mxu0 0
      %2774 = vmatpush1.bf16.xpose.msra.mxu0 0
      %2775 = vmatprep.subr.bf16.mxu0 0
      %2776 = vmatpush1.bf16.xpose.msra.mxu0 0
      %2777 = vmatprep.subr.bf16.mxu0 0
      %2778 = vmatpush1.bf16.xpose.msra.mxu0 0
      %2779 = vmatprep.subr.bf16.mxu0 0
      %2780 = vmatpush1.bf16.xpose.msra.mxu0 0
      %2781 = vmatprep.subr.bf16.mxu0 0
      %2782 = vmatpush1.bf16.xpose.msra.mxu0 0
      %2783 = vmatprep.mubr.bf16.mxu0 0
      %2784 = vmatmul.mubr.bf16.gmra.mrb[0].mxu0 %v2746
      %v2785 = vpop.f32.mrb[0].mxu0
      %v2786 = vadd.f32 0.0, %v2785
      %v2787 = vpop.f32.mrb[0].mxu0
      %v2788 = vpop.f32.mrb[0].mxu0
      %v2789 = vadd.f32 0.0, %v2788
      %v2790 = vpop.f32.mrb[0].mxu0
      %2791 = vdwg.mxu0
      %v2792 = vsel %vm775, %v2786, -inf
      %2793 = vmax.xlane.f32.xlu0 %v2792
      %v2794 = vpop.xlane.xlu0 %2793
      %v2795 = vsel %vm775, %v2789, -inf
      %2796 = vmax.xlane.f32.xlu0 %v2795
      %v2797 = vpop.xlane.xlu0 %2796
      %v2798 = vsub.f32 %v2786, %v2794
      %v2799 = vsub.f32 %v2789, %v2797
      %v2800 = vmul.f32 %v2798, 1.442695
      %v2801 = vpow.pop %v2800
      %v2802 = vmul.f32 %v2799, 1.442695
      %v2803 = vpow.pop %v2802
      %v2804 = vsel %vm775, %v2801, 0.0
      %2805 = vadd.xlane.f32.xlu0 %v2804
      %v2806 = vpop.xlane.xlu0 %2805
      %v2807 = vsel %vm775, %v2803, 0.0
      %2808 = vadd.xlane.f32.xlu0 %v2807
      %v2809 = vpop.xlane.xlu0 %2808
      %v2810 = vrcp.pop %v2806
      %v2811 = vrcp.pop %v2809
      %v2812 = vmul.f32 %v2801, %v2810
      %v2813 = vmul.f32 %v2803, %v2811
      %v2814 = vpack.c.bf16 %v2813, %v2812
      %2815 = vrot.lane.b32.xlu0 %v2499, 48
      %v2816 = vpop.permute.xlu0 %2815
      %v2819 = vsel %vm775, %v2814, 0
      %2821 = vmatprep.subr.bf16.mxu0 0
      %2822 = vmatpush1.bf16.msra.mxu0 %v2816
      %2823 = vmatprep.subr.bf16.mxu0 0
      %2824 = vmatpush1.bf16.msra.mxu0 0
      %2825 = vmatprep.subr.bf16.mxu0 0
      %2826 = vmatpush1.bf16.msra.mxu0 0
      %2827 = vmatprep.subr.bf16.mxu0 0
      %2828 = vmatpush1.bf16.msra.mxu0 0
      %2829 = vmatprep.subr.bf16.mxu0 0
      %2830 = vmatpush1.bf16.msra.mxu0 0
      %2831 = vmatprep.subr.bf16.mxu0 0
      %2832 = vmatpush1.bf16.msra.mxu0 0
      %2833 = vmatprep.subr.bf16.mxu0 0
      %2834 = vmatpush1.bf16.msra.mxu0 0
      %2835 = vmatprep.subr.bf16.mxu0 0
      %2836 = vmatpush1.bf16.msra.mxu0 0
      %2837 = vmatprep.subr.bf16.mxu0 0
      %2838 = vmatpush1.bf16.msra.mxu0 0
      %2839 = vmatprep.subr.bf16.mxu0 0
      %2840 = vmatpush1.bf16.msra.mxu0 0
      %2841 = vmatprep.subr.bf16.mxu0 0
      %2842 = vmatpush1.bf16.msra.mxu0 0
      %2843 = vmatprep.subr.bf16.mxu0 0
      %2844 = vmatpush1.bf16.msra.mxu0 0
      %2845 = vmatprep.subr.bf16.mxu0 0
      %2846 = vmatpush1.bf16.msra.mxu0 0
      %2847 = vmatprep.subr.bf16.mxu0 0
      %2848 = vmatpush1.bf16.msra.mxu0 0
      %2849 = vmatprep.subr.bf16.mxu0 0
      %2850 = vmatpush1.bf16.msra.mxu0 0
      %2851 = vmatprep.subr.bf16.mxu0 0
      %2852 = vmatpush1.bf16.msra.mxu0 0
      %2853 = vmatprep.mubr.bf16.mxu0 0
      %2854 = vmatmul.mubr.bf16.gmra.mrb[0].mxu0 %v2819
      %v2855 = vpop.f32.mrb[0].mxu0
      %v2856 = vadd.f32 0.0, %v2855
      %v2857 = vpop.f32.mrb[0].mxu0
      %v2858 = vpop.f32.mrb[0].mxu0
      %v2859 = vadd.f32 0.0, %v2858
      %v2860 = vpop.f32.mrb[0].mxu0
      %2861 = vdwg.mxu0
      %2862 = vrot.lane.b32.xlu0 %v2499, 104
      %v2863 = vpop.permute.xlu0 %2862
      %2864 = vrot.lane.b32.xlu0 %v2499, 72
      %v2865 = vpop.permute.xlu0 %2864
      %v2867 = vsel %vm770, %v2863, 0
      %v2870 = vsel %vm770, %v2865, 0
      %2872 = vmatprep.subr.bf16.mxu0 0
      %2873 = vmatpush1.bf16.xpose.msra.mxu0 %v2870
      %2874 = vmatprep.subr.bf16.mxu0 0
      %2875 = vmatpush1.bf16.xpose.msra.mxu0 0
      %2876 = vmatprep.subr.bf16.mxu0 0
      %2877 = vmatpush1.bf16.xpose.msra.mxu0 0
      %2878 = vmatprep.subr.bf16.mxu0 0
      %2879 = vmatpush1.bf16.xpose.msra.mxu0 0
      %2880 = vmatprep.subr.bf16.mxu0 0
      %2881 = vmatpush1.bf16.xpose.msra.mxu0 0
      %2882 = vmatprep.subr.bf16.mxu0 0
      %2883 = vmatpush1.bf16.xpose.msra.mxu0 0
      %2884 = vmatprep.subr.bf16.mxu0 0
      %2885 = vmatpush1.bf16.xpose.msra.mxu0 0
      %2886 = vmatprep.subr.bf16.mxu0 0
      %2887 = vmatpush1.bf16.xpose.msra.mxu0 0
      %2888 = vmatprep.subr.bf16.mxu0 0
      %2889 = vmatpush1.bf16.xpose.msra.mxu0 0
      %2890 = vmatprep.subr.bf16.mxu0 0
      %2891 = vmatpush1.bf16.xpose.msra.mxu0 0
      %2892 = vmatprep.subr.bf16.mxu0 0
      %2893 = vmatpush1.bf16.xpose.msra.mxu0 0
      %2894 = vmatprep.subr.bf16.mxu0 0
      %2895 = vmatpush1.bf16.xpose.msra.mxu0 0
      %2896 = vmatprep.subr.bf16.mxu0 0
      %2897 = vmatpush1.bf16.xpose.msra.mxu0 0
      %2898 = vmatprep.subr.bf16.mxu0 0
      %2899 = vmatpush1.bf16.xpose.msra.mxu0 0
      %2900 = vmatprep.subr.bf16.mxu0 0
      %2901 = vmatpush1.bf16.xpose.msra.mxu0 0
      %2902 = vmatprep.subr.bf16.mxu0 0
      %2903 = vmatpush1.bf16.xpose.msra.mxu0 0
      %2904 = vmatprep.mubr.bf16.mxu0 0
      %2905 = vmatmul.mubr.bf16.gmra.mrb[0].mxu0 %v2867
      %v2906 = vpop.f32.mrb[0].mxu0
      %v2907 = vadd.f32 0.0, %v2906
      %v2908 = vpop.f32.mrb[0].mxu0
      %v2909 = vpop.f32.mrb[0].mxu0
      %v2910 = vadd.f32 0.0, %v2909
      %v2911 = vpop.f32.mrb[0].mxu0
      %2912 = vdwg.mxu0
      %v2913 = vsel %vm775, %v2907, -inf
      %2914 = vmax.xlane.f32.xlu0 %v2913
      %v2915 = vpop.xlane.xlu0 %2914
      %v2916 = vsel %vm775, %v2910, -inf
      %2917 = vmax.xlane.f32.xlu0 %v2916
      %v2918 = vpop.xlane.xlu0 %2917
      %v2919 = vsub.f32 %v2907, %v2915
      %v2920 = vsub.f32 %v2910, %v2918
      %v2921 = vmul.f32 %v2919, 1.442695
      %v2922 = vpow.pop %v2921
      %v2923 = vmul.f32 %v2920, 1.442695
      %v2924 = vpow.pop %v2923
      %v2925 = vsel %vm775, %v2922, 0.0
      %2926 = vadd.xlane.f32.xlu0 %v2925
      %v2927 = vpop.xlane.xlu0 %2926
      %v2928 = vsel %vm775, %v2924, 0.0
      %2929 = vadd.xlane.f32.xlu0 %v2928
      %v2930 = vpop.xlane.xlu0 %2929
      %v2931 = vrcp.pop %v2927
      %v2932 = vrcp.pop %v2930
      %v2933 = vmul.f32 %v2922, %v2931
      %v2934 = vmul.f32 %v2924, %v2932
      %v2935 = vpack.c.bf16 %v2934, %v2933
      %2936 = vrot.lane.b32.xlu0 %v2499, 40
      %v2937 = vpop.permute.xlu0 %2936
      %v2940 = vsel %vm775, %v2935, 0
      %2942 = vmatprep.subr.bf16.mxu0 0
      %2943 = vmatpush1.bf16.msra.mxu0 %v2937
      %2944 = vmatprep.subr.bf16.mxu0 0
      %2945 = vmatpush1.bf16.msra.mxu0 0
      %2946 = vmatprep.subr.bf16.mxu0 0
      %2947 = vmatpush1.bf16.msra.mxu0 0
      %2948 = vmatprep.subr.bf16.mxu0 0
      %2949 = vmatpush1.bf16.msra.mxu0 0
      %2950 = vmatprep.subr.bf16.mxu0 0
      %2951 = vmatpush1.bf16.msra.mxu0 0
      %2952 = vmatprep.subr.bf16.mxu0 0
      %2953 = vmatpush1.bf16.msra.mxu0 0
      %2954 = vmatprep.subr.bf16.mxu0 0
      %2955 = vmatpush1.bf16.msra.mxu0 0
      %2956 = vmatprep.subr.bf16.mxu0 0
      %2957 = vmatpush1.bf16.msra.mxu0 0
      %2958 = vmatprep.subr.bf16.mxu0 0
      %2959 = vmatpush1.bf16.msra.mxu0 0
      %2960 = vmatprep.subr.bf16.mxu0 0
      %2961 = vmatpush1.bf16.msra.mxu0 0
      %2962 = vmatprep.subr.bf16.mxu0 0
      %2963 = vmatpush1.bf16.msra.mxu0 0
      %2964 = vmatprep.subr.bf16.mxu0 0
      %2965 = vmatpush1.bf16.msra.mxu0 0
      %2966 = vmatprep.subr.bf16.mxu0 0
      %2967 = vmatpush1.bf16.msra.mxu0 0
      %2968 = vmatprep.subr.bf16.mxu0 0
      %2969 = vmatpush1.bf16.msra.mxu0 0
      %2970 = vmatprep.subr.bf16.mxu0 0
      %2971 = vmatpush1.bf16.msra.mxu0 0
      %2972 = vmatprep.subr.bf16.mxu0 0
      %2973 = vmatpush1.bf16.msra.mxu0 0
      %2974 = vmatprep.mubr.bf16.mxu0 0
      %2975 = vmatmul.mubr.bf16.gmra.mrb[0].mxu0 %v2940
      %v2976 = vpop.f32.mrb[0].mxu0
      %v2977 = vadd.f32 0.0, %v2976
      %v2978 = vpop.f32.mrb[0].mxu0
      %v2979 = vpop.f32.mrb[0].mxu0
      %v2980 = vadd.f32 0.0, %v2979
      %v2981 = vpop.f32.mrb[0].mxu0
      %2982 = vdwg.mxu0
      %2985 = vrot.lane.b32.xlu0 %v2735, 8
      %v2986 = vpop.permute.xlu0 %2985
      %2987 = vrot.lane.b32.xlu0 %v2738, 8
      %v2988 = vpop.permute.xlu0 %2987
      %2993 = vrot.lane.b32.xlu0 %v2856, 16
      %v2994 = vpop.permute.xlu0 %2993
      %2995 = vrot.lane.b32.xlu0 %v2859, 16
      %v2996 = vpop.permute.xlu0 %2995
      %3001 = vrot.lane.b32.xlu0 %v2977, 24
      %v3002 = vpop.permute.xlu0 %3001
      %3003 = vrot.lane.b32.xlu0 %v2980, 24
      %v3004 = vpop.permute.xlu0 %3003
      %v3007 = vsel %vm770, %v2614, %v2986
      %v3008 = vsel %vm770, %v2617, %v2988
      %v3009 = vsel %vm775, %v3007, %v2994
      %v3010 = vsel %vm775, %v3008, %v2996
      %v3011 = vsel %vm794, %v3009, %v3002
      %v3012 = vsel %vm794, %v3010, %v3004
      %v3013 = vpack.c.bf16 %v2496, %v2493
      %3015 = vrot.lane.b32.xlu0 %v3013, 96
      %v3016 = vpop.permute.xlu0 %3015
      %v3018 = vsel %vm770, %v3013, 0
      %v3021 = vsel %vm770, %v3016, 0
      %3023 = vmatprep.subr.bf16.mxu0 0
      %3024 = vmatpush1.bf16.xpose.msra.mxu0 %v3021
      %3025 = vmatprep.subr.bf16.mxu0 0
      %3026 = vmatpush1.bf16.xpose.msra.mxu0 0
      %3027 = vmatprep.subr.bf16.mxu0 0
      %3028 = vmatpush1.bf16.xpose.msra.mxu0 0
      %3029 = vmatprep.subr.bf16.mxu0 0
      %3030 = vmatpush1.bf16.xpose.msra.mxu0 0
      %3031 = vmatprep.subr.bf16.mxu0 0
      %3032 = vmatpush1.bf16.xpose.msra.mxu0 0
      %3033 = vmatprep.subr.bf16.mxu0 0
      %3034 = vmatpush1.bf16.xpose.msra.mxu0 0
      %3035 = vmatprep.subr.bf16.mxu0 0
      %3036 = vmatpush1.bf16.xpose.msra.mxu0 0
      %3037 = vmatprep.subr.bf16.mxu0 0
      %3038 = vmatpush1.bf16.xpose.msra.mxu0 0
      %3039 = vmatprep.subr.bf16.mxu0 0
      %3040 = vmatpush1.bf16.xpose.msra.mxu0 0
      %3041 = vmatprep.subr.bf16.mxu0 0
      %3042 = vmatpush1.bf16.xpose.msra.mxu0 0
      %3043 = vmatprep.subr.bf16.mxu0 0
      %3044 = vmatpush1.bf16.xpose.msra.mxu0 0
      %3045 = vmatprep.subr.bf16.mxu0 0
      %3046 = vmatpush1.bf16.xpose.msra.mxu0 0
      %3047 = vmatprep.subr.bf16.mxu0 0
      %3048 = vmatpush1.bf16.xpose.msra.mxu0 0
      %3049 = vmatprep.subr.bf16.mxu0 0
      %3050 = vmatpush1.bf16.xpose.msra.mxu0 0
      %3051 = vmatprep.subr.bf16.mxu0 0
      %3052 = vmatpush1.bf16.xpose.msra.mxu0 0
      %3053 = vmatprep.subr.bf16.mxu0 0
      %3054 = vmatpush1.bf16.xpose.msra.mxu0 0
      %3055 = vmatprep.mubr.bf16.mxu0 0
      %3056 = vmatmul.mubr.bf16.gmra.mrb[0].mxu0 %v3018
      %v3057 = vpop.f32.mrb[0].mxu0
      %v3058 = vadd.f32 0.0, %v3057
      %v3059 = vpop.f32.mrb[0].mxu0
      %v3060 = vpop.f32.mrb[0].mxu0
      %v3061 = vadd.f32 0.0, %v3060
      %v3062 = vpop.f32.mrb[0].mxu0
      %3063 = vdwg.mxu0
      %v3064 = vsel %vm775, %v3058, -inf
      %3065 = vmax.xlane.f32.xlu0 %v3064
      %v3066 = vpop.xlane.xlu0 %3065
      %v3067 = vsel %vm775, %v3061, -inf
      %3068 = vmax.xlane.f32.xlu0 %v3067
      %v3069 = vpop.xlane.xlu0 %3068
      %v3070 = vsub.f32 %v3058, %v3066
      %v3071 = vsub.f32 %v3061, %v3069
      %v3072 = vmul.f32 %v3070, 1.442695
      %v3073 = vpow.pop %v3072
      %v3074 = vmul.f32 %v3071, 1.442695
      %v3075 = vpow.pop %v3074
      %v3076 = vsel %vm775, %v3073, 0.0
      %3077 = vadd.xlane.f32.xlu0 %v3076
      %v3078 = vpop.xlane.xlu0 %3077
      %v3079 = vsel %vm775, %v3075, 0.0
      %3080 = vadd.xlane.f32.xlu0 %v3079
      %v3081 = vpop.xlane.xlu0 %3080
      %v3082 = vrcp.pop %v3078
      %v3083 = vrcp.pop %v3081
      %v3084 = vmul.f32 %v3073, %v3082
      %v3085 = vmul.f32 %v3075, %v3083
      %v3086 = vpack.c.bf16 %v3085, %v3084
      %3087 = vrot.lane.b32.xlu0 %v3013, 64
      %v3088 = vpop.permute.xlu0 %3087
      %v3091 = vsel %vm775, %v3086, 0
      %3093 = vmatprep.subr.bf16.mxu0 0
      %3094 = vmatpush1.bf16.msra.mxu0 %v3088
      %3095 = vmatprep.subr.bf16.mxu0 0
      %3096 = vmatpush1.bf16.msra.mxu0 0
      %3097 = vmatprep.subr.bf16.mxu0 0
      %3098 = vmatpush1.bf16.msra.mxu0 0
      %3099 = vmatprep.subr.bf16.mxu0 0
      %3100 = vmatpush1.bf16.msra.mxu0 0
      %3101 = vmatprep.subr.bf16.mxu0 0
      %3102 = vmatpush1.bf16.msra.mxu0 0
      %3103 = vmatprep.subr.bf16.mxu0 0
      %3104 = vmatpush1.bf16.msra.mxu0 0
      %3105 = vmatprep.subr.bf16.mxu0 0
      %3106 = vmatpush1.bf16.msra.mxu0 0
      %3107 = vmatprep.subr.bf16.mxu0 0
      %3108 = vmatpush1.bf16.msra.mxu0 0
      %3109 = vmatprep.subr.bf16.mxu0 0
      %3110 = vmatpush1.bf16.msra.mxu0 0
      %3111 = vmatprep.subr.bf16.mxu0 0
      %3112 = vmatpush1.bf16.msra.mxu0 0
      %3113 = vmatprep.subr.bf16.mxu0 0
      %3114 = vmatpush1.bf16.msra.mxu0 0
      %3115 = vmatprep.subr.bf16.mxu0 0
      %3116 = vmatpush1.bf16.msra.mxu0 0
      %3117 = vmatprep.subr.bf16.mxu0 0
      %3118 = vmatpush1.bf16.msra.mxu0 0
      %3119 = vmatprep.subr.bf16.mxu0 0
      %3120 = vmatpush1.bf16.msra.mxu0 0
      %3121 = vmatprep.subr.bf16.mxu0 0
      %3122 = vmatpush1.bf16.msra.mxu0 0
      %3123 = vmatprep.subr.bf16.mxu0 0
      %3124 = vmatpush1.bf16.msra.mxu0 0
      %3125 = vmatprep.mubr.bf16.mxu0 0
      %3126 = vmatmul.mubr.bf16.gmra.mrb[0].mxu0 %v3091
      %v3127 = vpop.f32.mrb[0].mxu0
      %v3128 = vadd.f32 0.0, %v3127
      %v3129 = vpop.f32.mrb[0].mxu0
      %v3130 = vpop.f32.mrb[0].mxu0
      %v3131 = vadd.f32 0.0, %v3130
      %v3132 = vpop.f32.mrb[0].mxu0
      %3133 = vdwg.mxu0
      %3134 = vrot.lane.b32.xlu0 %v3013, 120
      %v3135 = vpop.permute.xlu0 %3134
      %3136 = vrot.lane.b32.xlu0 %v3013, 88
      %v3137 = vpop.permute.xlu0 %3136
      %v3139 = vsel %vm770, %v3135, 0
      %v3142 = vsel %vm770, %v3137, 0
      %3144 = vmatprep.subr.bf16.mxu0 0
      %3145 = vmatpush1.bf16.xpose.msra.mxu0 %v3142
      %3146 = vmatprep.subr.bf16.mxu0 0
      %3147 = vmatpush1.bf16.xpose.msra.mxu0 0
      %3148 = vmatprep.subr.bf16.mxu0 0
      %3149 = vmatpush1.bf16.xpose.msra.mxu0 0
      %3150 = vmatprep.subr.bf16.mxu0 0
      %3151 = vmatpush1.bf16.xpose.msra.mxu0 0
      %3152 = vmatprep.subr.bf16.mxu0 0
      %3153 = vmatpush1.bf16.xpose.msra.mxu0 0
      %3154 = vmatprep.subr.bf16.mxu0 0
      %3155 = vmatpush1.bf16.xpose.msra.mxu0 0
      %3156 = vmatprep.subr.bf16.mxu0 0
      %3157 = vmatpush1.bf16.xpose.msra.mxu0 0
      %3158 = vmatprep.subr.bf16.mxu0 0
      %3159 = vmatpush1.bf16.xpose.msra.mxu0 0
      %3160 = vmatprep.subr.bf16.mxu0 0
      %3161 = vmatpush1.bf16.xpose.msra.mxu0 0
      %3162 = vmatprep.subr.bf16.mxu0 0
      %3163 = vmatpush1.bf16.xpose.msra.mxu0 0
      %3164 = vmatprep.subr.bf16.mxu0 0
      %3165 = vmatpush1.bf16.xpose.msra.mxu0 0
      %3166 = vmatprep.subr.bf16.mxu0 0
      %3167 = vmatpush1.bf16.xpose.msra.mxu0 0
      %3168 = vmatprep.subr.bf16.mxu0 0
      %3169 = vmatpush1.bf16.xpose.msra.mxu0 0
      %3170 = vmatprep.subr.bf16.mxu0 0
      %3171 = vmatpush1.bf16.xpose.msra.mxu0 0
      %3172 = vmatprep.subr.bf16.mxu0 0
      %3173 = vmatpush1.bf16.xpose.msra.mxu0 0
      %3174 = vmatprep.subr.bf16.mxu0 0
      %3175 = vmatpush1.bf16.xpose.msra.mxu0 0
      %3176 = vmatprep.mubr.bf16.mxu0 0
      %3177 = vmatmul.mubr.bf16.gmra.mrb[0].mxu0 %v3139
      %v3178 = vpop.f32.mrb[0].mxu0
      %v3179 = vadd.f32 0.0, %v3178
      %v3180 = vpop.f32.mrb[0].mxu0
      %v3181 = vpop.f32.mrb[0].mxu0
      %v3182 = vadd.f32 0.0, %v3181
      %v3183 = vpop.f32.mrb[0].mxu0
      %3184 = vdwg.mxu0
      %v3185 = vsel %vm775, %v3179, -inf
      %3186 = vmax.xlane.f32.xlu0 %v3185
      %v3187 = vpop.xlane.xlu0 %3186
      %v3188 = vsel %vm775, %v3182, -inf
      %3189 = vmax.xlane.f32.xlu0 %v3188
      %v3190 = vpop.xlane.xlu0 %3189
      %v3191 = vsub.f32 %v3179, %v3187
      %v3192 = vsub.f32 %v3182, %v3190
      %v3193 = vmul.f32 %v3191, 1.442695
      %v3194 = vpow.pop %v3193
      %v3195 = vmul.f32 %v3192, 1.442695
      %v3196 = vpow.pop %v3195
      %v3197 = vsel %vm775, %v3194, 0.0
      %3198 = vadd.xlane.f32.xlu0 %v3197
      %v3199 = vpop.xlane.xlu0 %3198
      %v3200 = vsel %vm775, %v3196, 0.0
      %3201 = vadd.xlane.f32.xlu0 %v3200
      %v3202 = vpop.xlane.xlu0 %3201
      %v3203 = vrcp.pop %v3199
      %v3204 = vrcp.pop %v3202
      %v3205 = vmul.f32 %v3194, %v3203
      %v3206 = vmul.f32 %v3196, %v3204
      %v3207 = vpack.c.bf16 %v3206, %v3205
      %3208 = vrot.lane.b32.xlu0 %v3013, 56
      %v3209 = vpop.permute.xlu0 %3208
      %v3212 = vsel %vm775, %v3207, 0
      %3214 = vmatprep.subr.bf16.mxu0 0
      %3215 = vmatpush1.bf16.msra.mxu0 %v3209
      %3216 = vmatprep.subr.bf16.mxu0 0
      %3217 = vmatpush1.bf16.msra.mxu0 0
      %3218 = vmatprep.subr.bf16.mxu0 0
      %3219 = vmatpush1.bf16.msra.mxu0 0
      %3220 = vmatprep.subr.bf16.mxu0 0
      %3221 = vmatpush1.bf16.msra.mxu0 0
      %3222 = vmatprep.subr.bf16.mxu0 0
      %3223 = vmatpush1.bf16.msra.mxu0 0
      %3224 = vmatprep.subr.bf16.mxu0 0
      %3225 = vmatpush1.bf16.msra.mxu0 0
      %3226 = vmatprep.subr.bf16.mxu0 0
      %3227 = vmatpush1.bf16.msra.mxu0 0
      %3228 = vmatprep.subr.bf16.mxu0 0
      %3229 = vmatpush1.bf16.msra.mxu0 0
      %3230 = vmatprep.subr.bf16.mxu0 0
      %3231 = vmatpush1.bf16.msra.mxu0 0
      %3232 = vmatprep.subr.bf16.mxu0 0
      %3233 = vmatpush1.bf16.msra.mxu0 0
      %3234 = vmatprep.subr.bf16.mxu0 0
      %3235 = vmatpush1.bf16.msra.mxu0 0
      %3236 = vmatprep.subr.bf16.mxu0 0
      %3237 = vmatpush1.bf16.msra.mxu0 0
      %3238 = vmatprep.subr.bf16.mxu0 0
      %3239 = vmatpush1.bf16.msra.mxu0 0
      %3240 = vmatprep.subr.bf16.mxu0 0
      %3241 = vmatpush1.bf16.msra.mxu0 0
      %3242 = vmatprep.subr.bf16.mxu0 0
      %3243 = vmatpush1.bf16.msra.mxu0 0
      %3244 = vmatprep.subr.bf16.mxu0 0
      %3245 = vmatpush1.bf16.msra.mxu0 0
      %3246 = vmatprep.mubr.bf16.mxu0 0
      %3247 = vmatmul.mubr.bf16.gmra.mrb[0].mxu0 %v3212
      %v3248 = vpop.f32.mrb[0].mxu0
      %v3249 = vadd.f32 0.0, %v3248
      %v3250 = vpop.f32.mrb[0].mxu0
      %v3251 = vpop.f32.mrb[0].mxu0
      %v3252 = vadd.f32 0.0, %v3251
      %v3253 = vpop.f32.mrb[0].mxu0
      %3254 = vdwg.mxu0
      %3255 = vrot.lane.b32.xlu0 %v3013, 112
      %v3256 = vpop.permute.xlu0 %3255
      %3257 = vrot.lane.b32.xlu0 %v3013, 80
      %v3258 = vpop.permute.xlu0 %3257
      %v3260 = vsel %vm770, %v3256, 0
      %v3263 = vsel %vm770, %v3258, 0
      %3265 = vmatprep.subr.bf16.mxu0 0
      %3266 = vmatpush1.bf16.xpose.msra.mxu0 %v3263
      %3267 = vmatprep.subr.bf16.mxu0 0
      %3268 = vmatpush1.bf16.xpose.msra.mxu0 0
      %3269 = vmatprep.subr.bf16.mxu0 0
      %3270 = vmatpush1.bf16.xpose.msra.mxu0 0
      %3271 = vmatprep.subr.bf16.mxu0 0
      %3272 = vmatpush1.bf16.xpose.msra.mxu0 0
      %3273 = vmatprep.subr.bf16.mxu0 0
      %3274 = vmatpush1.bf16.xpose.msra.mxu0 0
      %3275 = vmatprep.subr.bf16.mxu0 0
      %3276 = vmatpush1.bf16.xpose.msra.mxu0 0
      %3277 = vmatprep.subr.bf16.mxu0 0
      %3278 = vmatpush1.bf16.xpose.msra.mxu0 0
      %3279 = vmatprep.subr.bf16.mxu0 0
      %3280 = vmatpush1.bf16.xpose.msra.mxu0 0
      %3281 = vmatprep.subr.bf16.mxu0 0
      %3282 = vmatpush1.bf16.xpose.msra.mxu0 0
      %3283 = vmatprep.subr.bf16.mxu0 0
      %3284 = vmatpush1.bf16.xpose.msra.mxu0 0
      %3285 = vmatprep.subr.bf16.mxu0 0
      %3286 = vmatpush1.bf16.xpose.msra.mxu0 0
      %3287 = vmatprep.subr.bf16.mxu0 0
      %3288 = vmatpush1.bf16.xpose.msra.mxu0 0
      %3289 = vmatprep.subr.bf16.mxu0 0
      %3290 = vmatpush1.bf16.xpose.msra.mxu0 0
      %3291 = vmatprep.subr.bf16.mxu0 0
      %3292 = vmatpush1.bf16.xpose.msra.mxu0 0
      %3293 = vmatprep.subr.bf16.mxu0 0
      %3294 = vmatpush1.bf16.xpose.msra.mxu0 0
      %3295 = vmatprep.subr.bf16.mxu0 0
      %3296 = vmatpush1.bf16.xpose.msra.mxu0 0
      %3297 = vmatprep.mubr.bf16.mxu0 0
      %3298 = vmatmul.mubr.bf16.gmra.mrb[0].mxu0 %v3260
      %v3299 = vpop.f32.mrb[0].mxu0
      %v3300 = vadd.f32 0.0, %v3299
      %v3301 = vpop.f32.mrb[0].mxu0
      %v3302 = vpop.f32.mrb[0].mxu0
      %v3303 = vadd.f32 0.0, %v3302
      %v3304 = vpop.f32.mrb[0].mxu0
      %3305 = vdwg.mxu0
      %v3306 = vsel %vm775, %v3300, -inf
      %3307 = vmax.xlane.f32.xlu0 %v3306
      %v3308 = vpop.xlane.xlu0 %3307
      %v3309 = vsel %vm775, %v3303, -inf
      %3310 = vmax.xlane.f32.xlu0 %v3309
      %v3311 = vpop.xlane.xlu0 %3310
      %v3312 = vsub.f32 %v3300, %v3308
      %v3313 = vsub.f32 %v3303, %v3311
      %v3314 = vmul.f32 %v3312, 1.442695
      %v3315 = vpow.pop %v3314
      %v3316 = vmul.f32 %v3313, 1.442695
      %v3317 = vpow.pop %v3316
      %v3318 = vsel %vm775, %v3315, 0.0
      %3319 = vadd.xlane.f32.xlu0 %v3318
      %v3320 = vpop.xlane.xlu0 %3319
      %v3321 = vsel %vm775, %v3317, 0.0
      %3322 = vadd.xlane.f32.xlu0 %v3321
      %v3323 = vpop.xlane.xlu0 %3322
      %v3324 = vrcp.pop %v3320
      %v3325 = vrcp.pop %v3323
      %v3326 = vmul.f32 %v3315, %v3324
      %v3327 = vmul.f32 %v3317, %v3325
      %v3328 = vpack.c.bf16 %v3327, %v3326
      %3329 = vrot.lane.b32.xlu0 %v3013, 48
      %v3330 = vpop.permute.xlu0 %3329
      %v3333 = vsel %vm775, %v3328, 0
      %3335 = vmatprep.subr.bf16.mxu0 0
      %3336 = vmatpush1.bf16.msra.mxu0 %v3330
      %3337 = vmatprep.subr.bf16.mxu0 0
      %3338 = vmatpush1.bf16.msra.mxu0 0
      %3339 = vmatprep.subr.bf16.mxu0 0
      %3340 = vmatpush1.bf16.msra.mxu0 0
      %3341 = vmatprep.subr.bf16.mxu0 0
      %3342 = vmatpush1.bf16.msra.mxu0 0
      %3343 = vmatprep.subr.bf16.mxu0 0
      %3344 = vmatpush1.bf16.msra.mxu0 0
      %3345 = vmatprep.subr.bf16.mxu0 0
      %3346 = vmatpush1.bf16.msra.mxu0 0
      %3347 = vmatprep.subr.bf16.mxu0 0
      %3348 = vmatpush1.bf16.msra.mxu0 0
      %3349 = vmatprep.subr.bf16.mxu0 0
      %3350 = vmatpush1.bf16.msra.mxu0 0
      %3351 = vmatprep.subr.bf16.mxu0 0
      %3352 = vmatpush1.bf16.msra.mxu0 0
      %3353 = vmatprep.subr.bf16.mxu0 0
      %3354 = vmatpush1.bf16.msra.mxu0 0
      %3355 = vmatprep.subr.bf16.mxu0 0
      %3356 = vmatpush1.bf16.msra.mxu0 0
      %3357 = vmatprep.subr.bf16.mxu0 0
      %3358 = vmatpush1.bf16.msra.mxu0 0
      %3359 = vmatprep.subr.bf16.mxu0 0
      %3360 = vmatpush1.bf16.msra.mxu0 0
      %3361 = vmatprep.subr.bf16.mxu0 0
      %3362 = vmatpush1.bf16.msra.mxu0 0
      %3363 = vmatprep.subr.bf16.mxu0 0
      %3364 = vmatpush1.bf16.msra.mxu0 0
      %3365 = vmatprep.subr.bf16.mxu0 0
      %3366 = vmatpush1.bf16.msra.mxu0 0
      %3367 = vmatprep.mubr.bf16.mxu0 0
      %3368 = vmatmul.mubr.bf16.gmra.mrb[0].mxu0 %v3333
      %v3369 = vpop.f32.mrb[0].mxu0
      %v3370 = vadd.f32 0.0, %v3369
      %v3371 = vpop.f32.mrb[0].mxu0
      %v3372 = vpop.f32.mrb[0].mxu0
      %v3373 = vadd.f32 0.0, %v3372
      %v3374 = vpop.f32.mrb[0].mxu0
      %3375 = vdwg.mxu0
      %3376 = vrot.lane.b32.xlu0 %v3013, 104
      %v3377 = vpop.permute.xlu0 %3376
      %3378 = vrot.lane.b32.xlu0 %v3013, 72
      %v3379 = vpop.permute.xlu0 %3378
      %v3381 = vsel %vm770, %v3377, 0
      %v3384 = vsel %vm770, %v3379, 0
      %3386 = vmatprep.subr.bf16.mxu0 0
      %3387 = vmatpush1.bf16.xpose.msra.mxu0 %v3384
      %3388 = vmatprep.subr.bf16.mxu0 0
      %3389 = vmatpush1.bf16.xpose.msra.mxu0 0
      %3390 = vmatprep.subr.bf16.mxu0 0
      %3391 = vmatpush1.bf16.xpose.msra.mxu0 0
      %3392 = vmatprep.subr.bf16.mxu0 0
      %3393 = vmatpush1.bf16.xpose.msra.mxu0 0
      %3394 = vmatprep.subr.bf16.mxu0 0
      %3395 = vmatpush1.bf16.xpose.msra.mxu0 0
      %3396 = vmatprep.subr.bf16.mxu0 0
      %3397 = vmatpush1.bf16.xpose.msra.mxu0 0
      %3398 = vmatprep.subr.bf16.mxu0 0
      %3399 = vmatpush1.bf16.xpose.msra.mxu0 0
      %3400 = vmatprep.subr.bf16.mxu0 0
      %3401 = vmatpush1.bf16.xpose.msra.mxu0 0
      %3402 = vmatprep.subr.bf16.mxu0 0
      %3403 = vmatpush1.bf16.xpose.msra.mxu0 0
      %3404 = vmatprep.subr.bf16.mxu0 0
      %3405 = vmatpush1.bf16.xpose.msra.mxu0 0
      %3406 = vmatprep.subr.bf16.mxu0 0
      %3407 = vmatpush1.bf16.xpose.msra.mxu0 0
      %3408 = vmatprep.subr.bf16.mxu0 0
      %3409 = vmatpush1.bf16.xpose.msra.mxu0 0
      %3410 = vmatprep.subr.bf16.mxu0 0
      %3411 = vmatpush1.bf16.xpose.msra.mxu0 0
      %3412 = vmatprep.subr.bf16.mxu0 0
      %3413 = vmatpush1.bf16.xpose.msra.mxu0 0
      %3414 = vmatprep.subr.bf16.mxu0 0
      %3415 = vmatpush1.bf16.xpose.msra.mxu0 0
      %3416 = vmatprep.subr.bf16.mxu0 0
      %3417 = vmatpush1.bf16.xpose.msra.mxu0 0
      %3418 = vmatprep.mubr.bf16.mxu0 0
      %3419 = vmatmul.mubr.bf16.gmra.mrb[0].mxu0 %v3381
      %v3420 = vpop.f32.mrb[0].mxu0
      %v3421 = vadd.f32 0.0, %v3420
      %v3422 = vpop.f32.mrb[0].mxu0
      %v3423 = vpop.f32.mrb[0].mxu0
      %v3424 = vadd.f32 0.0, %v3423
      %v3425 = vpop.f32.mrb[0].mxu0
      %3426 = vdwg.mxu0
      %v3427 = vsel %vm775, %v3421, -inf
      %3428 = vmax.xlane.f32.xlu0 %v3427
      %v3429 = vpop.xlane.xlu0 %3428
      %v3430 = vsel %vm775, %v3424, -inf
      %3431 = vmax.xlane.f32.xlu0 %v3430
      %v3432 = vpop.xlane.xlu0 %3431
      %v3433 = vsub.f32 %v3421, %v3429
      %v3434 = vsub.f32 %v3424, %v3432
      %v3435 = vmul.f32 %v3433, 1.442695
      %v3436 = vpow.pop %v3435
      %v3437 = vmul.f32 %v3434, 1.442695
      %v3438 = vpow.pop %v3437
      %v3439 = vsel %vm775, %v3436, 0.0
      %3440 = vadd.xlane.f32.xlu0 %v3439
      %v3441 = vpop.xlane.xlu0 %3440
      %v3442 = vsel %vm775, %v3438, 0.0
      %3443 = vadd.xlane.f32.xlu0 %v3442
      %v3444 = vpop.xlane.xlu0 %3443
      %v3445 = vrcp.pop %v3441
      %v3446 = vrcp.pop %v3444
      %v3447 = vmul.f32 %v3436, %v3445
      %v3448 = vmul.f32 %v3438, %v3446
      %v3449 = vpack.c.bf16 %v3448, %v3447
      %3450 = vrot.lane.b32.xlu0 %v3013, 40
      %v3451 = vpop.permute.xlu0 %3450
      %v3454 = vsel %vm775, %v3449, 0
      %3456 = vmatprep.subr.bf16.mxu0 0
      %3457 = vmatpush1.bf16.msra.mxu0 %v3451
      %3458 = vmatprep.subr.bf16.mxu0 0
      %3459 = vmatpush1.bf16.msra.mxu0 0
      %3460 = vmatprep.subr.bf16.mxu0 0
      %3461 = vmatpush1.bf16.msra.mxu0 0
      %3462 = vmatprep.subr.bf16.mxu0 0
      %3463 = vmatpush1.bf16.msra.mxu0 0
      %3464 = vmatprep.subr.bf16.mxu0 0
      %3465 = vmatpush1.bf16.msra.mxu0 0
      %3466 = vmatprep.subr.bf16.mxu0 0
      %3467 = vmatpush1.bf16.msra.mxu0 0
      %3468 = vmatprep.subr.bf16.mxu0 0
      %3469 = vmatpush1.bf16.msra.mxu0 0
      %3470 = vmatprep.subr.bf16.mxu0 0
      %3471 = vmatpush1.bf16.msra.mxu0 0
      %3472 = vmatprep.subr.bf16.mxu0 0
      %3473 = vmatpush1.bf16.msra.mxu0 0
      %3474 = vmatprep.subr.bf16.mxu0 0
      %3475 = vmatpush1.bf16.msra.mxu0 0
      %3476 = vmatprep.subr.bf16.mxu0 0
      %3477 = vmatpush1.bf16.msra.mxu0 0
      %3478 = vmatprep.subr.bf16.mxu0 0
      %3479 = vmatpush1.bf16.msra.mxu0 0
      %3480 = vmatprep.subr.bf16.mxu0 0
      %3481 = vmatpush1.bf16.msra.mxu0 0
      %3482 = vmatprep.subr.bf16.mxu0 0
      %3483 = vmatpush1.bf16.msra.mxu0 0
      %3484 = vmatprep.subr.bf16.mxu0 0
      %3485 = vmatpush1.bf16.msra.mxu0 0
      %3486 = vmatprep.subr.bf16.mxu0 0
      %3487 = vmatpush1.bf16.msra.mxu0 0
      %3488 = vmatprep.mubr.bf16.mxu0 0
      %3489 = vmatmul.mubr.bf16.gmra.mrb[0].mxu0 %v3454
      %v3490 = vpop.f32.mrb[0].mxu0
      %v3491 = vadd.f32 0.0, %v3490
      %v3492 = vpop.f32.mrb[0].mxu0
      %v3493 = vpop.f32.mrb[0].mxu0
      %v3494 = vadd.f32 0.0, %v3493
      %v3495 = vpop.f32.mrb[0].mxu0
      %3496 = vdwg.mxu0
      %3499 = vrot.lane.b32.xlu0 %v3249, 8
      %v3500 = vpop.permute.xlu0 %3499
      %3501 = vrot.lane.b32.xlu0 %v3252, 8
      %v3502 = vpop.permute.xlu0 %3501
      %3507 = vrot.lane.b32.xlu0 %v3370, 16
      %v3508 = vpop.permute.xlu0 %3507
      %3509 = vrot.lane.b32.xlu0 %v3373, 16
      %v3510 = vpop.permute.xlu0 %3509
      %3515 = vrot.lane.b32.xlu0 %v3491, 24
      %v3516 = vpop.permute.xlu0 %3515
      %3517 = vrot.lane.b32.xlu0 %v3494, 24
      %v3518 = vpop.permute.xlu0 %3517
      %v3521 = vsel %vm770, %v3128, %v3500
      %v3522 = vsel %vm770, %v3131, %v3502
      %v3523 = vsel %vm775, %v3521, %v3508
      %v3524 = vsel %vm775, %v3522, %v3510
      %v3525 = vsel %vm794, %v3523, %v3516
      %v3526 = vsel %vm794, %v3524, %v3518
      %s3527 = scalar_lea.vmem %s8, 32
      %v3528 = vld [vmem:[%s3527] sm:$0xff]
      %v3529 = vld [vmem:[%s3527 + $0x8] sm:$0xff]
      %v3530 = vld [vmem:[%s3527 + $0x10] sm:$0xff]
      %v3531 = vld [vmem:[%s3527 + $0x18] sm:$0xff]
      %v3532 = vpack.c.bf16 %v3012, %v3011
      %v3533 = vpack.c.bf16 %v3526, %v3525
      %v3534 = vpack.c.bf16 %v3529, %v3528
      %v3535 = vpack.c.bf16 %v3531, %v3530
      %v3537 = vsel %vm868, %v3532, 0
      %v3540 = vsel %vm868, %v3533, 0
      %3542 = vmatprep.subr.bf16.mxu0 0
      %3543 = vmatpush1.bf16.msra.mxu0 %v3534
      %3544 = vmatprep.subr.bf16.mxu0 0
      %3545 = vmatpush1.bf16.msra.mxu0 %v3535
      %3546 = vmatprep.subr.bf16.mxu0 0
      %3547 = vmatpush1.bf16.msra.mxu0 0
      %3548 = vmatprep.subr.bf16.mxu0 0
      %3549 = vmatpush1.bf16.msra.mxu0 0
      %3550 = vmatprep.subr.bf16.mxu0 0
      %3551 = vmatpush1.bf16.msra.mxu0 0
      %3552 = vmatprep.subr.bf16.mxu0 0
      %3553 = vmatpush1.bf16.msra.mxu0 0
      %3554 = vmatprep.subr.bf16.mxu0 0
      %3555 = vmatpush1.bf16.msra.mxu0 0
      %3556 = vmatprep.subr.bf16.mxu0 0
      %3557 = vmatpush1.bf16.msra.mxu0 0
      %3558 = vmatprep.subr.bf16.mxu0 0
      %3559 = vmatpush1.bf16.msra.mxu0 0
      %3560 = vmatprep.subr.bf16.mxu0 0
      %3561 = vmatpush1.bf16.msra.mxu0 0
      %3562 = vmatprep.subr.bf16.mxu0 0
      %3563 = vmatpush1.bf16.msra.mxu0 0
      %3564 = vmatprep.subr.bf16.mxu0 0
      %3565 = vmatpush1.bf16.msra.mxu0 0
      %3566 = vmatprep.subr.bf16.mxu0 0
      %3567 = vmatpush1.bf16.msra.mxu0 0
      %3568 = vmatprep.subr.bf16.mxu0 0
      %3569 = vmatpush1.bf16.msra.mxu0 0
      %3570 = vmatprep.subr.bf16.mxu0 0
      %3571 = vmatpush1.bf16.msra.mxu0 0
      %3572 = vmatprep.subr.bf16.mxu0 0
      %3573 = vmatpush1.bf16.msra.mxu0 0
      %3574 = vmatprep.mubr.bf16.mxu0 0
      %3575 = vmatmul.mubr.bf16.gmra.mrb[0].mxu0 %v3537
      %v3576 = vpop.f32.mrb[0].mxu0
      %v3577 = vadd.f32 0.0, %v3576
      %v3578 = vpop.f32.mrb[0].mxu0
      %v3579 = vpop.f32.mrb[0].mxu0
      %v3580 = vadd.f32 0.0, %v3579
      %v3581 = vpop.f32.mrb[0].mxu0
      %3582 = vmatprep.mubr.bf16.mxu0 0
      %3583 = vmatmul.mubr.bf16.gmra.mrb[0].mxu0 %v3540
      %v3584 = vpop.f32.mrb[0].mxu0
      %v3585 = vadd.f32 0.0, %v3584
      %v3586 = vpop.f32.mrb[0].mxu0
      %v3587 = vpop.f32.mrb[0].mxu0
      %v3588 = vadd.f32 0.0, %v3587
      %v3589 = vpop.f32.mrb[0].mxu0
      %3590 = vdwg.mxu0
      %v3591 = vadd.f32 %v2347, %v3577
      %v3592 = vadd.f32 %v2348, %v3580
      %v3593 = vadd.f32 %v2349, %v3585
      %v3594 = vadd.f32 %v2350, %v3588
      %s3595 = scalar_lea.vmem %s9, 1
      %v3596 = vld [vmem:[%s3595] sm:$0x1]
      %v3598 = vlaneseq
      %v3599 = vshrl.u32 %v3598, 7
      %v3600 = vsub.s32 0, %v3599
      %v3601 = vrot.slane %v3596, %v3600
      %v3603 = vadd.f32 %v3591, %v3601
      %v3604 = vadd.f32 %v3592, %v3601
      %v3605 = vadd.f32 %v3593, %v3601
      %v3606 = vadd.f32 %v3594, %v3601
      %s3607 = scalar_lea.vmem %s10, 1
      %v3608 = vld [vmem:[%s3607] sm:$0x1]
      %s3609 = scalar_lea.vmem %s11, 1
      %v3610 = vld [vmem:[%s3609] sm:$0x1]
      %v3611 = vsel %vm868, %v3603, 0.0
      %3612 = vadd.xlane.f32.xlu0 %v3611
      %v3613 = vpop.xlane.xlu0 %3612
      %v3614 = vsel %vm868, %v3604, 0.0
      %3615 = vadd.xlane.f32.xlu0 %v3614
      %v3616 = vpop.xlane.xlu0 %3615
      %v3617 = vsel %vm868, %v3605, 0.0
      %3618 = vadd.xlane.f32.xlu0 %v3617
      %v3619 = vpop.xlane.xlu0 %3618
      %v3620 = vsel %vm868, %v3606, 0.0
      %3621 = vadd.xlane.f32.xlu0 %v3620
      %v3622 = vpop.xlane.xlu0 %3621
      %v3623 = vmul.f32 %v3613, %v881
      %v3624 = vmul.f32 %v3616, %v881
      %v3625 = vmul.f32 %v3619, %v881
      %v3626 = vmul.f32 %v3622, %v881
      %v3627 = vsub.f32 %v3603, %v3623
      %v3628 = vsub.f32 %v3604, %v3624
      %v3629 = vsub.f32 %v3605, %v3625
      %v3630 = vsub.f32 %v3606, %v3626
      %v3631 = vmul.f32 %v3627, %v3627
      %v3632 = vmul.f32 %v3628, %v3628
      %v3633 = vmul.f32 %v3629, %v3629
      %v3634 = vmul.f32 %v3630, %v3630
      %v3635 = vsel %vm868, %v3631, 0.0
      %3636 = vadd.xlane.f32.xlu0 %v3635
      %v3637 = vpop.xlane.xlu0 %3636
      %v3638 = vsel %vm868, %v3632, 0.0
      %3639 = vadd.xlane.f32.xlu0 %v3638
      %v3640 = vpop.xlane.xlu0 %3639
      %v3641 = vsel %vm868, %v3633, 0.0
      %3642 = vadd.xlane.f32.xlu0 %v3641
      %v3643 = vpop.xlane.xlu0 %3642
      %v3644 = vsel %vm868, %v3634, 0.0
      %3645 = vadd.xlane.f32.xlu0 %v3644
      %v3646 = vpop.xlane.xlu0 %3645
      %v3647 = vmul.f32 %v3637, %v881
      %v3648 = vmul.f32 %v3640, %v881
      %v3649 = vmul.f32 %v3643, %v881
      %v3650 = vmul.f32 %v3646, %v881
      %v3651 = vadd.f32 %v3647, 1e-05
      %v3652 = vadd.f32 %v3648, 1e-05
      %v3653 = vadd.f32 %v3649, 1e-05
      %v3654 = vadd.f32 %v3650, 1e-05
      %v3655 = vrsqrt.pop %v3651
      %v3656 = vrsqrt.pop %v3652
      %v3657 = vrsqrt.pop %v3653
      %v3658 = vrsqrt.pop %v3654
      %v3659 = vmul.f32 %v3627, %v3655
      %v3660 = vmul.f32 %v3628, %v3656
      %v3661 = vmul.f32 %v3629, %v3657
      %v3662 = vmul.f32 %v3630, %v3658
      %v3664 = vlaneseq
      %v3665 = vshrl.u32 %v3664, 7
      %v3666 = vsub.s32 0, %v3665
      %v3667 = vrot.slane %v3608, %v3666
      %v3669 = vmul.f32 %v3659, %v3667
      %v3670 = vmul.f32 %v3660, %v3667
      %v3671 = vmul.f32 %v3661, %v3667
      %v3672 = vmul.f32 %v3662, %v3667
      %v3674 = vlaneseq
      %v3675 = vshrl.u32 %v3674, 7
      %v3676 = vsub.s32 0, %v3675
      %v3677 = vrot.slane %v3610, %v3676
      %v3679 = vadd.f32 %v3669, %v3677
      %v3680 = vadd.f32 %v3670, %v3677
      %v3681 = vadd.f32 %v3671, %v3677
      %v3682 = vadd.f32 %v3672, %v3677
      %s3683 = scalar_lea.vmem %s12, 32
      %v3684 = vld [vmem:[%s3683] sm:$0xff]
      %v3685 = vld [vmem:[%s3683 + $0x8] sm:$0xff]
      %v3686 = vld [vmem:[%s3683 + $0x10] sm:$0xff]
      %v3687 = vld [vmem:[%s3683 + $0x18] sm:$0xff]
      %v3688 = vpack.c.bf16 %v3680, %v3679
      %v3689 = vpack.c.bf16 %v3682, %v3681
      %v3690 = vpack.c.bf16 %v3685, %v3684
      %v3691 = vpack.c.bf16 %v3687, %v3686
      %s3692 = scalar_lea.vmem %s13, 1
      %v3693 = vld [vmem:[%s3692] sm:$0x1]
      %v3695 = vlaneseq
      %v3696 = vshrl.u32 %v3695, 7
      %v3697 = vsub.s32 0, %v3696
      %v3698 = vrot.slane %v3693, %v3697
      %v3701 = vsel %vm868, %v3688, 0
      %v3704 = vsel %vm868, %v3689, 0
      %3706 = vmatprep.subr.bf16.mxu0 0
      %3707 = vmatpush1.bf16.msra.mxu0 %v3690
      %3708 = vmatprep.subr.bf16.mxu0 0
      %3709 = vmatpush1.bf16.msra.mxu0 %v3691
      %3710 = vmatprep.subr.bf16.mxu0 0
      %3711 = vmatpush1.bf16.msra.mxu0 0
      %3712 = vmatprep.subr.bf16.mxu0 0
      %3713 = vmatpush1.bf16.msra.mxu0 0
      %3714 = vmatprep.subr.bf16.mxu0 0
      %3715 = vmatpush1.bf16.msra.mxu0 0
      %3716 = vmatprep.subr.bf16.mxu0 0
      %3717 = vmatpush1.bf16.msra.mxu0 0
      %3718 = vmatprep.subr.bf16.mxu0 0
      %3719 = vmatpush1.bf16.msra.mxu0 0
      %3720 = vmatprep.subr.bf16.mxu0 0
      %3721 = vmatpush1.bf16.msra.mxu0 0
      %3722 = vmatprep.subr.bf16.mxu0 0
      %3723 = vmatpush1.bf16.msra.mxu0 0
      %3724 = vmatprep.subr.bf16.mxu0 0
      %3725 = vmatpush1.bf16.msra.mxu0 0
      %3726 = vmatprep.subr.bf16.mxu0 0
      %3727 = vmatpush1.bf16.msra.mxu0 0
      %3728 = vmatprep.subr.bf16.mxu0 0
      %3729 = vmatpush1.bf16.msra.mxu0 0
      %3730 = vmatprep.subr.bf16.mxu0 0
      %3731 = vmatpush1.bf16.msra.mxu0 0
      %3732 = vmatprep.subr.bf16.mxu0 0
      %3733 = vmatpush1.bf16.msra.mxu0 0
      %3734 = vmatprep.subr.bf16.mxu0 0
      %3735 = vmatpush1.bf16.msra.mxu0 0
      %3736 = vmatprep.subr.bf16.mxu0 0
      %3737 = vmatpush1.bf16.msra.mxu0 0
      %3738 = vmatprep.mubr.bf16.mxu0 0
      %3739 = vmatmul.mubr.bf16.gmra.mrb[0].mxu0 %v3701
      %v3740 = vpop.f32.mrb[0].mxu0
      %v3741 = vadd.f32 %v3698, %v3740
      %v3742 = vpop.f32.mrb[0].mxu0
      %v3743 = vpop.f32.mrb[0].mxu0
      %v3744 = vadd.f32 %v3698, %v3743
      %v3745 = vpop.f32.mrb[0].mxu0
      %3746 = vmatprep.mubr.bf16.mxu0 0
      %3747 = vmatmul.mubr.bf16.gmra.mrb[0].mxu0 %v3704
      %v3748 = vpop.f32.mrb[0].mxu0
      %v3749 = vadd.f32 %v3698, %v3748
      %v3750 = vpop.f32.mrb[0].mxu0
      %v3751 = vpop.f32.mrb[0].mxu0
      %v3752 = vadd.f32 %v3698, %v3751
      %v3753 = vpop.f32.mrb[0].mxu0
      %3754 = vdwg.mxu0
      %v3755 = vmax.f32 %v3741, 0.0
      %v3756 = vmax.f32 %v3744, 0.0
      %v3757 = vmax.f32 %v3749, 0.0
      %v3758 = vmax.f32 %v3752, 0.0
      %s3759 = scalar_lea.vmem %s14, 64
      %v3760 = vld [vmem:[%s3759] sm:$0xff]
      %v3761 = vld [vmem:[%s3759 + $0x8] sm:$0xff]
      %v3762 = vld [vmem:[%s3759 + $0x10] sm:$0xff]
      %v3763 = vld [vmem:[%s3759 + $0x18] sm:$0xff]
      %v3764 = vld [vmem:[%s3759 + $0x20] sm:$0xff]
      %v3765 = vld [vmem:[%s3759 + $0x28] sm:$0xff]
      %v3766 = vld [vmem:[%s3759 + $0x30] sm:$0xff]
      %v3767 = vld [vmem:[%s3759 + $0x38] sm:$0xff]
      %v3768 = vpack.c.bf16 %v3756, %v3755
      %v3769 = vpack.c.bf16 %v3758, %v3757
      %v3770 = vpack.c.bf16 %v3761, %v3760
      %v3771 = vpack.c.bf16 %v3763, %v3762
      %v3772 = vpack.c.bf16 %v3765, %v3764
      %v3773 = vpack.c.bf16 %v3767, %v3766
      %v3775 = vsel %vm2280, %v3768, 0
      %v3778 = vsel %vm2280, %v3769, 0
      %3780 = vmatprep.subr.bf16.mxu0 0
      %3781 = vmatpush1.bf16.msra.mxu0 %v3770
      %3782 = vmatprep.subr.bf16.mxu0 0
      %3783 = vmatpush1.bf16.msra.mxu0 %v3771
      %3784 = vmatprep.subr.bf16.mxu0 0
      %3785 = vmatpush1.bf16.msra.mxu0 %v3772
      %3786 = vmatprep.subr.bf16.mxu0 0
      %3787 = vmatpush1.bf16.msra.mxu0 %v3773
      %3788 = vmatprep.subr.bf16.mxu0 0
      %3789 = vmatpush1.bf16.msra.mxu0 0
      %3790 = vmatprep.subr.bf16.mxu0 0
      %3791 = vmatpush1.bf16.msra.mxu0 0
      %3792 = vmatprep.subr.bf16.mxu0 0
      %3793 = vmatpush1.bf16.msra.mxu0 0
      %3794 = vmatprep.subr.bf16.mxu0 0
      %3795 = vmatpush1.bf16.msra.mxu0 0
      %3796 = vmatprep.subr.bf16.mxu0 0
      %3797 = vmatpush1.bf16.msra.mxu0 0
      %3798 = vmatprep.subr.bf16.mxu0 0
      %3799 = vmatpush1.bf16.msra.mxu0 0
      %3800 = vmatprep.subr.bf16.mxu0 0
      %3801 = vmatpush1.bf16.msra.mxu0 0
      %3802 = vmatprep.subr.bf16.mxu0 0
      %3803 = vmatpush1.bf16.msra.mxu0 0
      %3804 = vmatprep.subr.bf16.mxu0 0
      %3805 = vmatpush1.bf16.msra.mxu0 0
      %3806 = vmatprep.subr.bf16.mxu0 0
      %3807 = vmatpush1.bf16.msra.mxu0 0
      %3808 = vmatprep.subr.bf16.mxu0 0
      %3809 = vmatpush1.bf16.msra.mxu0 0
      %3810 = vmatprep.subr.bf16.mxu0 0
      %3811 = vmatpush1.bf16.msra.mxu0 0
      %3812 = vmatprep.mubr.bf16.mxu0 0
      %3813 = vmatmul.mubr.bf16.gmra.mrb[0].mxu0 %v3775
      %v3814 = vpop.f32.mrb[0].mxu0
      %v3815 = vadd.f32 0.0, %v3814
      %v3816 = vpop.f32.mrb[0].mxu0
      %v3817 = vpop.f32.mrb[0].mxu0
      %v3818 = vadd.f32 0.0, %v3817
      %v3819 = vpop.f32.mrb[0].mxu0
      %3820 = vmatprep.mubr.bf16.mxu0 0
      %3821 = vmatmul.mubr.bf16.gmra.mrb[0].mxu0 %v3778
      %v3822 = vpop.f32.mrb[0].mxu0
      %v3823 = vadd.f32 0.0, %v3822
      %v3824 = vpop.f32.mrb[0].mxu0
      %v3825 = vpop.f32.mrb[0].mxu0
      %v3826 = vadd.f32 0.0, %v3825
      %v3827 = vpop.f32.mrb[0].mxu0
      %3828 = vdwg.mxu0
      %v3829 = vadd.f32 %v3603, %v3815
      %v3830 = vadd.f32 %v3604, %v3818
      %v3831 = vadd.f32 %v3605, %v3823
      %v3832 = vadd.f32 %v3606, %v3826
      %s3833 = scalar_lea.vmem %s15, 1
      %v3834 = vld [vmem:[%s3833] sm:$0x1]
      %v3836 = vlaneseq
      %v3837 = vshrl.u32 %v3836, 7
      %v3838 = vsub.s32 0, %v3837
      %v3839 = vrot.slane %v3834, %v3838
      %v3841 = vadd.f32 %v3829, %v3839
      %v3842 = vadd.f32 %v3830, %v3839
      %v3843 = vadd.f32 %v3831, %v3839
      %v3844 = vadd.f32 %v3832, %v3839
      %v3845 = vsel %vm868, %v3841, 0.0
      %v3846 = vsel %vm868, %v3842, 0.0
      %v3847 = vadd.f32 %v3845, %v3846
      %v3848 = vrot.slane %v3847, 4
      %v3849 = vadd.f32 %v3847, %v3848
      %v3850 = vrot.slane %v3849, 2
      %v3851 = vadd.f32 %v3849, %v3850
      %v3852 = vrot.slane %v3851, 1
      %v3853 = vadd.f32 %v3851, %v3852
      %v3854 = vrcp.pop 16.0
      %v3855 = vmul.f32 %v3853, %v3854
      %v3856 = vsel %vm868, %v3843, 0.0
      %v3857 = vsel %vm868, %v3844, 0.0
      %v3858 = vadd.f32 %v3856, %v3857
      %v3859 = vrot.slane %v3858, 4
      %v3860 = vadd.f32 %v3858, %v3859
      %v3861 = vrot.slane %v3860, 2
      %v3862 = vadd.f32 %v3860, %v3861
      %v3863 = vrot.slane %v3862, 1
      %v3864 = vadd.f32 %v3862, %v3863
      %v3865 = vmul.f32 %v3864, %v3854
      %vm3866 = vcmask 1040384
      %v3867 = vsel %vm3866, %v3855, %v3865
      %vm3868 = vcmask 1041408
      %v3869 = vsel %vm3868, %v3867, 0.0
      %v3870 = vld [vmem:[%s16] sm:$0xff]
      %v3871 = vld [vmem:[%s16 + $0x8] sm:$0xff]
      %v3872 = vld [vmem:[%s16 + $0x10] sm:$0xff]
      %v3873 = vld [vmem:[%s16 + $0x18] sm:$0xff]
      %v3874 = vpack.c.bf16 %v3869, %v3869
      %v3875 = vpack.c.bf16 %v3871, %v3870
      %v3876 = vpack.c.bf16 %v3873, %v3872
      %v3877 = vld [vmem:[%s17] sm:$0x1]
      %v3879 = vlaneseq
      %v3880 = vshrl.u32 %v3879, 7
      %v3881 = vsub.s32 0, %v3880
      %v3882 = vrot.slane %v3877, %v3881
      %v3885 = vsel %vm868, %v3874, 0
      %3887 = vmatprep.subr.bf16.mxu0 0
      %3888 = vmatpush1.bf16.msra.mxu0 %v3875
      %3889 = vmatprep.subr.bf16.mxu0 0
      %3890 = vmatpush1.bf16.msra.mxu0 %v3876
      %3891 = vmatprep.subr.bf16.mxu0 0
      %3892 = vmatpush1.bf16.msra.mxu0 0
      %3893 = vmatprep.subr.bf16.mxu0 0
      %3894 = vmatpush1.bf16.msra.mxu0 0
      %3895 = vmatprep.subr.bf16.mxu0 0
      %3896 = vmatpush1.bf16.msra.mxu0 0
      %3897 = vmatprep.subr.bf16.mxu0 0
      %3898 = vmatpush1.bf16.msra.mxu0 0
      %3899 = vmatprep.subr.bf16.mxu0 0
      %3900 = vmatpush1.bf16.msra.mxu0 0
      %3901 = vmatprep.subr.bf16.mxu0 0
      %3902 = vmatpush1.bf16.msra.mxu0 0
      %3903 = vmatprep.subr.bf16.mxu0 0
      %3904 = vmatpush1.bf16.msra.mxu0 0
      %3905 = vmatprep.subr.bf16.mxu0 0
      %3906 = vmatpush1.bf16.msra.mxu0 0
      %3907 = vmatprep.subr.bf16.mxu0 0
      %3908 = vmatpush1.bf16.msra.mxu0 0
      %3909 = vmatprep.subr.bf16.mxu0 0
      %3910 = vmatpush1.bf16.msra.mxu0 0
      %3911 = vmatprep.subr.bf16.mxu0 0
      %3912 = vmatpush1.bf16.msra.mxu0 0
      %3913 = vmatprep.subr.bf16.mxu0 0
      %3914 = vmatpush1.bf16.msra.mxu0 0
      %3915 = vmatprep.subr.bf16.mxu0 0
      %3916 = vmatpush1.bf16.msra.mxu0 0
      %3917 = vmatprep.subr.bf16.mxu0 0
      %3918 = vmatpush1.bf16.msra.mxu0 0
      %3919 = vmatprep.mubr.bf16.mxu0 0
      %3920 = vmatmul.mubr.bf16.gmra.mrb[0].mxu0 %v3885
      %v3921 = vpop.f32.mrb[0].mxu0
      %v3922 = vadd.f32 %v3882, %v3921
      %v3923 = vpop.f32.mrb[0].mxu0
      %v3924 = vpop.f32.mrb[0].mxu0
      %v3925 = vpop.f32.mrb[0].mxu0
      %3926 = vdwg.mxu0
      %v3927 = vmax.f32 %v3922, 0.0
      %v3928 = vld [vmem:[%s18] sm:$0xff]
      %v3929 = vld [vmem:[%s18 + $0x8] sm:$0xff]
      %v3930 = vld [vmem:[%s18 + $0x10] sm:$0xff]
      %v3931 = vld [vmem:[%s18 + $0x18] sm:$0xff]
      %v3932 = vpack.c.bf16 %v3927, %v3927
      %v3933 = vpack.c.bf16 %v3929, %v3928
      %v3934 = vpack.c.bf16 %v3931, %v3930
      %v3935 = vld [vmem:[%s19] sm:$0x1]
      %v3937 = vlaneseq
      %v3938 = vshrl.u32 %v3937, 7
      %v3939 = vsub.s32 0, %v3938
      %v3940 = vrot.slane %v3935, %v3939
      %v3943 = vsel %vm868, %v3932, 0
      %3945 = vmatprep.subr.bf16.mxu0 0
      %3946 = vmatpush1.bf16.msra.mxu0 %v3933
      %3947 = vmatprep.subr.bf16.mxu0 0
      %3948 = vmatpush1.bf16.msra.mxu0 %v3934
      %3949 = vmatprep.subr.bf16.mxu0 0
      %3950 = vmatpush1.bf16.msra.mxu0 0
      %3951 = vmatprep.subr.bf16.mxu0 0
      %3952 = vmatpush1.bf16.msra.mxu0 0
      %3953 = vmatprep.subr.bf16.mxu0 0
      %3954 = vmatpush1.bf16.msra.mxu0 0
      %3955 = vmatprep.subr.bf16.mxu0 0
      %3956 = vmatpush1.bf16.msra.mxu0 0
      %3957 = vmatprep.subr.bf16.mxu0 0
      %3958 = vmatpush1.bf16.msra.mxu0 0
      %3959 = vmatprep.subr.bf16.mxu0 0
      %3960 = vmatpush1.bf16.msra.mxu0 0
      %3961 = vmatprep.subr.bf16.mxu0 0
      %3962 = vmatpush1.bf16.msra.mxu0 0
      %3963 = vmatprep.subr.bf16.mxu0 0
      %3964 = vmatpush1.bf16.msra.mxu0 0
      %3965 = vmatprep.subr.bf16.mxu0 0
      %3966 = vmatpush1.bf16.msra.mxu0 0
      %3967 = vmatprep.subr.bf16.mxu0 0
      %3968 = vmatpush1.bf16.msra.mxu0 0
      %3969 = vmatprep.subr.bf16.mxu0 0
      %3970 = vmatpush1.bf16.msra.mxu0 0
      %3971 = vmatprep.subr.bf16.mxu0 0
      %3972 = vmatpush1.bf16.msra.mxu0 0
      %3973 = vmatprep.subr.bf16.mxu0 0
      %3974 = vmatpush1.bf16.msra.mxu0 0
      %3975 = vmatprep.subr.bf16.mxu0 0
      %3976 = vmatpush1.bf16.msra.mxu0 0
      %3977 = vmatprep.mubr.bf16.mxu0 0
      %3978 = vmatmul.mubr.bf16.gmra.mrb[0].mxu0 %v3943
      %v3979 = vpop.f32.mrb[0].mxu0
      %v3980 = vadd.f32 %v3940, %v3979
      %v3981 = vpop.f32.mrb[0].mxu0
      %v3982 = vpop.f32.mrb[0].mxu0
      %v3983 = vpop.f32.mrb[0].mxu0
      %3984 = vdwg.mxu0
      %3985 = vst [vmem:[%s629] sm:$0xff] %v3980
      %p3986 = scmp.lt.s32.totalorder %s31, 1
      %s3987 = scalar_select %p3986, %s31, 1
      %s3988 = smul.addr %s3987, 8
      %s3989 = scalar_lea.vmem %s20, %s3988
      // Predicated region
      $region101: #{transformer_model_forward.1} parent=99 // pred_check
        %p3990 = pneg %p474
      $region102: #{transformer_model_forward.1} parent=99 // pred_check_branch
        %3992 = sbr.rel (%p3990) target = $region104
      $region103: #{transformer_model_forward.1} parent=99 // pred_region
        _
      $region104: #{transformer_model_forward.1} parent=99 // pred_fallthru
        _
    $region100: #{transformer_model_forward.1} parent=5 // pred_fallthru
      _
    %p3993 = scmp.le.s32.totalorder 2, %s26
    // Predicated region
    $region105: #{transformer_model_forward.1} parent=5 // pred_check
      %p3994 = pneg %p3993
    $region106: #{transformer_model_forward.1} parent=5 // pred_check_branch
      %3996 = sbr.rel (%p3994) target = $region108
    $region107: #{transformer_model_forward.1} parent=5 // pred_region
      %s3997 = ssub.s32 %s26, 2
      // Predicated region
      $region109: #{transformer_model_forward.1} parent=107 // pred_check
        %p3998 = pneg %p480
      $region110: #{transformer_model_forward.1} parent=107 // pred_check_branch
        %4000 = sbr.rel (%p3998) target = $region112
      $region111: #{transformer_model_forward.1} parent=107 // pred_region
        %p4001 = scmp.lt.s32.totalorder %s32, 1
        %s4002 = scalar_select %p4001, %s32, 1
        %s4003 = smul.addr %s4002, 8
        %s4004 = scalar_lea.vmem %s20, %s4003
      $region112: #{transformer_model_forward.1} parent=107 // pred_fallthru
        _
    $region108: #{transformer_model_forward.1} parent=5 // pred_fallthru
      _
  $region6: #{transformer_model_forward.1} parent=0 // loop_footer
    %s30 = sadd.s32 1, %s26
  $region7: #{transformer_model_forward.1} parent=0 // loop_footer_branch
    %25 = sbr.rel target = $region3
  $region8: #{transformer_model_forward.1} parent=0 // loop_exit
    _

</llo_original>
